<compile_context>
chip_gen: v7x
topology: tpu7x:2x2x1
jax: 0.10.0
libtpu: 0.0.40
codegen_flags: <defaults>
</compile_context>

<pallas_src>
import math
import functools

import jax
import jax.numpy as jnp
from jax.experimental import pallas as pl
from jax.experimental.pallas import tpu as pltpu

# ----------------------------- configuration --------------------------------
BS = 2
N_VERT = 128          # number of BFM vertices (small synthetic model)
N_TRI = 96            # number of triangles
N_ID, N_EX, N_TEX = 80, 64, 80
N_KP = 68
H = W = 32            # rendered image size (landmark constants stay at 250,
                      # matching the original module)
HW = H * W
D3 = 3 * N_VERT       # 384
SIGMA = 0.15
TILE_HW = 4096        # pixel-column tile for the splat kernel (HW<=TILE -> 1 tile)

# SH lighting constants (identical to the PyTorch module)
A0 = math.pi
A1 = 2.0 * math.pi / math.sqrt(3.0)
A2 = 2.0 * math.pi / math.sqrt(8.0)
C0 = 1.0 / math.sqrt(4.0 * math.pi)
C1 = math.sqrt(3.0) / math.sqrt(4.0 * math.pi)
C2 = 3.0 * math.sqrt(5.0) / math.sqrt(12.0 * math.pi)


# ---------------- Pallas kernel 1: fused BFM basis decode --------------------
# Two un-padded MXU matmuls decode geometry and texture in one kernel call:
#   shape = coef_se  [bs,144] @ shape_basis [144, 3N] + mean_shape
#   tex   = coef_tex [bs, 80] @ tex_basis   [ 80, 3N] + mean_tex
def decode_kernel(coef_s_ref, coef_t_ref, sbasis_ref, tbasis_ref,
                  smean_ref, tmean_ref, shape_out_ref, tex_out_ref):
    shape_out_ref[...] = smean_ref[...] + jnp.dot(
        coef_s_ref[...], sbasis_ref[...], preferred_element_type=jnp.float32)
    tex_out_ref[...] = tmean_ref[...] + jnp.dot(
        coef_t_ref[...], tbasis_ref[...], preferred_element_type=jnp.float32)


def decode_fused(coef_se, coef_tex, shape_basis, tex_basis, mean_shape, mean_tex):
    bs = coef_se.shape[0]
    ks, kt = coef_se.shape[1], coef_tex.shape[1]
    d = shape_basis.shape[1]
    return pl.pallas_call(
        decode_kernel,
        out_shape=(jax.ShapeDtypeStruct((bs, d), jnp.float32),
                   jax.ShapeDtypeStruct((bs, d), jnp.float32)),
        grid=(1,),
        in_specs=[
            pl.BlockSpec((bs, ks), lambda i: (0, 0)),
            pl.BlockSpec((bs, kt), lambda i: (0, 0)),
            pl.BlockSpec((ks, d), lambda i: (0, 0)),
            pl.BlockSpec((kt, d), lambda i: (0, 0)),
            pl.BlockSpec((1, d), lambda i: (0, 0)),
            pl.BlockSpec((1, d), lambda i: (0, 0)),
        ],
        out_specs=(pl.BlockSpec((bs, d), lambda i: (0, 0)),
                   pl.BlockSpec((bs, d), lambda i: (0, 0))),
    )(coef_se, coef_tex, shape_basis, tex_basis, mean_shape, mean_tex)


# ------- Pallas kernel 2: fused lighting + Gaussian splat + image loss -------
# TODO(synk): the original soft-rasterizer (sr.Mesh / renderer) cannot be
#             expressed in Pallas; this deterministic Gaussian point-splat
#             stands in for it (RGBA output, alpha > 0 where geometry lands).
def splat_kernel(gamma_ref, verts_ref, norm_ref, alb_ref, pix_ref, gt_ref,
                 img_ref, loss_ref):
    b = pl.program_id(0)

    # ---- SH lighting (pure VPU weighted sum; gamma scalars from SMEM) -------
    nrm = norm_ref[0]                      # [3, N]
    alb = alb_ref[0]                       # [3, N]
    nx = nrm[0:1, :]
    ny = nrm[1:2, :]
    nz = nrm[2:3, :]
    ones = jnp.ones_like(nx)
    ybasis = (
        A0 * C0 * ones,
        -A1 * C1 * ny,
        A1 * C1 * nz,
        -A1 * C1 * nx,
        A2 * C2 * nx * ny,
        -A2 * C2 * ny * nz,
        A2 * C2 * 0.5 / math.sqrt(3.0) * (3.0 * nz * nz - 1.0),
        -A2 * C2 * nx * nz,
        A2 * C2 * 0.5 * (nx * nx - ny * ny),
    )
    rows = []
    for c in range(3):
        acc = gamma_ref[b, 9 * c] * ybasis[0]
        for i in range(1, 9):
            acc = acc + gamma_ref[b, 9 * c + i] * ybasis[i]
        rows.append(acc * alb[c:c + 1, :])             # lit color channel c
    rows.append(ones)                                  # ones row -> sum_w
    c4 = jnp.concatenate(rows, axis=0)                 # [4, N]

    # ---- exp argument via ONE augmented MXU matmul ---------------------------
    #   verts_ref[0] = [vx, vy, |v|^2, 1]        : [N, 4]
    #   pix_ref      = [px/s^2; py/s^2; -1/(2s^2); -|p|^2/(2s^2)] : [4, T]
    #   arg = Va @ Pa = -(|v|^2 + |p|^2 - 2 v.p) / (2 sigma^2)
    arg = jnp.dot(verts_ref[0], pix_ref[...],
                  preferred_element_type=jnp.float32)          # [N, T]

    # f32 exp on the EUP; only the MXU operands are cast to bf16.
    w = jnp.exp(arg)                                           # [N, T] f32
    out4 = jnp.dot(c4.astype(jnp.bfloat16), w.astype(jnp.bfloat16),
                   preferred_element_type=jnp.float32)         # [4, T]

    sum_w = out4[3:4, :]                                       # [1, T]
    inv = pl.reciprocal(sum_w + 1e-6, approx=True)             # EUP reciprocal
    rgb = out4[0:3, :] * inv
    alpha = 1.0 - jnp.exp(-sum_w)                              # f32 alpha

    # lane-dense slice stores (no concatenate)
    img_ref[0, 0:3, :] = rgb
    img_ref[0, 3:4, :] = alpha

    # ---- per-pixel image-MSE partial sums (final reduce done in XLA) --------
    # Matches the PyTorch module: mse(recon[:, :3], gt * mask) -> recon stays
    # unmasked, only gt is multiplied by the (alpha > 0) mask.
    mask = (alpha > 0.0).astype(jnp.float32)
    diff = rgb - gt_ref[0] * mask
    loss_ref[0, :, :] = jnp.sum(diff * diff, axis=0, keepdims=True)


def splat_render_and_loss(gamma27, verts_aug, norm_cn, alb_cn, pix_aug, gt_flat):
    bs, n, _ = verts_aug.shape
    hw = pix_aug.shape[1]
    tile = hw if hw <= TILE_HW else TILE_HW
    num_tiles = hw // tile
    assert tile * num_tiles == hw

    recon_flat, loss_part = pl.pallas_call(
        splat_kernel,
        out_shape=(jax.ShapeDtypeStruct((bs, 4, hw), jnp.float32),
                   jax.ShapeDtypeStruct((bs, 1, hw), jnp.float32)),
        grid=(bs, num_tiles),
        in_specs=[
            pl.BlockSpec(memory_space=pltpu.MemorySpace.SMEM),     # gamma [bs,27]
            pl.BlockSpec((1, n, 4), lambda b, t: (b, 0, 0)),       # [vx,vy,|v|^2,1]
            pl.BlockSpec((1, 3, n), lambda b, t: (b, 0, 0)),       # normals
            pl.BlockSpec((1, 3, n), lambda b, t: (b, 0, 0)),       # albedo
            pl.BlockSpec((4, tile), lambda b, t: (0, t)),          # augmented pixels
            pl.BlockSpec((1, 3, tile), lambda b, t: (b, 0, t)),    # gt image
        ],
        out_specs=(pl.BlockSpec((1, 4, tile), lambda b, t: (b, 0, t)),
                   pl.BlockSpec((1, 1, tile), lambda b, t: (b, 0, t))),
        compiler_params=pltpu.CompilerParams(
            dimension_semantics=("parallel", "parallel")),
    )(gamma27, verts_aug, norm_cn, alb_cn, pix_aug, gt_flat)
    return recon_flat, loss_part


# ------------------------------ plain-JAX glue -------------------------------
def compute_rotation_matrix(angles):
    x, y, z = angles[:, 0], angles[:, 1], angles[:, 2]
    cx, sx = jnp.cos(x), jnp.sin(x)
    cy, sy = jnp.cos(y), jnp.sin(y)
    cz, sz = jnp.cos(z), jnp.sin(z)
    zeros = jnp.zeros_like(x)
    ones = jnp.ones_like(x)
    rx = jnp.stack([ones, zeros, zeros,
                    zeros, cx, -sx,
                    zeros, sx, cx], axis=-1).reshape(-1, 3, 3)
    ry = jnp.stack([cy, zeros, sy,
                    zeros, ones, zeros,
                    -sy, zeros, cy], axis=-1).reshape(-1, 3, 3)
    rz = jnp.stack([cz, -sz, zeros,
                    sz, cz, zeros,
                    zeros, zeros, ones], axis=-1).reshape(-1, 3, 3)
    r = jnp.einsum('bij,bjk->bik', jnp.einsum('bij,bjk->bik', rz, ry), rx)
    return jnp.transpose(r, (0, 2, 1))


def compute_norm(vertices, tri, point_buf):
    # TODO(synk): gather-heavy topology lookups kept in plain JAX (dynamic
    #             gather has no clean small-scale Pallas equivalent).
    bs = vertices.shape[0]
    face_id = jnp.flip(tri.reshape(-1, 3) - 1, axis=1)          # [ntri, 3]
    v1 = vertices[:, face_id[:, 0], :]
    v2 = vertices[:, face_id[:, 1], :]
    v3 = vertices[:, face_id[:, 2], :]
    e1 = v1 - v2
    e2 = v2 - v3
    nrm = jnp.cross(e1, e2)                                     # [bs, ntri, 3]
    nrm = jnp.concatenate(
        [nrm, jnp.zeros((bs, 1, 3), nrm.dtype)], axis=1)        # [bs, ntri+1, 3]
    point_id = point_buf - 1                                    # [N, 8]
    v_norm = nrm[:, point_id.reshape(-1), :].reshape(bs, -1, 8, 3)
    v_norm = jnp.sum(v_norm, axis=2)
    denom = jnp.maximum(
        jnp.linalg.norm(v_norm, axis=-1, keepdims=True), 1e-12)  # f.normalize
    return v_norm / denom


def bfm_face_loss_forward(params, gt_img, gt_lmk, bfm, lmk_loss_w):
    bs = params.shape[0]
    # split (same layout as the PyTorch module)
    angles = params[:, 224:227]
    gamma = params[:, 227:254]
    translation = params[:, 254:257]
    scale = params[:, 257:]

    # --- fused BFM decode (one Pallas call, two un-padded MXU matmuls) ---
    coef_se = params[:, :N_ID + N_EX]                           # id | ex
    coef_tex = params[:, N_ID + N_EX:224]                       # tex
    shape_flat, tex_flat = decode_fused(
        coef_se, coef_tex, bfm['shape_basis'], bfm['tex_basis'],
        bfm['mean_shape'], bfm['mean_tex'])
    face_shape = shape_flat.reshape(bs, N_VERT, 3)
    face_albedo = tex_flat.reshape(bs, N_VERT, 3) / 255.0

    face_shape = face_shape.at[:, :, -1].multiply(-1.0)
    rot = compute_rotation_matrix(angles)
    face_shape = jnp.einsum('bnk,bkj->bnj', face_shape, rot)
    normal = compute_norm(face_shape, bfm['tri'], bfm['point_buf'])
    face_shape = (1.0 + scale[:, :, None]) * face_shape
    face_shape = face_shape + translation[:, None, :]

    # gamma + init_light, flattened for SMEM scalar reads in the kernel
    init_light = jnp.zeros((9,), jnp.float32).at[0].set(0.8)
    gamma27 = (gamma.reshape(bs, 3, 9) + init_light).reshape(bs, 27)

    # channel-major per-vertex tensors (N_vert on the lane axis)
    norm_cn = jnp.transpose(normal, (0, 2, 1))                  # [bs, 3, N]
    alb_cn = jnp.transpose(face_albedo, (0, 2, 1))              # [bs, 3, N]

    # augmented vertex coords for the single-matmul Gaussian exponent
    vx = face_shape[:, :, 0]
    vy = face_shape[:, :, 1]
    verts_aug = jnp.stack(
        [vx, vy, vx * vx + vy * vy, jnp.ones_like(vx)], axis=-1)  # [bs, N, 4]

    # --- fused lighting + render + img-loss (single Pallas kernel) ---
    recon_flat, loss_part = splat_render_and_loss(
        gamma27, verts_aug, norm_cn, alb_cn, bfm['pix_aug'],
        gt_img.reshape(bs, 3, HW).astype(jnp.float32))
    recon_img = recon_flat.reshape(bs, 4, H, W)
    img_loss = jnp.sum(loss_part) / (bs * 3 * HW)               # MSELoss mean

    # --- landmark SmoothL1 loss (tiny; plain JAX) ---
    recon_lmk = face_shape[:, bfm['keypoints'], :]              # [bs, 68, 3]
    x2d = (recon_lmk[:, :, 0] + 1.0) * 250.0 / 2.0
    y2d = 250.0 - (recon_lmk[:, :, 1] + 1.0) * 250.0 / 2.0
    gt_lmk_f = gt_lmk.astype(jnp.float32)
    dx = x2d - gt_lmk_f[:, :, 0]
    dy = y2d - gt_lmk_f[:, :, 1]

    def huber(d):                                               # SmoothL1, beta=1
        ad = jnp.abs(d)
        return jnp.where(ad < 1.0, 0.5 * d * d, ad - 0.5)

    lmk_loss = (jnp.sum(huber(dx)) + jnp.sum(huber(dy))) / (bs * N_KP * 2)

    all_loss = img_loss + lmk_loss_w * lmk_loss
    return all_loss, img_loss, lmk_loss, recon_img


# --------------------------------- main --------------------------------------
if __name__ == "__main__":
    key = jax.random.PRNGKey(0)
    ks = jax.random.split(key, 12)

    mean_shape = jax.random.uniform(ks[0], (1, D3), minval=-0.7, maxval=0.7)
    id_base = jax.random.normal(ks[1], (N_ID, D3)) * 0.02
    ex_base = jax.random.normal(ks[2], (N_EX, D3)) * 0.02
    mean_tex = jax.random.uniform(ks[3], (1, D3), minval=0.0, maxval=255.0)
    tex_base = jax.random.normal(ks[4], (N_TEX, D3)) * 0.5

    bfm = {
        'shape_basis': jnp.concatenate([id_base, ex_base], axis=0),  # [144, D3]
        'tex_basis':   tex_base,                                     # [80, D3]
        'mean_shape':  mean_shape,                                   # [1, D3]
        'mean_tex':    mean_tex,                                     # [1, D3]
        'tri':        jax.random.randint(ks[5], (N_TRI * 3,), 1, N_VERT + 1,
                                         dtype=jnp.int32),
        'point_buf':  jax.random.randint(ks[6], (N_VERT, 8), 1, N_TRI + 2,
                                         dtype=jnp.int32),
        'keypoints':  jax.random.randint(ks[7], (N_KP,), 0, N_VERT,
                                         dtype=jnp.int32),
    }

    # Augmented pixel grid (NDC, row-major, row 0 = top of image):
    #   Pa = [px/s^2; py/s^2; -1/(2 s^2); -|p|^2/(2 s^2)]   ->  Va @ Pa is the
    # Gaussian exponent, computed by a single MXU matmul inside the kernel.
    ys = jnp.linspace(1.0, -1.0, H)
    xs = jnp.linspace(-1.0, 1.0, W)
    gy, gx = jnp.meshgrid(ys, xs, indexing='ij')
    px = gx.reshape(-1)
    py = gy.reshape(-1)
    inv_s2 = 1.0 / (SIGMA * SIGMA)
    bfm['pix_aug'] = jnp.stack([
        px * inv_s2,
        py * inv_s2,
        jnp.full_like(px, -0.5 * inv_s2),
        -(0.5 * inv_s2) * (px * px + py * py),
    ], axis=0).astype(jnp.float32)                               # [4, HW]

    params = jax.random.normal(ks[8], (BS, 258)) * 0.1
    gt_img = jax.random.uniform(ks[9], (BS, 3, H, W))
    gt_lmk = jax.random.uniform(ks[10], (BS, N_KP, 2), minval=0.0, maxval=250.0)

    fwd = jax.jit(functools.partial(bfm_face_loss_forward, lmk_loss_w=1.0))
    all_loss, img_loss, lmk_loss, recon_img = fwd(params, gt_img, gt_lmk, bfm)
    jax.block_until_ready((all_loss, img_loss, lmk_loss, recon_img))
    print("KERNEL_OK")
</pallas_src>

<mosaic_0001>
module attributes {stable_mosaic.version = 11 : i64} {
  func.func @decode_kernel(%arg0: i32, %arg1: memref<2x144xf32, #tpu.memory_space<vmem>>, %arg2: memref<2x80xf32, #tpu.memory_space<vmem>>, %arg3: memref<144x384xf32, #tpu.memory_space<vmem>>, %arg4: memref<80x384xf32, #tpu.memory_space<vmem>>, %arg5: memref<1x384xf32, #tpu.memory_space<vmem>>, %arg6: memref<1x384xf32, #tpu.memory_space<vmem>>, %arg7: memref<2x384xf32, #tpu.memory_space<vmem>>, %arg8: memref<2x384xf32, #tpu.memory_space<vmem>>) attributes {dimension_semantics = [#tpu.dimension_semantics<arbitrary>], iteration_bounds = array<i64: 1>, scalar_prefetch = 0 : i64, scratch_operands = 0 : i64, tpu.core_type = #tpu.core_type<tc>, window_params = [{pipeline_mode = #tpu.pipeline_mode<synchronous>, transform_indices = @transform_0, window_bounds = array<i64: 2, 144>}, {pipeline_mode = #tpu.pipeline_mode<synchronous>, transform_indices = @transform_1, window_bounds = array<i64: 2, 80>}, {pipeline_mode = #tpu.pipeline_mode<synchronous>, transform_indices = @transform_2, window_bounds = array<i64: 144, 384>}, {pipeline_mode = #tpu.pipeline_mode<synchronous>, transform_indices = @transform_3, window_bounds = array<i64: 80, 384>}, {pipeline_mode = #tpu.pipeline_mode<synchronous>, transform_indices = @transform_4, window_bounds = array<i64: 1, 384>}, {pipeline_mode = #tpu.pipeline_mode<synchronous>, transform_indices = @transform_5, window_bounds = array<i64: 1, 384>}, {pipeline_mode = #tpu.pipeline_mode<synchronous>, transform_indices = @transform_6, window_bounds = array<i64: 2, 384>}, {pipeline_mode = #tpu.pipeline_mode<synchronous>, transform_indices = @transform_7, window_bounds = array<i64: 2, 384>}]} {
    %c0 = arith.constant 0 : index
    %c0_0 = arith.constant 0 : index
    %0 = vector.load %arg5[%c0, %c0_0] : memref<1x384xf32, #tpu.memory_space<vmem>>, vector<1x384xf32>
    %c0_1 = arith.constant 0 : index
    %c0_2 = arith.constant 0 : index
    %1 = vector.load %arg1[%c0_1, %c0_2] : memref<2x144xf32, #tpu.memory_space<vmem>>, vector<2x144xf32>
    %c0_3 = arith.constant 0 : index
    %c0_4 = arith.constant 0 : index
    %2 = vector.load %arg3[%c0_3, %c0_4] : memref<144x384xf32, #tpu.memory_space<vmem>>, vector<144x384xf32>
    %cst = arith.constant dense<0.000000e+00> : vector<2x384xf32>
    %3 = tpu.matmul %1, %2, %cst {dimension_numbers = #tpu.dot_dimension_numbers<[1], [0], [0], [1], [0, 0, 1, 1], [], []>} : vector<2x144xf32>, vector<144x384xf32>, vector<2x384xf32> -> vector<2x384xf32>
    %4 = vector.broadcast %0 : vector<1x384xf32> to vector<2x384xf32>
    %5 = arith.addf %4, %3 : vector<2x384xf32>
    %c0_5 = arith.constant 0 : index
    %c0_6 = arith.constant 0 : index
    %6 = vector.load %arg7[%c0_5, %c0_6] : memref<2x384xf32, #tpu.memory_space<vmem>>, vector<2x384xf32>
    tpu.vector_store %arg7[%c0_5, %c0_6], %5 {strides = array<i32>} : memref<2x384xf32, #tpu.memory_space<vmem>>, vector<2x384xf32>,
    %c0_7 = arith.constant 0 : index
    %c0_8 = arith.constant 0 : index
    %7 = vector.load %arg6[%c0_7, %c0_8] : memref<1x384xf32, #tpu.memory_space<vmem>>, vector<1x384xf32>
    %c0_9 = arith.constant 0 : index
    %c0_10 = arith.constant 0 : index
    %8 = vector.load %arg2[%c0_9, %c0_10] : memref<2x80xf32, #tpu.memory_space<vmem>>, vector<2x80xf32>
    %c0_11 = arith.constant 0 : index
    %c0_12 = arith.constant 0 : index
    %9 = vector.load %arg4[%c0_11, %c0_12] : memref<80x384xf32, #tpu.memory_space<vmem>>, vector<80x384xf32>
    %cst_13 = arith.constant dense<0.000000e+00> : vector<2x384xf32>
    %10 = tpu.matmul %8, %9, %cst_13 {dimension_numbers = #tpu.dot_dimension_numbers<[1], [0], [0], [1], [0, 0, 1, 1], [], []>} : vector<2x80xf32>, vector<80x384xf32>, vector<2x384xf32> -> vector<2x384xf32>
    %11 = vector.broadcast %7 : vector<1x384xf32> to vector<2x384xf32>
    %12 = arith.addf %11, %10 : vector<2x384xf32>
    %c0_14 = arith.constant 0 : index
    %c0_15 = arith.constant 0 : index
    %13 = vector.load %arg8[%c0_14, %c0_15] : memref<2x384xf32, #tpu.memory_space<vmem>>, vector<2x384xf32>
    tpu.vector_store %arg8[%c0_14, %c0_15], %12 {strides = array<i32>} : memref<2x384xf32, #tpu.memory_space<vmem>>, vector<2x384xf32>,
    return
  }
  func.func @transform_0(%arg0: i32) -> (i32, i32) {
    %c0_i32 = arith.constant 0 : i32
    %c0_i32_0 = arith.constant 0 : i32
    %c0_i32_1 = arith.constant 0 : i32
    return %c0_i32, %c0_i32_0 : i32, i32
  }
  func.func @transform_1(%arg0: i32) -> (i32, i32) {
    %c0_i32 = arith.constant 0 : i32
    %c0_i32_0 = arith.constant 0 : i32
    %c0_i32_1 = arith.constant 0 : i32
    return %c0_i32, %c0_i32_0 : i32, i32
  }
  func.func @transform_2(%arg0: i32) -> (i32, i32) {
    %c0_i32 = arith.constant 0 : i32
    %c0_i32_0 = arith.constant 0 : i32
    %c0_i32_1 = arith.constant 0 : i32
    return %c0_i32, %c0_i32_0 : i32, i32
  }
  func.func @transform_3(%arg0: i32) -> (i32, i32) {
    %c0_i32 = arith.constant 0 : i32
    %c0_i32_0 = arith.constant 0 : i32
    %c0_i32_1 = arith.constant 0 : i32
    return %c0_i32, %c0_i32_0 : i32, i32
  }
  func.func @transform_4(%arg0: i32) -> (i32, i32) {
    %c0_i32 = arith.constant 0 : i32
    %c0_i32_0 = arith.constant 0 : i32
    %c0_i32_1 = arith.constant 0 : i32
    return %c0_i32, %c0_i32_0 : i32, i32
  }
  func.func @transform_5(%arg0: i32) -> (i32, i32) {
    %c0_i32 = arith.constant 0 : i32
    %c0_i32_0 = arith.constant 0 : i32
    %c0_i32_1 = arith.constant 0 : i32
    return %c0_i32, %c0_i32_0 : i32, i32
  }
  func.func @transform_6(%arg0: i32) -> (i32, i32) {
    %c0_i32 = arith.constant 0 : i32
    %c0_i32_0 = arith.constant 0 : i32
    %c0_i32_1 = arith.constant 0 : i32
    return %c0_i32, %c0_i32_0 : i32, i32
  }
  func.func @transform_7(%arg0: i32) -> (i32, i32) {
    %c0_i32 = arith.constant 0 : i32
    %c0_i32_0 = arith.constant 0 : i32
    %c0_i32_1 = arith.constant 0 : i32
    return %c0_i32, %c0_i32_0 : i32, i32
  }
}

module attributes {stable_mosaic.version = 11 : i64} {
  func.func @splat_kernel(%arg0: i32, %arg1: i32, %arg2: memref<2x27xf32, #tpu.memory_space<smem>>, %arg3: memref<1x128x4xf32, #tpu.memory_space<vmem>>, %arg4: memref<1x3x128xf32, #tpu.memory_space<vmem>>, %arg5: memref<1x3x128xf32, #tpu.memory_space<vmem>>, %arg6: memref<4x1024xf32, #tpu.memory_space<vmem>>, %arg7: memref<1x3x1024xf32, #tpu.memory_space<vmem>>, %arg8: memref<1x4x1024xf32, #tpu.memory_space<vmem>>, %arg9: memref<1x1x1024xf32, #tpu.memory_space<vmem>>) attributes {dimension_semantics = [#tpu.dimension_semantics<parallel>, #tpu.dimension_semantics<parallel>], iteration_bounds = array<i64: 2, 1>, scalar_prefetch = 0 : i64, scratch_operands = 0 : i64, tpu.core_type = #tpu.core_type<tc>, window_params = [{transform_indices = @transform_0, window_bounds = array<i64: 2, 27>}, {transform_indices = @transform_1, window_bounds = array<i64: 1, 128, 4>}, {transform_indices = @transform_2, window_bounds = array<i64: 1, 3, 128>}, {transform_indices = @transform_3, window_bounds = array<i64: 1, 3, 128>}, {transform_indices = @transform_4, window_bounds = array<i64: 4, 1024>}, {transform_indices = @transform_5, window_bounds = array<i64: 1, 3, 1024>}, {transform_indices = @transform_6, window_bounds = array<i64: 1, 4, 1024>}, {transform_indices = @transform_7, window_bounds = array<i64: 1, 1, 1024>}]} {
    %c0 = arith.constant 0 : index
    %c0_0 = arith.constant 0 : index
    %c0_1 = arith.constant 0 : index
    %0 = vector.load %arg4[%c0, %c0_0, %c0_1] : memref<1x3x128xf32, #tpu.memory_space<vmem>>, vector<1x3x128xf32>
    %1 = vector.shape_cast %0 : vector<1x3x128xf32> to vector<3x128xf32>
    %c0_2 = arith.constant 0 : index
    %c0_3 = arith.constant 0 : index
    %c0_4 = arith.constant 0 : index
    %2 = vector.load %arg5[%c0_2, %c0_3, %c0_4] : memref<1x3x128xf32, #tpu.memory_space<vmem>>, vector<1x3x128xf32>
    %3 = vector.shape_cast %2 : vector<1x3x128xf32> to vector<3x128xf32>
    %4 = vector.extract_strided_slice %1 {offsets = [0, 0], sizes = [1, 128], strides = [1, 1]} : vector<3x128xf32> to vector<1x128xf32>
    %5 = vector.extract_strided_slice %1 {offsets = [1, 0], sizes = [1, 128], strides = [1, 1]} : vector<3x128xf32> to vector<1x128xf32>
    %6 = vector.extract_strided_slice %1 {offsets = [2, 0], sizes = [1, 128], strides = [1, 1]} : vector<3x128xf32> to vector<1x128xf32>
    %cst = arith.constant 1.000000e+00 : f32
    %7 = vector.broadcast %cst : f32 to vector<1x128xf32>
    %cst_5 = arith.constant 0.886226952 : f32
    %8 = vector.broadcast %cst_5 : f32 to vector<1x128xf32>
    %9 = arith.mulf %8, %7 : vector<1x128xf32>
    %cst_6 = arith.constant -1.7724539 : f32
    %10 = vector.broadcast %cst_6 : f32 to vector<1x128xf32>
    %11 = arith.mulf %10, %5 : vector<1x128xf32>
    %cst_7 = arith.constant 1.7724539 : f32
    %12 = vector.broadcast %cst_7 : f32 to vector<1x128xf32>
    %13 = arith.mulf %12, %6 : vector<1x128xf32>
    %cst_8 = arith.constant -1.7724539 : f32
    %14 = vector.broadcast %cst_8 : f32 to vector<1x128xf32>
    %15 = arith.mulf %14, %4 : vector<1x128xf32>
    %cst_9 = arith.constant 2.42703247 : f32
    %16 = vector.broadcast %cst_9 : f32 to vector<1x128xf32>
    %17 = arith.mulf %16, %4 : vector<1x128xf32>
    %18 = arith.mulf %17, %5 : vector<1x128xf32>
    %cst_10 = arith.constant -2.42703247 : f32
    %19 = vector.broadcast %cst_10 : f32 to vector<1x128xf32>
    %20 = arith.mulf %19, %5 : vector<1x128xf32>
    %21 = arith.mulf %20, %6 : vector<1x128xf32>
    %cst_11 = arith.constant 3.000000e+00 : f32
    %22 = vector.broadcast %cst_11 : f32 to vector<1x128xf32>
    %23 = arith.mulf %22, %6 : vector<1x128xf32>
    %24 = arith.mulf %23, %6 : vector<1x128xf32>
    %cst_12 = arith.constant 1.000000e+00 : f32
    %25 = vector.broadcast %cst_12 : f32 to vector<1x128xf32>
    %26 = arith.subf %24, %25 : vector<1x128xf32>
    %cst_13 = arith.constant 0.700623929 : f32
    %27 = vector.broadcast %cst_13 : f32 to vector<1x128xf32>
    %28 = arith.mulf %27, %26 : vector<1x128xf32>
    %cst_14 = arith.constant -2.42703247 : f32
    %29 = vector.broadcast %cst_14 : f32 to vector<1x128xf32>
    %30 = arith.mulf %29, %4 : vector<1x128xf32>
    %31 = arith.mulf %30, %6 : vector<1x128xf32>
    %32 = arith.mulf %4, %4 : vector<1x128xf32>
    %33 = arith.mulf %5, %5 : vector<1x128xf32>
    %34 = arith.subf %32, %33 : vector<1x128xf32>
    %cst_15 = arith.constant 1.21351624 : f32
    %35 = vector.broadcast %cst_15 : f32 to vector<1x128xf32>
    %36 = arith.mulf %35, %34 : vector<1x128xf32>
    %37 = arith.index_cast %arg0 : i32 to index
    %c0_16 = arith.constant 0 : index
    %38 = memref.load %arg2[%37, %c0_16] : memref<2x27xf32, #tpu.memory_space<smem>>
    %39 = vector.broadcast %38 : f32 to vector<1x128xf32>
    %40 = arith.mulf %39, %9 : vector<1x128xf32>
    %41 = arith.index_cast %arg0 : i32 to index
    %c1 = arith.constant 1 : index
    %42 = memref.load %arg2[%41, %c1] : memref<2x27xf32, #tpu.memory_space<smem>>
    %43 = vector.broadcast %42 : f32 to vector<1x128xf32>
    %44 = arith.mulf %43, %11 : vector<1x128xf32>
    %45 = arith.addf %40, %44 : vector<1x128xf32>
    %46 = arith.index_cast %arg0 : i32 to index
    %c2 = arith.constant 2 : index
    %47 = memref.load %arg2[%46, %c2] : memref<2x27xf32, #tpu.memory_space<smem>>
    %48 = vector.broadcast %47 : f32 to vector<1x128xf32>
    %49 = arith.mulf %48, %13 : vector<1x128xf32>
    %50 = arith.addf %45, %49 : vector<1x128xf32>
    %51 = arith.index_cast %arg0 : i32 to index
    %c3 = arith.constant 3 : index
    %52 = memref.load %arg2[%51, %c3] : memref<2x27xf32, #tpu.memory_space<smem>>
    %53 = vector.broadcast %52 : f32 to vector<1x128xf32>
    %54 = arith.mulf %53, %15 : vector<1x128xf32>
    %55 = arith.addf %50, %54 : vector<1x128xf32>
    %56 = arith.index_cast %arg0 : i32 to index
    %c4 = arith.constant 4 : index
    %57 = memref.load %arg2[%56, %c4] : memref<2x27xf32, #tpu.memory_space<smem>>
    %58 = vector.broadcast %57 : f32 to vector<1x128xf32>
    %59 = arith.mulf %58, %18 : vector<1x128xf32>
    %60 = arith.addf %55, %59 : vector<1x128xf32>
    %61 = arith.index_cast %arg0 : i32 to index
    %c5 = arith.constant 5 : index
    %62 = memref.load %arg2[%61, %c5] : memref<2x27xf32, #tpu.memory_space<smem>>
    %63 = vector.broadcast %62 : f32 to vector<1x128xf32>
    %64 = arith.mulf %63, %21 : vector<1x128xf32>
    %65 = arith.addf %60, %64 : vector<1x128xf32>
    %66 = arith.index_cast %arg0 : i32 to index
    %c6 = arith.constant 6 : index
    %67 = memref.load %arg2[%66, %c6] : memref<2x27xf32, #tpu.memory_space<smem>>
    %68 = vector.broadcast %67 : f32 to vector<1x128xf32>
    %69 = arith.mulf %68, %28 : vector<1x128xf32>
    %70 = arith.addf %65, %69 : vector<1x128xf32>
    %71 = arith.index_cast %arg0 : i32 to index
    %c7 = arith.constant 7 : index
    %72 = memref.load %arg2[%71, %c7] : memref<2x27xf32, #tpu.memory_space<smem>>
    %73 = vector.broadcast %72 : f32 to vector<1x128xf32>
    %74 = arith.mulf %73, %31 : vector<1x128xf32>
    %75 = arith.addf %70, %74 : vector<1x128xf32>
    %76 = arith.index_cast %arg0 : i32 to index
    %c8 = arith.constant 8 : index
    %77 = memref.load %arg2[%76, %c8] : memref<2x27xf32, #tpu.memory_space<smem>>
    %78 = vector.broadcast %77 : f32 to vector<1x128xf32>
    %79 = arith.mulf %78, %36 : vector<1x128xf32>
    %80 = arith.addf %75, %79 : vector<1x128xf32>
    %81 = vector.extract_strided_slice %3 {offsets = [0, 0], sizes = [1, 128], strides = [1, 1]} : vector<3x128xf32> to vector<1x128xf32>
    %82 = arith.mulf %80, %81 : vector<1x128xf32>
    %83 = arith.index_cast %arg0 : i32 to index
    %c9 = arith.constant 9 : index
    %84 = memref.load %arg2[%83, %c9] : memref<2x27xf32, #tpu.memory_space<smem>>
    %85 = vector.broadcast %84 : f32 to vector<1x128xf32>
    %86 = arith.mulf %85, %9 : vector<1x128xf32>
    %87 = arith.index_cast %arg0 : i32 to index
    %c10 = arith.constant 10 : index
    %88 = memref.load %arg2[%87, %c10] : memref<2x27xf32, #tpu.memory_space<smem>>
    %89 = vector.broadcast %88 : f32 to vector<1x128xf32>
    %90 = arith.mulf %89, %11 : vector<1x128xf32>
    %91 = arith.addf %86, %90 : vector<1x128xf32>
    %92 = arith.index_cast %arg0 : i32 to index
    %c11 = arith.constant 11 : index
    %93 = memref.load %arg2[%92, %c11] : memref<2x27xf32, #tpu.memory_space<smem>>
    %94 = vector.broadcast %93 : f32 to vector<1x128xf32>
    %95 = arith.mulf %94, %13 : vector<1x128xf32>
    %96 = arith.addf %91, %95 : vector<1x128xf32>
    %97 = arith.index_cast %arg0 : i32 to index
    %c12 = arith.constant 12 : index
    %98 = memref.load %arg2[%97, %c12] : memref<2x27xf32, #tpu.memory_space<smem>>
    %99 = vector.broadcast %98 : f32 to vector<1x128xf32>
    %100 = arith.mulf %99, %15 : vector<1x128xf32>
    %101 = arith.addf %96, %100 : vector<1x128xf32>
    %102 = arith.index_cast %arg0 : i32 to index
    %c13 = arith.constant 13 : index
    %103 = memref.load %arg2[%102, %c13] : memref<2x27xf32, #tpu.memory_space<smem>>
    %104 = vector.broadcast %103 : f32 to vector<1x128xf32>
    %105 = arith.mulf %104, %18 : vector<1x128xf32>
    %106 = arith.addf %101, %105 : vector<1x128xf32>
    %107 = arith.index_cast %arg0 : i32 to index
    %c14 = arith.constant 14 : index
    %108 = memref.load %arg2[%107, %c14] : memref<2x27xf32, #tpu.memory_space<smem>>
    %109 = vector.broadcast %108 : f32 to vector<1x128xf32>
    %110 = arith.mulf %109, %21 : vector<1x128xf32>
    %111 = arith.addf %106, %110 : vector<1x128xf32>
    %112 = arith.index_cast %arg0 : i32 to index
    %c15 = arith.constant 15 : index
    %113 = memref.load %arg2[%112, %c15] : memref<2x27xf32, #tpu.memory_space<smem>>
    %114 = vector.broadcast %113 : f32 to vector<1x128xf32>
    %115 = arith.mulf %114, %28 : vector<1x128xf32>
    %116 = arith.addf %111, %115 : vector<1x128xf32>
    %117 = arith.index_cast %arg0 : i32 to index
    %c16 = arith.constant 16 : index
    %118 = memref.load %arg2[%117, %c16] : memref<2x27xf32, #tpu.memory_space<smem>>
    %119 = vector.broadcast %118 : f32 to vector<1x128xf32>
    %120 = arith.mulf %119, %31 : vector<1x128xf32>
    %121 = arith.addf %116, %120 : vector<1x128xf32>
    %122 = arith.index_cast %arg0 : i32 to index
    %c17 = arith.constant 17 : index
    %123 = memref.load %arg2[%122, %c17] : memref<2x27xf32, #tpu.memory_space<smem>>
    %124 = vector.broadcast %123 : f32 to vector<1x128xf32>
    %125 = arith.mulf %124, %36 : vector<1x128xf32>
    %126 = arith.addf %121, %125 : vector<1x128xf32>
    %127 = vector.extract_strided_slice %3 {offsets = [1, 0], sizes = [1, 128], strides = [1, 1]} : vector<3x128xf32> to vector<1x128xf32>
    %128 = arith.mulf %126, %127 : vector<1x128xf32>
    %129 = arith.index_cast %arg0 : i32 to index
    %c18 = arith.constant 18 : index
    %130 = memref.load %arg2[%129, %c18] : memref<2x27xf32, #tpu.memory_space<smem>>
    %131 = vector.broadcast %130 : f32 to vector<1x128xf32>
    %132 = arith.mulf %131, %9 : vector<1x128xf32>
    %133 = arith.index_cast %arg0 : i32 to index
    %c19 = arith.constant 19 : index
    %134 = memref.load %arg2[%133, %c19] : memref<2x27xf32, #tpu.memory_space<smem>>
    %135 = vector.broadcast %134 : f32 to vector<1x128xf32>
    %136 = arith.mulf %135, %11 : vector<1x128xf32>
    %137 = arith.addf %132, %136 : vector<1x128xf32>
    %138 = arith.index_cast %arg0 : i32 to index
    %c20 = arith.constant 20 : index
    %139 = memref.load %arg2[%138, %c20] : memref<2x27xf32, #tpu.memory_space<smem>>
    %140 = vector.broadcast %139 : f32 to vector<1x128xf32>
    %141 = arith.mulf %140, %13 : vector<1x128xf32>
    %142 = arith.addf %137, %141 : vector<1x128xf32>
    %143 = arith.index_cast %arg0 : i32 to index
    %c21 = arith.constant 21 : index
    %144 = memref.load %arg2[%143, %c21] : memref<2x27xf32, #tpu.memory_space<smem>>
    %145 = vector.broadcast %144 : f32 to vector<1x128xf32>
    %146 = arith.mulf %145, %15 : vector<1x128xf32>
    %147 = arith.addf %142, %146 : vector<1x128xf32>
    %148 = arith.index_cast %arg0 : i32 to index
    %c22 = arith.constant 22 : index
    %149 = memref.load %arg2[%148, %c22] : memref<2x27xf32, #tpu.memory_space<smem>>
    %150 = vector.broadcast %149 : f32 to vector<1x128xf32>
    %151 = arith.mulf %150, %18 : vector<1x128xf32>
    %152 = arith.addf %147, %151 : vector<1x128xf32>
    %153 = arith.index_cast %arg0 : i32 to index
    %c23 = arith.constant 23 : index
    %154 = memref.load %arg2[%153, %c23] : memref<2x27xf32, #tpu.memory_space<smem>>
    %155 = vector.broadcast %154 : f32 to vector<1x128xf32>
    %156 = arith.mulf %155, %21 : vector<1x128xf32>
    %157 = arith.addf %152, %156 : vector<1x128xf32>
    %158 = arith.index_cast %arg0 : i32 to index
    %c24 = arith.constant 24 : index
    %159 = memref.load %arg2[%158, %c24] : memref<2x27xf32, #tpu.memory_space<smem>>
    %160 = vector.broadcast %159 : f32 to vector<1x128xf32>
    %161 = arith.mulf %160, %28 : vector<1x128xf32>
    %162 = arith.addf %157, %161 : vector<1x128xf32>
    %163 = arith.index_cast %arg0 : i32 to index
    %c25 = arith.constant 25 : index
    %164 = memref.load %arg2[%163, %c25] : memref<2x27xf32, #tpu.memory_space<smem>>
    %165 = vector.broadcast %164 : f32 to vector<1x128xf32>
    %166 = arith.mulf %165, %31 : vector<1x128xf32>
    %167 = arith.addf %162, %166 : vector<1x128xf32>
    %168 = arith.index_cast %arg0 : i32 to index
    %c26 = arith.constant 26 : index
    %169 = memref.load %arg2[%168, %c26] : memref<2x27xf32, #tpu.memory_space<smem>>
    %170 = vector.broadcast %169 : f32 to vector<1x128xf32>
    %171 = arith.mulf %170, %36 : vector<1x128xf32>
    %172 = arith.addf %167, %171 : vector<1x128xf32>
    %173 = vector.extract_strided_slice %3 {offsets = [2, 0], sizes = [1, 128], strides = [1, 1]} : vector<3x128xf32> to vector<1x128xf32>
    %174 = arith.mulf %172, %173 : vector<1x128xf32>
    %175 = tpu.concatenate %82, %128, %174, %7 in 0 : vector<1x128xf32>, vector<1x128xf32>, vector<1x128xf32>, vector<1x128xf32> -> vector<4x128xf32>
    %c0_17 = arith.constant 0 : index
    %c0_18 = arith.constant 0 : index
    %c0_19 = arith.constant 0 : index
    %176 = vector.load %arg3[%c0_17, %c0_18, %c0_19] : memref<1x128x4xf32, #tpu.memory_space<vmem>>, vector<1x128x4xf32>
    %177 = vector.shape_cast %176 : vector<1x128x4xf32> to vector<128x4xf32>
    %c0_20 = arith.constant 0 : index
    %c0_21 = arith.constant 0 : index
    %178 = vector.load %arg6[%c0_20, %c0_21] : memref<4x1024xf32, #tpu.memory_space<vmem>>, vector<4x1024xf32>
    %cst_22 = arith.constant dense<0.000000e+00> : vector<128x1024xf32>
    %179 = tpu.matmul %177, %178, %cst_22 {dimension_numbers = #tpu.dot_dimension_numbers<[1], [0], [0], [1], [0, 0, 1, 1], [], []>} : vector<128x4xf32>, vector<4x1024xf32>, vector<128x1024xf32> -> vector<128x1024xf32>
    %180 = math.exp %179 : vector<128x1024xf32>
    %181 = arith.truncf %175 : vector<4x128xf32> to vector<4x128xbf16>
    %182 = arith.truncf %180 : vector<128x1024xf32> to vector<128x1024xbf16>
    %cst_23 = arith.constant dense<0.000000e+00> : vector<4x1024xf32>
    %183 = tpu.matmul %181, %182, %cst_23 {dimension_numbers = #tpu.dot_dimension_numbers<[1], [0], [0], [1], [0, 0, 1, 1], [], []>} : vector<4x128xbf16>, vector<128x1024xbf16>, vector<4x1024xf32> -> vector<4x1024xf32>
    %184 = vector.extract_strided_slice %183 {offsets = [3, 0], sizes = [1, 1024], strides = [1, 1]} : vector<4x1024xf32> to vector<1x1024xf32>
    %cst_24 = arith.constant 9.99999997E-7 : f32
    %185 = vector.broadcast %cst_24 : f32 to vector<1x1024xf32>
    %186 = arith.addf %184, %185 : vector<1x1024xf32>
    %187 = tpu.reciprocal %186 {approx = true} : vector<1x1024xf32> -> vector<1x1024xf32>
    %188 = vector.extract_strided_slice %183 {offsets = [0, 0], sizes = [3, 1024], strides = [1, 1]} : vector<4x1024xf32> to vector<3x1024xf32>
    %189 = vector.broadcast %187 : vector<1x1024xf32> to vector<3x1024xf32>
    %190 = arith.mulf %188, %189 : vector<3x1024xf32>
    %cst_25 = arith.constant 0.000000e+00 : f32
    %191 = vector.broadcast %cst_25 : f32 to vector<1x1024xf32>
    %192 = arith.subf %191, %184 : vector<1x1024xf32>
    %193 = math.exp %192 : vector<1x1024xf32>
    %cst_26 = arith.constant 1.000000e+00 : f32
    %194 = vector.broadcast %cst_26 : f32 to vector<1x1024xf32>
    %195 = arith.subf %194, %193 : vector<1x1024xf32>
    %c0_27 = arith.constant 0 : index
    %c0_28 = arith.constant 0 : index
    %c0_29 = arith.constant 0 : index
    %196 = vector.load %arg8[%c0_27, %c0_28, %c0_29] : memref<1x4x1024xf32, #tpu.memory_space<vmem>>, vector<1x3x1024xf32>
    %197 = vector.shape_cast %196 : vector<1x3x1024xf32> to vector<3x1024xf32>
    %198 = vector.shape_cast %190 : vector<3x1024xf32> to vector<1x3x1024xf32>
    tpu.vector_store %arg8[%c0_27, %c0_28, %c0_29], %198 {strides = array<i32>} : memref<1x4x1024xf32, #tpu.memory_space<vmem>>, vector<1x3x1024xf32>,
    %c0_30 = arith.constant 0 : index
    %c3_31 = arith.constant 3 : index
    %c0_32 = arith.constant 0 : index
    %199 = vector.load %arg8[%c0_30, %c3_31, %c0_32] : memref<1x4x1024xf32, #tpu.memory_space<vmem>>, vector<1x1x1024xf32>
    %200 = vector.shape_cast %199 : vector<1x1x1024xf32> to vector<1x1024xf32>
    %201 = vector.shape_cast %195 : vector<1x1024xf32> to vector<1x1x1024xf32>
    tpu.vector_store %arg8[%c0_30, %c3_31, %c0_32], %201 {strides = array<i32>} : memref<1x4x1024xf32, #tpu.memory_space<vmem>>, vector<1x1x1024xf32>,
    %cst_33 = arith.constant 0.000000e+00 : f32
    %202 = vector.broadcast %cst_33 : f32 to vector<1x1024xf32>
    %203 = arith.cmpf ogt, %195, %202 : vector<1x1024xf32>
    %204 = arith.extui %203 : vector<1x1024xi1> to vector<1x1024xi32>
    %205 = arith.sitofp %204 : vector<1x1024xi32> to vector<1x1024xf32>
    %c0_34 = arith.constant 0 : index
    %c0_35 = arith.constant 0 : index
    %c0_36 = arith.constant 0 : index
    %206 = vector.load %arg7[%c0_34, %c0_35, %c0_36] : memref<1x3x1024xf32, #tpu.memory_space<vmem>>, vector<1x3x1024xf32>
    %207 = vector.shape_cast %206 : vector<1x3x1024xf32> to vector<3x1024xf32>
    %208 = vector.broadcast %205 : vector<1x1024xf32> to vector<3x1024xf32>
    %209 = arith.mulf %207, %208 : vector<3x1024xf32>
    %210 = arith.subf %190, %209 : vector<3x1024xf32>
    %211 = arith.mulf %210, %210 : vector<3x1024xf32>
    %cst_37 = arith.constant dense<0.000000e+00> : vector<1024xf32>
    %212 = vector.multi_reduction <add>, %211, %cst_37 [0] : vector<3x1024xf32> to vector<1024xf32>
    %213 = vector.shape_cast %212 : vector<1024xf32> to vector<1x1024xf32>
    %c0_38 = arith.constant 0 : index
    %c0_39 = arith.constant 0 : index
    %c0_40 = arith.constant 0 : index
    %214 = vector.load %arg9[%c0_38, %c0_39, %c0_40] : memref<1x1x1024xf32, #tpu.memory_space<vmem>>, vector<1x1x1024xf32>
    %215 = vector.shape_cast %214 : vector<1x1x1024xf32> to vector<1x1024xf32>
    %216 = vector.shape_cast %213 : vector<1x1024xf32> to vector<1x1x1024xf32>
    tpu.vector_store %arg9[%c0_38, %c0_39, %c0_40], %216 {strides = array<i32>} : memref<1x1x1024xf32, #tpu.memory_space<vmem>>, vector<1x1x1024xf32>,
    return
  }
  func.func @transform_0(%arg0: i32, %arg1: i32) -> (i32, i32) {
    %c0_i32 = arith.constant 0 : i32
    %c0_i32_0 = arith.constant 0 : i32
    %c0_i32_1 = arith.constant 0 : i32
    return %c0_i32, %c0_i32_0 : i32, i32
  }
  func.func @transform_1(%arg0: i32, %arg1: i32) -> (i32, i32, i32) {
    %c0_i32 = arith.constant 0 : i32
    %c0_i32_0 = arith.constant 0 : i32
    %c0_i32_1 = arith.constant 0 : i32
    return %arg0, %c0_i32, %c0_i32_0 : i32, i32, i32
  }
  func.func @transform_2(%arg0: i32, %arg1: i32) -> (i32, i32, i32) {
    %c0_i32 = arith.constant 0 : i32
    %c0_i32_0 = arith.constant 0 : i32
    %c0_i32_1 = arith.constant 0 : i32
    return %arg0, %c0_i32, %c0_i32_0 : i32, i32, i32
  }
  func.func @transform_3(%arg0: i32, %arg1: i32) -> (i32, i32, i32) {
    %c0_i32 = arith.constant 0 : i32
    %c0_i32_0 = arith.constant 0 : i32
    %c0_i32_1 = arith.constant 0 : i32
    return %arg0, %c0_i32, %c0_i32_0 : i32, i32, i32
  }
  func.func @transform_4(%arg0: i32, %arg1: i32) -> (i32, i32) {
    %c0_i32 = arith.constant 0 : i32
    %c0_i32_0 = arith.constant 0 : i32
    return %c0_i32, %arg1 : i32, i32
  }
  func.func @transform_5(%arg0: i32, %arg1: i32) -> (i32, i32, i32) {
    %c0_i32 = arith.constant 0 : i32
    %c0_i32_0 = arith.constant 0 : i32
    return %arg0, %c0_i32, %arg1 : i32, i32, i32
  }
  func.func @transform_6(%arg0: i32, %arg1: i32) -> (i32, i32, i32) {
    %c0_i32 = arith.constant 0 : i32
    %c0_i32_0 = arith.constant 0 : i32
    return %arg0, %c0_i32, %arg1 : i32, i32, i32
  }
  func.func @transform_7(%arg0: i32, %arg1: i32) -> (i32, i32, i32) {
    %c0_i32 = arith.constant 0 : i32
    %c0_i32_0 = arith.constant 0 : i32
    return %arg0, %c0_i32, %arg1 : i32, i32, i32
  }
}

</mosaic_0001>

<llo_original>
// kernel: reverse
$region0: #{reverse}
  %s0 = inlined_call_operand.vmem [shape: s32[96,3], index: 0, kind: input, shape index: {}]
  %s1 = inlined_call_operand.vmem [shape: s32[96,3], index: 1, kind: output, shape index: {}]
  %v2 = vlaneseq
  %v3 = vsub.s32 2, %v2
  %4 = vset.pattern.permute.xlu0 %v3
  $region1: #{reverse} parent=0
    #allocation0 [shape = 'u8[49152]{0}', space=vmem, size = 0xc000, scoped, tag = 'operand span for operand 0']
    #allocation1 [shape = 'u8[49152]{0}', space=vmem, size = 0xc000, scoped, tag = 'operand span for operand 1']
    // Predicated region
    $region2: #{reverse} parent=1 // pred_check
      _
    $region3: #{reverse} parent=1 // pred_check_branch
      %6 = sbr.rel (0) target = $region5
    $region4: #{reverse} parent=1 // pred_region
      // Predicated region
      $region6: #{reverse} parent=4 // pred_check
        _
      $region7: #{reverse} parent=4 // pred_check_branch
        %8 = sbr.rel (0) target = $region9
      $region8: #{reverse} parent=4 // pred_region
        // Predicated region
        $region21: #{reverse} parent=8 // pred_check
          _
        $region22: #{reverse} parent=8 // pred_check_branch
          %45 = sbr.rel (0) target = $region24
        $region23: #{reverse} parent=8 // pred_region
          loop: start=0, step=1, limit=1
          $region25: #{reverse} parent=23 // loop_pre_header
            _
          $region26: #{reverse} parent=23 // loop_header
            %s47 = sphi 0, %s51
            %p48 = scmp.ge.s32.totalorder %s47, 1
            %s52 = sphi %s0, %s0
            %s53 = sphi [#allocation0], [#allocation0]
          $region27: #{reverse} parent=23 // loop_header_branch
            %50 = sbr.rel (%p48) target = $region31
          $region28: #{reverse} parent=23 // loop_body
            %v54 = vld [vmem:[%s52] sm:$0xff]
            %55 = vst [vmem:[%s53] sm:$0xff] %v54
            %v56 = vld [vmem:[%s52 + $0x8] sm:$0xff]
            %57 = vst [vmem:[%s53 + $0x8] sm:$0xff] %v56
            %v58 = vld [vmem:[%s52 + $0x10] sm:$0xff]
            %59 = vst [vmem:[%s53 + $0x10] sm:$0xff] %v58
            %v60 = vld [vmem:[%s52 + $0x18] sm:$0xff]
            %61 = vst [vmem:[%s53 + $0x18] sm:$0xff] %v60
            %v62 = vld [vmem:[%s52 + $0x20] sm:$0xff]
            %63 = vst [vmem:[%s53 + $0x20] sm:$0xff] %v62
            %v64 = vld [vmem:[%s52 + $0x28] sm:$0xff]
            %65 = vst [vmem:[%s53 + $0x28] sm:$0xff] %v64
            %v66 = vld [vmem:[%s52 + $0x30] sm:$0xff]
            %67 = vst [vmem:[%s53 + $0x30] sm:$0xff] %v66
            %v68 = vld [vmem:[%s52 + $0x38] sm:$0xff]
            %69 = vst [vmem:[%s53 + $0x38] sm:$0xff] %v68
            %v70 = vld [vmem:[%s52 + $0x40] sm:$0xff]
            %71 = vst [vmem:[%s53 + $0x40] sm:$0xff] %v70
            %v72 = vld [vmem:[%s52 + $0x48] sm:$0xff]
            %73 = vst [vmem:[%s53 + $0x48] sm:$0xff] %v72
            %v74 = vld [vmem:[%s52 + $0x50] sm:$0xff]
            %75 = vst [vmem:[%s53 + $0x50] sm:$0xff] %v74
            %v76 = vld [vmem:[%s52 + $0x58] sm:$0xff]
            %77 = vst [vmem:[%s53 + $0x58] sm:$0xff] %v76
          $region29: #{reverse} parent=23 // loop_footer
            %s51 = sadd.s32 1, %s47
          $region30: #{reverse} parent=23 // loop_footer_branch
            %46 = sbr.rel target = $region26
          $region31: #{reverse} parent=23 // loop_exit
            _
        $region24: #{reverse} parent=8 // pred_fallthru
          _
        // Predicated region
        $region32: #{reverse} parent=8 // pred_check
          _
        $region33: #{reverse} parent=8 // pred_check_branch
          %79 = sbr.rel target = $region35
        $region34: #{reverse} parent=8 // pred_region
          _
        $region35: #{reverse} parent=8 // pred_fallthru
          _
      $region9: #{reverse} parent=4 // pred_fallthru
        _
      // Predicated region
      $region10: #{reverse} parent=4 // pred_check
        _
      $region11: #{reverse} parent=4 // pred_check_branch
        %10 = sbr.rel target = $region13
      $region12: #{reverse} parent=4 // pred_region
        loop: start=0, step=1, limit=1
        $region14: #{reverse} parent=12 // loop_pre_header
          _
        $region15: #{reverse} parent=12 // loop_header
          %s13 = sphi 0, %s17
          %p14 = scmp.ge.s32.totalorder %s13, 1
          %s18 = sphi %s0, %s0
          %s19 = sphi [#allocation0], [#allocation0]
        $region16: #{reverse} parent=12 // loop_header_branch
          %16 = sbr.rel (%p14) target = $region20
        $region17: #{reverse} parent=12 // loop_body
          %v20 = vld [vmem:[%s18] sm:$0xff]
          %21 = vst [vmem:[%s19] sm:$0xff] %v20
          %v22 = vld [vmem:[%s18 + $0x8] sm:$0xff]
          %23 = vst [vmem:[%s19 + $0x8] sm:$0xff] %v22
          %v24 = vld [vmem:[%s18 + $0x10] sm:$0xff]
          %25 = vst [vmem:[%s19 + $0x10] sm:$0xff] %v24
          %v26 = vld [vmem:[%s18 + $0x18] sm:$0xff]
          %27 = vst [vmem:[%s19 + $0x18] sm:$0xff] %v26
          %v28 = vld [vmem:[%s18 + $0x20] sm:$0xff]
          %29 = vst [vmem:[%s19 + $0x20] sm:$0xff] %v28
          %v30 = vld [vmem:[%s18 + $0x28] sm:$0xff]
          %31 = vst [vmem:[%s19 + $0x28] sm:$0xff] %v30
          %v32 = vld [vmem:[%s18 + $0x30] sm:$0xff]
          %33 = vst [vmem:[%s19 + $0x30] sm:$0xff] %v32
          %v34 = vld [vmem:[%s18 + $0x38] sm:$0xff]
          %35 = vst [vmem:[%s19 + $0x38] sm:$0xff] %v34
          %v36 = vld [vmem:[%s18 + $0x40] sm:$0xff]
          %37 = vst [vmem:[%s19 + $0x40] sm:$0xff] %v36
          %v38 = vld [vmem:[%s18 + $0x48] sm:$0xff]
          %39 = vst [vmem:[%s19 + $0x48] sm:$0xff] %v38
          %v40 = vld [vmem:[%s18 + $0x50] sm:$0xff]
          %41 = vst [vmem:[%s19 + $0x50] sm:$0xff] %v40
          %v42 = vld [vmem:[%s18 + $0x58] sm:$0xff]
          %43 = vst [vmem:[%s19 + $0x58] sm:$0xff] %v42
        $region18: #{reverse} parent=12 // loop_footer
          %s17 = sadd.s32 1, %s13
        $region19: #{reverse} parent=12 // loop_footer_branch
          %12 = sbr.rel target = $region15
        $region20: #{reverse} parent=12 // loop_exit
          _
      $region13: #{reverse} parent=4 // pred_fallthru
        _
    $region5: #{reverse} parent=1 // pred_fallthru
      _
    %80 = vnop
    %v81 = vld [vmem:[#allocation0] sm:$0xff]
    %82 = vperm.xlu0 %4, %v81
    %v83 = vpop.permute.xlu0 %82
    %84 = vst [vmem:[#allocation1] sm:$0xff] %v83
    %s85 = scalar_lea.vmem [#allocation1], 8
    %s86 = scalar_lea.vmem [#allocation0], 8
    %v87 = vld [vmem:[%s86] sm:$0xff]
    %88 = vperm.xlu0 %4, %v87
    %v89 = vpop.permute.xlu0 %88
    %90 = vst [vmem:[%s85] sm:$0xff] %v89
    %s91 = scalar_lea.vmem [#allocation1], 16
    %s92 = scalar_lea.vmem [#allocation0], 16
    %v93 = vld [vmem:[%s92] sm:$0xff]
    %94 = vperm.xlu0 %4, %v93
    %v95 = vpop.permute.xlu0 %94
    %96 = vst [vmem:[%s91] sm:$0xff] %v95
    %s97 = scalar_lea.vmem [#allocation1], 24
    %s98 = scalar_lea.vmem [#allocation0], 24
    %v99 = vld [vmem:[%s98] sm:$0xff]
    %100 = vperm.xlu0 %4, %v99
    %v101 = vpop.permute.xlu0 %100
    %102 = vst [vmem:[%s97] sm:$0xff] %v101
    %s103 = scalar_lea.vmem [#allocation1], 32
    %s104 = scalar_lea.vmem [#allocation0], 32
    %v105 = vld [vmem:[%s104] sm:$0xff]
    %106 = vperm.xlu0 %4, %v105
    %v107 = vpop.permute.xlu0 %106
    %108 = vst [vmem:[%s103] sm:$0xff] %v107
    %s109 = scalar_lea.vmem [#allocation1], 40
    %s110 = scalar_lea.vmem [#allocation0], 40
    %v111 = vld [vmem:[%s110] sm:$0xff]
    %112 = vperm.xlu0 %4, %v111
    %v113 = vpop.permute.xlu0 %112
    %114 = vst [vmem:[%s109] sm:$0xff] %v113
    %s115 = scalar_lea.vmem [#allocation1], 48
    %s116 = scalar_lea.vmem [#allocation0], 48
    %v117 = vld [vmem:[%s116] sm:$0xff]
    %118 = vperm.xlu0 %4, %v117
    %v119 = vpop.permute.xlu0 %118
    %120 = vst [vmem:[%s115] sm:$0xff] %v119
    %s121 = scalar_lea.vmem [#allocation1], 56
    %s122 = scalar_lea.vmem [#allocation0], 56
    %v123 = vld [vmem:[%s122] sm:$0xff]
    %124 = vperm.xlu0 %4, %v123
    %v125 = vpop.permute.xlu0 %124
    %126 = vst [vmem:[%s121] sm:$0xff] %v125
    %s127 = scalar_lea.vmem [#allocation1], 64
    %s128 = scalar_lea.vmem [#allocation0], 64
    %v129 = vld [vmem:[%s128] sm:$0xff]
    %130 = vperm.xlu0 %4, %v129
    %v131 = vpop.permute.xlu0 %130
    %132 = vst [vmem:[%s127] sm:$0xff] %v131
    %s133 = scalar_lea.vmem [#allocation1], 72
    %s134 = scalar_lea.vmem [#allocation0], 72
    %v135 = vld [vmem:[%s134] sm:$0xff]
    %136 = vperm.xlu0 %4, %v135
    %v137 = vpop.permute.xlu0 %136
    %138 = vst [vmem:[%s133] sm:$0xff] %v137
    %s139 = scalar_lea.vmem [#allocation1], 80
    %s140 = scalar_lea.vmem [#allocation0], 80
    %v141 = vld [vmem:[%s140] sm:$0xff]
    %142 = vperm.xlu0 %4, %v141
    %v143 = vpop.permute.xlu0 %142
    %144 = vst [vmem:[%s139] sm:$0xff] %v143
    %s145 = scalar_lea.vmem [#allocation1], 88
    %s146 = scalar_lea.vmem [#allocation0], 88
    %v147 = vld [vmem:[%s146] sm:$0xff]
    %148 = vperm.xlu0 %4, %v147
    %v149 = vpop.permute.xlu0 %148
    %150 = vst [vmem:[%s145] sm:$0xff] %v149
    // Predicated region
    $region36: #{reverse} parent=1 // pred_check
      _
    $region37: #{reverse} parent=1 // pred_check_branch
      %152 = sbr.rel (0) target = $region39
    $region38: #{reverse} parent=1 // pred_region
      // Predicated region
      $region40: #{reverse} parent=38 // pred_check
        _
      $region41: #{reverse} parent=38 // pred_check_branch
        %154 = sbr.rel (0) target = $region43
      $region42: #{reverse} parent=38 // pred_region
        // Predicated region
        $region55: #{reverse} parent=42 // pred_check
          _
        $region56: #{reverse} parent=42 // pred_check_branch
          %191 = sbr.rel (0) target = $region58
        $region57: #{reverse} parent=42 // pred_region
          loop: start=0, step=1, limit=1
          $region59: #{reverse} parent=57 // loop_pre_header
            _
          $region60: #{reverse} parent=57 // loop_header
            %s193 = sphi 0, %s197
            %p194 = scmp.ge.s32.totalorder %s193, 1
            %s198 = sphi [#allocation1], [#allocation1]
            %s199 = sphi %s1, %s1
          $region61: #{reverse} parent=57 // loop_header_branch
            %196 = sbr.rel (%p194) target = $region65
          $region62: #{reverse} parent=57 // loop_body
            %v200 = vld [vmem:[%s198] sm:$0xff]
            %201 = vst [vmem:[%s199] sm:$0xff] %v200
            %v202 = vld [vmem:[%s198 + $0x8] sm:$0xff]
            %203 = vst [vmem:[%s199 + $0x8] sm:$0xff] %v202
            %v204 = vld [vmem:[%s198 + $0x10] sm:$0xff]
            %205 = vst [vmem:[%s199 + $0x10] sm:$0xff] %v204
            %v206 = vld [vmem:[%s198 + $0x18] sm:$0xff]
            %207 = vst [vmem:[%s199 + $0x18] sm:$0xff] %v206
            %v208 = vld [vmem:[%s198 + $0x20] sm:$0xff]
            %209 = vst [vmem:[%s199 + $0x20] sm:$0xff] %v208
            %v210 = vld [vmem:[%s198 + $0x28] sm:$0xff]
            %211 = vst [vmem:[%s199 + $0x28] sm:$0xff] %v210
            %v212 = vld [vmem:[%s198 + $0x30] sm:$0xff]
            %213 = vst [vmem:[%s199 + $0x30] sm:$0xff] %v212
            %v214 = vld [vmem:[%s198 + $0x38] sm:$0xff]
            %215 = vst [vmem:[%s199 + $0x38] sm:$0xff] %v214
            %v216 = vld [vmem:[%s198 + $0x40] sm:$0xff]
            %217 = vst [vmem:[%s199 + $0x40] sm:$0xff] %v216
            %v218 = vld [vmem:[%s198 + $0x48] sm:$0xff]
            %219 = vst [vmem:[%s199 + $0x48] sm:$0xff] %v218
            %v220 = vld [vmem:[%s198 + $0x50] sm:$0xff]
            %221 = vst [vmem:[%s199 + $0x50] sm:$0xff] %v220
            %v222 = vld [vmem:[%s198 + $0x58] sm:$0xff]
            %223 = vst [vmem:[%s199 + $0x58] sm:$0xff] %v222
          $region63: #{reverse} parent=57 // loop_footer
            %s197 = sadd.s32 1, %s193
          $region64: #{reverse} parent=57 // loop_footer_branch
            %192 = sbr.rel target = $region60
          $region65: #{reverse} parent=57 // loop_exit
            _
        $region58: #{reverse} parent=42 // pred_fallthru
          _
        // Predicated region
        $region66: #{reverse} parent=42 // pred_check
          _
        $region67: #{reverse} parent=42 // pred_check_branch
          %225 = sbr.rel target = $region69
        $region68: #{reverse} parent=42 // pred_region
          _
        $region69: #{reverse} parent=42 // pred_fallthru
          _
      $region43: #{reverse} parent=38 // pred_fallthru
        _
      // Predicated region
      $region44: #{reverse} parent=38 // pred_check
        _
      $region45: #{reverse} parent=38 // pred_check_branch
        %156 = sbr.rel target = $region47
      $region46: #{reverse} parent=38 // pred_region
        loop: start=0, step=1, limit=1
        $region48: #{reverse} parent=46 // loop_pre_header
          _
        $region49: #{reverse} parent=46 // loop_header
          %s159 = sphi 0, %s163
          %p160 = scmp.ge.s32.totalorder %s159, 1
          %s164 = sphi [#allocation1], [#allocation1]
          %s165 = sphi %s1, %s1
        $region50: #{reverse} parent=46 // loop_header_branch
          %162 = sbr.rel (%p160) target = $region54
        $region51: #{reverse} parent=46 // loop_body
          %v166 = vld [vmem:[%s164] sm:$0xff]
          %167 = vst [vmem:[%s165] sm:$0xff] %v166
          %v168 = vld [vmem:[%s164 + $0x8] sm:$0xff]
          %169 = vst [vmem:[%s165 + $0x8] sm:$0xff] %v168
          %v170 = vld [vmem:[%s164 + $0x10] sm:$0xff]
          %171 = vst [vmem:[%s165 + $0x10] sm:$0xff] %v170
          %v172 = vld [vmem:[%s164 + $0x18] sm:$0xff]
          %173 = vst [vmem:[%s165 + $0x18] sm:$0xff] %v172
          %v174 = vld [vmem:[%s164 + $0x20] sm:$0xff]
          %175 = vst [vmem:[%s165 + $0x20] sm:$0xff] %v174
          %v176 = vld [vmem:[%s164 + $0x28] sm:$0xff]
          %177 = vst [vmem:[%s165 + $0x28] sm:$0xff] %v176
          %v178 = vld [vmem:[%s164 + $0x30] sm:$0xff]
          %179 = vst [vmem:[%s165 + $0x30] sm:$0xff] %v178
          %v180 = vld [vmem:[%s164 + $0x38] sm:$0xff]
          %181 = vst [vmem:[%s165 + $0x38] sm:$0xff] %v180
          %v182 = vld [vmem:[%s164 + $0x40] sm:$0xff]
          %183 = vst [vmem:[%s165 + $0x40] sm:$0xff] %v182
          %v184 = vld [vmem:[%s164 + $0x48] sm:$0xff]
          %185 = vst [vmem:[%s165 + $0x48] sm:$0xff] %v184
          %v186 = vld [vmem:[%s164 + $0x50] sm:$0xff]
          %187 = vst [vmem:[%s165 + $0x50] sm:$0xff] %v186
          %v188 = vld [vmem:[%s164 + $0x58] sm:$0xff]
          %189 = vst [vmem:[%s165 + $0x58] sm:$0xff] %v188
        $region52: #{reverse} parent=46 // loop_footer
          %s163 = sadd.s32 1, %s159
        $region53: #{reverse} parent=46 // loop_footer_branch
          %158 = sbr.rel target = $region49
        $region54: #{reverse} parent=46 // loop_exit
          _
      $region47: #{reverse} parent=38 // pred_fallthru
        _
    $region39: #{reverse} parent=1 // pred_fallthru
      _
    %226 = vnop

// kernel: bfm_face_loss_forward.2
$region0: #{bfm_face_loss_forward.2}
  #allocation0 [shape = 'u32[]', space=smem, size = 0x4, offset = 0x4, fixed_abs, tag = 'smem constant byte address 0x4 - core index']
  #allocation1 [shape = 'u32[144,128]{1,0:T(1,128)}', space=vmem, size = 0x12000, scoped, tag = 'internal scratch']
  %s0 = inlined_call_operand.vmem [shape: f32[2,144], index: 0, kind: input, shape index: {}]
  %s1 = inlined_call_operand.vmem [shape: f32[2,80], index: 1, kind: input, shape index: {}]
  %s2 = inlined_call_operand.hbm [shape: f32[144,384], index: 2, kind: input, shape index: {}]
  %s3 = inlined_call_operand.hbm [shape: f32[80,384], index: 3, kind: input, shape index: {}]
  %s4 = inlined_call_operand.vmem [shape: f32[1,384], index: 4, kind: input, shape index: {}]
  %s5 = inlined_call_operand.vmem [shape: f32[1,384], index: 5, kind: input, shape index: {}]
  %s6 = inlined_call_operand.vmem [shape: f32[2,384], index: 6, kind: output, shape index: {0}]
  %s7 = inlined_call_operand.vmem [shape: f32[2,384], index: 7, kind: output, shape index: {1}]
  %8 = xla_tuple %s6, %s7
  %s9 = sld [smem:[#allocation0]]
  $region50: #{bfm_face_loss_forward.2} parent=0
    _
  %s11 = ssub.s32 1, %s9
  %s12 = scalar_select 0, %s11, %s9
  $region1: #{bfm_face_loss_forward.2} parent=0
    #allocation2 [shape = 'u8[221184]{0}', space=vmem, size = 0x36000, scoped, tag = 'input window, operand 2, single buffered']
    #allocation3 [shape = 's32[1]{0}', space=sflag, size = 0x4, scoped, tag = 'scoped memory for bfm_face_loss_forward.2']
    #allocation4 [shape = 'u8[122880]{0}', space=vmem, size = 0x1e000, scoped, tag = 'input window, operand 3, single buffered']
    #allocation5 [shape = 's32[1]{0}', space=sflag, size = 0x4, scoped, tag = 'scoped memory for bfm_face_loss_forward.2']
    %13 = vsyncpa [#allocation3], 0
    %14 = vsyncpa [#allocation5], 0
    // Predicated region
    $region2: #{bfm_face_loss_forward.2} parent=1 // pred_check
      _
    $region3: #{bfm_face_loss_forward.2} parent=1 // pred_check_branch
      %16 = sbr.rel (0) target = $region5
    $region4: #{bfm_face_loss_forward.2} parent=1 // pred_region
      _
    $region5: #{bfm_face_loss_forward.2} parent=1 // pred_fallthru
      _
    // Predicated region
    $region6: #{bfm_face_loss_forward.2} parent=1 // pred_check
      _
    $region7: #{bfm_face_loss_forward.2} parent=1 // pred_check_branch
      %18 = sbr.rel (0) target = $region9
    $region8: #{bfm_face_loss_forward.2} parent=1 // pred_region
      _
    $region9: #{bfm_face_loss_forward.2} parent=1 // pred_fallthru
      _
    // Predicated region
    $region10: #{bfm_face_loss_forward.2} parent=1 // pred_check
      _
    $region11: #{bfm_face_loss_forward.2} parent=1 // pred_check_branch
      %20 = sbr.rel (0) target = $region13
    $region12: #{bfm_face_loss_forward.2} parent=1 // pred_region
      %s22 = ssub.s32 6912, 6912
      %23 = vsyncadd [#allocation3], %s22
      %s24 = sshll.u32 [#allocation2], 4
      %s25 = int_to_ptr.vmem [resolvable:$true] %s24
      %30 = dma.hbm_to_vmem [thread:$0]  %s2, 6912, %s25, [#allocation3], 384, 384, 24
    $region13: #{bfm_face_loss_forward.2} parent=1 // pred_fallthru
      _
    // Predicated region
    $region14: #{bfm_face_loss_forward.2} parent=1 // pred_check
      _
    $region15: #{bfm_face_loss_forward.2} parent=1 // pred_check_branch
      %32 = sbr.rel (0) target = $region17
    $region16: #{bfm_face_loss_forward.2} parent=1 // pred_region
      %s34 = ssub.s32 3840, 3840
      %35 = vsyncadd [#allocation5], %s34
      %s36 = sshll.u32 [#allocation4], 4
      %s37 = int_to_ptr.vmem [resolvable:$true] %s36
      %42 = dma.hbm_to_vmem [thread:$0]  %s3, 3840, %s37, [#allocation5], 384, 384, 24
    $region17: #{bfm_face_loss_forward.2} parent=1 // pred_fallthru
      _
    // Predicated region
    $region18: #{bfm_face_loss_forward.2} parent=1 // pred_check
      _
    $region19: #{bfm_face_loss_forward.2} parent=1 // pred_check_branch
      %44 = sbr.rel (0) target = $region21
    $region20: #{bfm_face_loss_forward.2} parent=1 // pred_region
      _
    $region21: #{bfm_face_loss_forward.2} parent=1 // pred_fallthru
      _
    // Predicated region
    $region22: #{bfm_face_loss_forward.2} parent=1 // pred_check
      _
    $region23: #{bfm_face_loss_forward.2} parent=1 // pred_check_branch
      %46 = sbr.rel (0) target = $region25
    $region24: #{bfm_face_loss_forward.2} parent=1 // pred_region
      _
    $region25: #{bfm_face_loss_forward.2} parent=1 // pred_fallthru
      _
    // Predicated region
    $region26: #{bfm_face_loss_forward.2} parent=1 // pred_check
      _
    $region27: #{bfm_face_loss_forward.2} parent=1 // pred_check_branch
      %48 = sbr.rel (0) target = $region29
    $region28: #{bfm_face_loss_forward.2} parent=1 // pred_region
      %49 = dma.done [#allocation3], 6912
    $region29: #{bfm_face_loss_forward.2} parent=1 // pred_fallthru
      _
    // Predicated region
    $region30: #{bfm_face_loss_forward.2} parent=1 // pred_check
      _
    $region31: #{bfm_face_loss_forward.2} parent=1 // pred_check_branch
      %51 = sbr.rel (0) target = $region33
    $region32: #{bfm_face_loss_forward.2} parent=1 // pred_region
      %52 = dma.done [#allocation5], 3840
    $region33: #{bfm_face_loss_forward.2} parent=1 // pred_fallthru
      _
    %v53 = vld [vmem:[%s4] sm:$0x7]
    %v54 = vld [vmem:[%s0] sm:$0xf]
    %v55 = vld [vmem:[#allocation2] sm:$0xff]
    %v56 = vld [vmem:[#allocation2 + $0x8] sm:$0xff]
    %v57 = vld [vmem:[#allocation2 + $0x10] sm:$0xff]
    %v58 = vld [vmem:[#allocation2 + $0x18] sm:$0xff]
    %v59 = vld [vmem:[#allocation2 + $0x20] sm:$0xff]
    %v60 = vld [vmem:[#allocation2 + $0x28] sm:$0xff]
    %v61 = vld [vmem:[#allocation2 + $0x30] sm:$0xff]
    %v62 = vld [vmem:[#allocation2 + $0x38] sm:$0xff]
    %v63 = vld [vmem:[#allocation2 + $0x40] sm:$0xff]
    %v64 = vld [vmem:[#allocation2 + $0x48] sm:$0xff]
    %v65 = vld [vmem:[#allocation2 + $0x50] sm:$0xff]
    %v66 = vld [vmem:[#allocation2 + $0x58] sm:$0xff]
    %v67 = vld [vmem:[#allocation2 + $0x60] sm:$0xff]
    %v68 = vld [vmem:[#allocation2 + $0x68] sm:$0xff]
    %v69 = vld [vmem:[#allocation2 + $0x70] sm:$0xff]
    %v70 = vld [vmem:[#allocation2 + $0x78] sm:$0xff]
    %v71 = vld [vmem:[#allocation2 + $0x80] sm:$0xff]
    %v72 = vld [vmem:[#allocation2 + $0x88] sm:$0xff]
    %v73 = vld [vmem:[#allocation2 + $0x90] sm:$0xff]
    %v74 = vld [vmem:[#allocation2 + $0x98] sm:$0xff]
    %v75 = vld [vmem:[#allocation2 + $0xa0] sm:$0xff]
    %v76 = vld [vmem:[#allocation2 + $0xa8] sm:$0xff]
    %v77 = vld [vmem:[#allocation2 + $0xb0] sm:$0xff]
    %v78 = vld [vmem:[#allocation2 + $0xb8] sm:$0xff]
    %v79 = vld [vmem:[#allocation2 + $0xc0] sm:$0xff]
    %v80 = vld [vmem:[#allocation2 + $0xc8] sm:$0xff]
    %v81 = vld [vmem:[#allocation2 + $0xd0] sm:$0xff]
    %v82 = vld [vmem:[#allocation2 + $0xd8] sm:$0xff]
    %v83 = vld [vmem:[#allocation2 + $0xe0] sm:$0xff]
    %v84 = vld [vmem:[#allocation2 + $0xe8] sm:$0xff]
    %v85 = vld [vmem:[#allocation2 + $0xf0] sm:$0xff]
    %v86 = vld [vmem:[#allocation2 + $0xf8] sm:$0xff]
    %v87 = vld [vmem:[#allocation2 + $0x100] sm:$0xff]
    %v88 = vld [vmem:[#allocation2 + $0x108] sm:$0xff]
    %v89 = vld [vmem:[#allocation2 + $0x110] sm:$0xff]
    %v90 = vld [vmem:[#allocation2 + $0x118] sm:$0xff]
    %v91 = vld [vmem:[#allocation2 + $0x120] sm:$0xff]
    %v92 = vld [vmem:[#allocation2 + $0x128] sm:$0xff]
    %v93 = vld [vmem:[#allocation2 + $0x130] sm:$0xff]
    %v94 = vld [vmem:[#allocation2 + $0x138] sm:$0xff]
    %v95 = vld [vmem:[#allocation2 + $0x140] sm:$0xff]
    %v96 = vld [vmem:[#allocation2 + $0x148] sm:$0xff]
    %v97 = vld [vmem:[#allocation2 + $0x150] sm:$0xff]
    %v98 = vld [vmem:[#allocation2 + $0x158] sm:$0xff]
    %v99 = vld [vmem:[#allocation2 + $0x160] sm:$0xff]
    %v100 = vld [vmem:[#allocation2 + $0x168] sm:$0xff]
    %v101 = vld [vmem:[#allocation2 + $0x170] sm:$0xff]
    %v102 = vld [vmem:[#allocation2 + $0x178] sm:$0xff]
    %v103 = vld [vmem:[#allocation2 + $0x180] sm:$0xff]
    %v104 = vld [vmem:[#allocation2 + $0x188] sm:$0xff]
    %v105 = vld [vmem:[#allocation2 + $0x190] sm:$0xff]
    %v106 = vld [vmem:[#allocation2 + $0x198] sm:$0xff]
    %v107 = vld [vmem:[#allocation2 + $0x1a0] sm:$0xff]
    %v108 = vld [vmem:[#allocation2 + $0x1a8] sm:$0xff]
    %v111 = vunpack.c.l.s4 1983009808
    %v112 = vunpack.c.0.s8 %v111
    %v113 = vlaneseq
    %v114 = vshrl.u32 %v113, 7
    %v115 = vsub.s32 %v112, %v114
    %v116 = vrot.slane %v54, %v115
    %v117 = vcombine.high %v116, %v116
    %vm119 = vcmask 130048
    %v120 = vsel %vm119, %v117, 0
    %122 = vmatprep.subr.mxu0 %v56
    %123 = vmatpush1.msra.mxu0 %v55
    %124 = vmatprep.subr.mxu0 %v59
    %125 = vmatpush1.msra.mxu0 %v58
    %126 = vmatprep.subr.mxu0 %v62
    %127 = vmatpush1.msra.mxu0 %v61
    %128 = vmatprep.subr.mxu0 %v65
    %129 = vmatpush1.msra.mxu0 %v64
    %130 = vmatprep.subr.mxu0 %v68
    %131 = vmatpush1.msra.mxu0 %v67
    %132 = vmatprep.subr.mxu0 %v71
    %133 = vmatpush1.msra.mxu0 %v70
    %134 = vmatprep.subr.mxu0 %v74
    %135 = vmatpush1.msra.mxu0 %v73
    %136 = vmatprep.subr.mxu0 %v77
    %137 = vmatpush1.msra.mxu0 %v76
    %138 = vmatprep.subr.mxu0 %v80
    %139 = vmatpush1.msra.mxu0 %v79
    %140 = vmatprep.subr.mxu0 %v83
    %141 = vmatpush1.msra.mxu0 %v82
    %142 = vmatprep.subr.mxu0 %v86
    %143 = vmatpush1.msra.mxu0 %v85
    %144 = vmatprep.subr.mxu0 %v89
    %145 = vmatpush1.msra.mxu0 %v88
    %146 = vmatprep.subr.mxu0 %v92
    %147 = vmatpush1.msra.mxu0 %v91
    %148 = vmatprep.subr.mxu0 %v95
    %149 = vmatpush1.msra.mxu0 %v94
    %150 = vmatprep.subr.mxu0 %v98
    %151 = vmatpush1.msra.mxu0 %v97
    %152 = vmatprep.subr.mxu0 %v101
    %153 = vmatpush1.msra.mxu0 %v100
    %154 = vmatprep.subr.mxu0 %v104
    %155 = vmatpush1.msra.mxu0 %v103
    %156 = vmatprep.subr.mxu0 %v107
    %157 = vmatpush1.msra.mxu0 %v106
    %158 = vmatprep.subr.mxu0 0.0
    %159 = vmatpush1.msra.mxu0 0.0
    %160 = vmatprep.subr.mxu0 0.0
    %161 = vmatpush1.msra.mxu0 0.0
    %162 = vmatprep.subr.mxu0 0.0
    %163 = vmatpush1.msra.mxu0 0.0
    %164 = vmatprep.subr.mxu0 0.0
    %165 = vmatpush1.msra.mxu0 0.0
    %166 = vmatprep.subr.mxu0 0.0
    %167 = vmatpush1.msra.mxu0 0.0
    %168 = vmatprep.subr.mxu0 0.0
    %169 = vmatpush1.msra.mxu0 0.0
    %170 = vmatprep.subr.mxu0 0.0
    %171 = vmatpush1.msra.mxu0 0.0
    %172 = vmatprep.subr.mxu0 0.0
    %173 = vmatpush1.msra.mxu0 0.0
    %174 = vmatprep.subr.mxu0 0.0
    %175 = vmatpush1.msra.mxu0 0.0
    %176 = vmatprep.subr.mxu0 0.0
    %177 = vmatpush1.msra.mxu0 0.0
    %178 = vmatprep.subr.mxu0 0.0
    %179 = vmatpush1.msra.mxu0 0.0
    %180 = vmatprep.subr.mxu0 0.0
    %181 = vmatpush1.msra.mxu0 0.0
    %182 = vmatprep.subr.mxu0 0.0
    %183 = vmatpush1.msra.mxu0 0.0
    %184 = vmatprep.subr.mxu0 0.0
    %185 = vmatpush1.msra.mxu0 0.0
    %186 = vmatprep.mubr.f32.mxu0 %v120
    %187 = vmatmul.mubr.f32.gmra.mrb[0].mxu0 %v116
    %v188 = vpop.f32.mrb[0].mxu0
    %v189 = vadd.f32 0.0, %v188
    %v190 = vpop.f32.mrb[0].mxu0
    %v191 = vadd.f32 0.0, %v190
    %192 = vdwg.mxu0
    %193 = vmatprep.subr.mxu0 0.0
    %194 = vmatpush1.msra.mxu0 %v57
    %195 = vmatprep.subr.mxu0 0.0
    %196 = vmatpush1.msra.mxu0 %v60
    %197 = vmatprep.subr.mxu0 0.0
    %198 = vmatpush1.msra.mxu0 %v63
    %199 = vmatprep.subr.mxu0 0.0
    %200 = vmatpush1.msra.mxu0 %v66
    %201 = vmatprep.subr.mxu0 0.0
    %202 = vmatpush1.msra.mxu0 %v69
    %203 = vmatprep.subr.mxu0 0.0
    %204 = vmatpush1.msra.mxu0 %v72
    %205 = vmatprep.subr.mxu0 0.0
    %206 = vmatpush1.msra.mxu0 %v75
    %207 = vmatprep.subr.mxu0 0.0
    %208 = vmatpush1.msra.mxu0 %v78
    %209 = vmatprep.subr.mxu0 0.0
    %210 = vmatpush1.msra.mxu0 %v81
    %211 = vmatprep.subr.mxu0 0.0
    %212 = vmatpush1.msra.mxu0 %v84
    %213 = vmatprep.subr.mxu0 0.0
    %214 = vmatpush1.msra.mxu0 %v87
    %215 = vmatprep.subr.mxu0 0.0
    %216 = vmatpush1.msra.mxu0 %v90
    %217 = vmatprep.subr.mxu0 0.0
    %218 = vmatpush1.msra.mxu0 %v93
    %219 = vmatprep.subr.mxu0 0.0
    %220 = vmatpush1.msra.mxu0 %v96
    %221 = vmatprep.subr.mxu0 0.0
    %222 = vmatpush1.msra.mxu0 %v99
    %223 = vmatprep.subr.mxu0 0.0
    %224 = vmatpush1.msra.mxu0 %v102
    %225 = vmatprep.subr.mxu0 0.0
    %226 = vmatpush1.msra.mxu0 %v105
    %227 = vmatprep.subr.mxu0 0.0
    %228 = vmatpush1.msra.mxu0 %v108
    %229 = vmatprep.subr.mxu0 0.0
    %230 = vmatpush1.msra.mxu0 0.0
    %231 = vmatprep.subr.mxu0 0.0
    %232 = vmatpush1.msra.mxu0 0.0
    %233 = vmatprep.subr.mxu0 0.0
    %234 = vmatpush1.msra.mxu0 0.0
    %235 = vmatprep.subr.mxu0 0.0
    %236 = vmatpush1.msra.mxu0 0.0
    %237 = vmatprep.subr.mxu0 0.0
    %238 = vmatpush1.msra.mxu0 0.0
    %239 = vmatprep.subr.mxu0 0.0
    %240 = vmatpush1.msra.mxu0 0.0
    %241 = vmatprep.subr.mxu0 0.0
    %242 = vmatpush1.msra.mxu0 0.0
    %243 = vmatprep.subr.mxu0 0.0
    %244 = vmatpush1.msra.mxu0 0.0
    %245 = vmatprep.subr.mxu0 0.0
    %246 = vmatpush1.msra.mxu0 0.0
    %247 = vmatprep.subr.mxu0 0.0
    %248 = vmatpush1.msra.mxu0 0.0
    %249 = vmatprep.subr.mxu0 0.0
    %250 = vmatpush1.msra.mxu0 0.0
    %251 = vmatprep.subr.mxu0 0.0
    %252 = vmatpush1.msra.mxu0 0.0
    %253 = vmatprep.subr.mxu0 0.0
    %254 = vmatpush1.msra.mxu0 0.0
    %255 = vmatprep.subr.mxu0 0.0
    %256 = vmatpush1.msra.mxu0 0.0
    %257 = vmatprep.mubr.f32.mxu0 %v120
    %258 = vmatmul.mubr.f32.gmra.mrb[0].mxu0 %v116
    %v259 = vpop.f32.mrb[0].mxu0
    %v260 = vadd.f32 0.0, %v259
    %v261 = vpop.f32.mrb[0].mxu0
    %262 = vdwg.mxu0
    %v264 = vlaneseq
    %v265 = vshrl.u32 %v264, 7
    %v266 = vsub.s32 0, %v265
    %v267 = vrot.slane %v53, %v266
    %v268 = vlaneseq
    %v269 = vshrl.u32 %v268, 7
    %v270 = vsub.s32 1, %v269
    %v271 = vrot.slane %v53, %v270
    %v272 = vlaneseq
    %v273 = vshrl.u32 %v272, 7
    %v274 = vsub.s32 2, %v273
    %v275 = vrot.slane %v53, %v274
    %v279 = vadd.f32 %v267, %v189
    %v280 = vadd.f32 %v271, %v191
    %v281 = vadd.f32 %v275, %v260
    %v285 = vcombine.low %v279, %v280
    %v287 = vunpack.c.l.s4 1983009808
    %v288 = vunpack.c.0.s8 %v287
    %v289 = vlaneseq
    %v290 = vshrl.u32 %v289, 7
    %v291 = vsub.s32 %v288, %v290
    %v292 = vrot.slane %v285, %v291
    %v294 = vunpack.c.l.s4 1983009808
    %v295 = vunpack.c.0.s8 %v294
    %v296 = vlaneseq
    %v297 = vshrl.u32 %v296, 7
    %v298 = vsub.s32 %v295, %v297
    %v299 = vrot.slane %v281, %v298
    %v300 = vcombine.low %v292, %v299
    %302 = vst [vmem:[%s6] sm:$0x3f] %v300
    %v303 = vld [vmem:[%s5] sm:$0x7]
    %v304 = vld [vmem:[%s1] sm:$0x3]
    %v305 = vld [vmem:[#allocation4] sm:$0xff]
    %v306 = vld [vmem:[#allocation4 + $0x8] sm:$0xff]
    %v307 = vld [vmem:[#allocation4 + $0x10] sm:$0xff]
    %v308 = vld [vmem:[#allocation4 + $0x18] sm:$0xff]
    %v309 = vld [vmem:[#allocation4 + $0x20] sm:$0xff]
    %v310 = vld [vmem:[#allocation4 + $0x28] sm:$0xff]
    %v311 = vld [vmem:[#allocation4 + $0x30] sm:$0xff]
    %v312 = vld [vmem:[#allocation4 + $0x38] sm:$0xff]
    %v313 = vld [vmem:[#allocation4 + $0x40] sm:$0xff]
    %v314 = vld [vmem:[#allocation4 + $0x48] sm:$0xff]
    %v315 = vld [vmem:[#allocation4 + $0x50] sm:$0xff]
    %v316 = vld [vmem:[#allocation4 + $0x58] sm:$0xff]
    %v317 = vld [vmem:[#allocation4 + $0x60] sm:$0xff]
    %v318 = vld [vmem:[#allocation4 + $0x68] sm:$0xff]
    %v319 = vld [vmem:[#allocation4 + $0x70] sm:$0xff]
    %v320 = vld [vmem:[#allocation4 + $0x78] sm:$0xff]
    %v321 = vld [vmem:[#allocation4 + $0x80] sm:$0xff]
    %v322 = vld [vmem:[#allocation4 + $0x88] sm:$0xff]
    %v323 = vld [vmem:[#allocation4 + $0x90] sm:$0xff]
    %v324 = vld [vmem:[#allocation4 + $0x98] sm:$0xff]
    %v325 = vld [vmem:[#allocation4 + $0xa0] sm:$0xff]
    %v326 = vld [vmem:[#allocation4 + $0xa8] sm:$0xff]
    %v327 = vld [vmem:[#allocation4 + $0xb0] sm:$0xff]
    %v328 = vld [vmem:[#allocation4 + $0xb8] sm:$0xff]
    %v329 = vld [vmem:[#allocation4 + $0xc0] sm:$0xff]
    %v330 = vld [vmem:[#allocation4 + $0xc8] sm:$0xff]
    %v331 = vld [vmem:[#allocation4 + $0xd0] sm:$0xff]
    %v332 = vld [vmem:[#allocation4 + $0xd8] sm:$0xff]
    %v333 = vld [vmem:[#allocation4 + $0xe0] sm:$0xff]
    %v334 = vld [vmem:[#allocation4 + $0xe8] sm:$0xff]
    %vm335 = vcmask 654336
    %v337 = vsel %vm335, %v304, 0
    %339 = vmatprep.subr.mxu0 %v306
    %340 = vmatpush1.msra.mxu0 %v305
    %341 = vmatprep.subr.mxu0 %v309
    %342 = vmatpush1.msra.mxu0 %v308
    %343 = vmatprep.subr.mxu0 %v312
    %344 = vmatpush1.msra.mxu0 %v311
    %345 = vmatprep.subr.mxu0 %v315
    %346 = vmatpush1.msra.mxu0 %v314
    %347 = vmatprep.subr.mxu0 %v318
    %348 = vmatpush1.msra.mxu0 %v317
    %349 = vmatprep.subr.mxu0 %v321
    %350 = vmatpush1.msra.mxu0 %v320
    %351 = vmatprep.subr.mxu0 %v324
    %352 = vmatpush1.msra.mxu0 %v323
    %353 = vmatprep.subr.mxu0 %v327
    %354 = vmatpush1.msra.mxu0 %v326
    %355 = vmatprep.subr.mxu0 %v330
    %356 = vmatpush1.msra.mxu0 %v329
    %357 = vmatprep.subr.mxu0 %v333
    %358 = vmatpush1.msra.mxu0 %v332
    %359 = vmatprep.subr.mxu0 0.0
    %360 = vmatpush1.msra.mxu0 0.0
    %361 = vmatprep.subr.mxu0 0.0
    %362 = vmatpush1.msra.mxu0 0.0
    %363 = vmatprep.subr.mxu0 0.0
    %364 = vmatpush1.msra.mxu0 0.0
    %365 = vmatprep.subr.mxu0 0.0
    %366 = vmatpush1.msra.mxu0 0.0
    %367 = vmatprep.subr.mxu0 0.0
    %368 = vmatpush1.msra.mxu0 0.0
    %369 = vmatprep.subr.mxu0 0.0
    %370 = vmatpush1.msra.mxu0 0.0
    %371 = vmatprep.subr.mxu0 0.0
    %372 = vmatpush1.msra.mxu0 0.0
    %373 = vmatprep.subr.mxu0 0.0
    %374 = vmatpush1.msra.mxu0 0.0
    %375 = vmatprep.subr.mxu0 0.0
    %376 = vmatpush1.msra.mxu0 0.0
    %377 = vmatprep.subr.mxu0 0.0
    %378 = vmatpush1.msra.mxu0 0.0
    %379 = vmatprep.subr.mxu0 0.0
    %380 = vmatpush1.msra.mxu0 0.0
    %381 = vmatprep.subr.mxu0 0.0
    %382 = vmatpush1.msra.mxu0 0.0
    %383 = vmatprep.subr.mxu0 0.0
    %384 = vmatpush1.msra.mxu0 0.0
    %385 = vmatprep.subr.mxu0 0.0
    %386 = vmatpush1.msra.mxu0 0.0
    %387 = vmatprep.subr.mxu0 0.0
    %388 = vmatpush1.msra.mxu0 0.0
    %389 = vmatprep.subr.mxu0 0.0
    %390 = vmatpush1.msra.mxu0 0.0
    %391 = vmatprep.subr.mxu0 0.0
    %392 = vmatpush1.msra.mxu0 0.0
    %393 = vmatprep.subr.mxu0 0.0
    %394 = vmatpush1.msra.mxu0 0.0
    %395 = vmatprep.subr.mxu0 0.0
    %396 = vmatpush1.msra.mxu0 0.0
    %397 = vmatprep.subr.mxu0 0.0
    %398 = vmatpush1.msra.mxu0 0.0
    %399 = vmatprep.subr.mxu0 0.0
    %400 = vmatpush1.msra.mxu0 0.0
    %401 = vmatprep.subr.mxu0 0.0
    %402 = vmatpush1.msra.mxu0 0.0
    %403 = vmatprep.mubr.f32.mxu0 0.0
    %404 = vmatmul.mubr.f32.gmra.mrb[0].mxu0 %v337
    %v405 = vpop.f32.mrb[0].mxu0
    %v406 = vadd.f32 0.0, %v405
    %v407 = vpop.f32.mrb[0].mxu0
    %v408 = vadd.f32 0.0, %v407
    %409 = vdwg.mxu0
    %410 = vmatprep.subr.mxu0 0.0
    %411 = vmatpush1.msra.mxu0 %v307
    %412 = vmatprep.subr.mxu0 0.0
    %413 = vmatpush1.msra.mxu0 %v310
    %414 = vmatprep.subr.mxu0 0.0
    %415 = vmatpush1.msra.mxu0 %v313
    %416 = vmatprep.subr.mxu0 0.0
    %417 = vmatpush1.msra.mxu0 %v316
    %418 = vmatprep.subr.mxu0 0.0
    %419 = vmatpush1.msra.mxu0 %v319
    %420 = vmatprep.subr.mxu0 0.0
    %421 = vmatpush1.msra.mxu0 %v322
    %422 = vmatprep.subr.mxu0 0.0
    %423 = vmatpush1.msra.mxu0 %v325
    %424 = vmatprep.subr.mxu0 0.0
    %425 = vmatpush1.msra.mxu0 %v328
    %426 = vmatprep.subr.mxu0 0.0
    %427 = vmatpush1.msra.mxu0 %v331
    %428 = vmatprep.subr.mxu0 0.0
    %429 = vmatpush1.msra.mxu0 %v334
    %430 = vmatprep.subr.mxu0 0.0
    %431 = vmatpush1.msra.mxu0 0.0
    %432 = vmatprep.subr.mxu0 0.0
    %433 = vmatpush1.msra.mxu0 0.0
    %434 = vmatprep.subr.mxu0 0.0
    %435 = vmatpush1.msra.mxu0 0.0
    %436 = vmatprep.subr.mxu0 0.0
    %437 = vmatpush1.msra.mxu0 0.0
    %438 = vmatprep.subr.mxu0 0.0
    %439 = vmatpush1.msra.mxu0 0.0
    %440 = vmatprep.subr.mxu0 0.0
    %441 = vmatpush1.msra.mxu0 0.0
    %442 = vmatprep.subr.mxu0 0.0
    %443 = vmatpush1.msra.mxu0 0.0
    %444 = vmatprep.subr.mxu0 0.0
    %445 = vmatpush1.msra.mxu0 0.0
    %446 = vmatprep.subr.mxu0 0.0
    %447 = vmatpush1.msra.mxu0 0.0
    %448 = vmatprep.subr.mxu0 0.0
    %449 = vmatpush1.msra.mxu0 0.0
    %450 = vmatprep.subr.mxu0 0.0
    %451 = vmatpush1.msra.mxu0 0.0
    %452 = vmatprep.subr.mxu0 0.0
    %453 = vmatpush1.msra.mxu0 0.0
    %454 = vmatprep.subr.mxu0 0.0
    %455 = vmatpush1.msra.mxu0 0.0
    %456 = vmatprep.subr.mxu0 0.0
    %457 = vmatpush1.msra.mxu0 0.0
    %458 = vmatprep.subr.mxu0 0.0
    %459 = vmatpush1.msra.mxu0 0.0
    %460 = vmatprep.subr.mxu0 0.0
    %461 = vmatpush1.msra.mxu0 0.0
    %462 = vmatprep.subr.mxu0 0.0
    %463 = vmatpush1.msra.mxu0 0.0
    %464 = vmatprep.subr.mxu0 0.0
    %465 = vmatpush1.msra.mxu0 0.0
    %466 = vmatprep.subr.mxu0 0.0
    %467 = vmatpush1.msra.mxu0 0.0
    %468 = vmatprep.subr.mxu0 0.0
    %469 = vmatpush1.msra.mxu0 0.0
    %470 = vmatprep.subr.mxu0 0.0
    %471 = vmatpush1.msra.mxu0 0.0
    %472 = vmatprep.subr.mxu0 0.0
    %473 = vmatpush1.msra.mxu0 0.0
    %474 = vmatprep.mubr.f32.mxu0 0.0
    %475 = vmatmul.mubr.f32.gmra.mrb[0].mxu0 %v337
    %v476 = vpop.f32.mrb[0].mxu0
    %v477 = vadd.f32 0.0, %v476
    %v478 = vpop.f32.mrb[0].mxu0
    %479 = vdwg.mxu0
    %v481 = vlaneseq
    %v482 = vshrl.u32 %v481, 7
    %v483 = vsub.s32 0, %v482
    %v484 = vrot.slane %v303, %v483
    %v485 = vlaneseq
    %v486 = vshrl.u32 %v485, 7
    %v487 = vsub.s32 1, %v486
    %v488 = vrot.slane %v303, %v487
    %v489 = vlaneseq
    %v490 = vshrl.u32 %v489, 7
    %v491 = vsub.s32 2, %v490
    %v492 = vrot.slane %v303, %v491
    %v496 = vadd.f32 %v484, %v406
    %v497 = vadd.f32 %v488, %v408
    %v498 = vadd.f32 %v492, %v477
    %v502 = vcombine.low %v496, %v497
    %v504 = vunpack.c.l.s4 1983009808
    %v505 = vunpack.c.0.s8 %v504
    %v506 = vlaneseq
    %v507 = vshrl.u32 %v506, 7
    %v508 = vsub.s32 %v505, %v507
    %v509 = vrot.slane %v502, %v508
    %v511 = vunpack.c.l.s4 1983009808
    %v512 = vunpack.c.0.s8 %v511
    %v513 = vlaneseq
    %v514 = vshrl.u32 %v513, 7
    %v515 = vsub.s32 %v512, %v514
    %v516 = vrot.slane %v498, %v515
    %v517 = vcombine.low %v509, %v516
    %519 = vst [vmem:[%s7] sm:$0x3f] %v517
    // Predicated region
    $region34: #{bfm_face_loss_forward.2} parent=1 // pred_check
      _
    $region35: #{bfm_face_loss_forward.2} parent=1 // pred_check_branch
      %521 = sbr.rel (0) target = $region37
    $region36: #{bfm_face_loss_forward.2} parent=1 // pred_region
      _
    $region37: #{bfm_face_loss_forward.2} parent=1 // pred_fallthru
      _
    // Predicated region
    $region38: #{bfm_face_loss_forward.2} parent=1 // pred_check
      _
    $region39: #{bfm_face_loss_forward.2} parent=1 // pred_check_branch
      %523 = sbr.rel (0) target = $region41
    $region40: #{bfm_face_loss_forward.2} parent=1 // pred_region
      _
    $region41: #{bfm_face_loss_forward.2} parent=1 // pred_fallthru
      _
    // Predicated region
    $region42: #{bfm_face_loss_forward.2} parent=1 // pred_check
      _
    $region43: #{bfm_face_loss_forward.2} parent=1 // pred_check_branch
      %525 = sbr.rel (0) target = $region45
    $region44: #{bfm_face_loss_forward.2} parent=1 // pred_region
      _
    $region45: #{bfm_face_loss_forward.2} parent=1 // pred_fallthru
      _
    // Predicated region
    $region46: #{bfm_face_loss_forward.2} parent=1 // pred_check
      _
    $region47: #{bfm_face_loss_forward.2} parent=1 // pred_check_branch
      %527 = sbr.rel (0) target = $region49
    $region48: #{bfm_face_loss_forward.2} parent=1 // pred_region
      _
    $region49: #{bfm_face_loss_forward.2} parent=1 // pred_fallthru
      _
    %528 = vsyncpa [#allocation3], 1
    %529 = vsyncpa [#allocation5], 1

// kernel: bfm_face_loss_forward.3
$region0: #{bfm_face_loss_forward.3}
  #allocation0 [shape = 'u32[]', space=smem, size = 0x4, offset = 0x4, fixed_abs, tag = 'smem constant byte address 0x4 - core index']
  #allocation1 [shape = 'u32[144,128]{1,0:T(1,128)}', space=vmem, size = 0x12000, scoped, tag = 'internal scratch']
  %s0 = inlined_call_operand.vmem [shape: f32[2,27], index: 0, kind: input, shape index: {}]
  %s1 = inlined_call_operand.vmem [shape: f32[2,128,4], index: 1, kind: input, shape index: {}]
  %s2 = inlined_call_operand.vmem [shape: f32[2,3,128], index: 2, kind: input, shape index: {}]
  %s3 = inlined_call_operand.vmem [shape: f32[2,3,128], index: 3, kind: input, shape index: {}]
  %s4 = inlined_call_operand.vmem [shape: f32[4,1024], index: 4, kind: input, shape index: {}]
  %s5 = inlined_call_operand.vmem [shape: f32[2,3,1024], index: 5, kind: input, shape index: {}]
  %s6 = inlined_call_operand.vmem [shape: f32[2,4,1024], index: 6, kind: output, shape index: {0}]
  %s7 = inlined_call_operand.vmem [shape: f32[2,1,1024], index: 7, kind: output, shape index: {1}]
  %8 = xla_tuple %s6, %s7
  %s9 = sld [smem:[#allocation0]]
  $region69: #{bfm_face_loss_forward.3} parent=0
    _
  %s11 = ssub.s32 1, %s9
  %s12 = scalar_select 0, %s11, %s9
  $region1: #{bfm_face_loss_forward.3} parent=0
    #allocation2 [shape = 'u8[1024]{0}', space=smem, size = 0x400, scoped, tag = 'input window, operand 0, single buffered']
    #allocation3 [shape = 's32[2]{0}', space=sflag, size = 0x8, scoped, tag = 'scoped memory for bfm_face_loss_forward.3']
    %13 = vsyncpa [#allocation3], 0
    loop: start=0, step=1, limit=4
    $region2: #{bfm_face_loss_forward.3} parent=1 // loop_pre_header
      _
    $region3: #{bfm_face_loss_forward.3} parent=1 // loop_header
      %s15 = sphi 0, %s19
      %p16 = scmp.ge.s32.totalorder %s15, 4
      %s22 = sphi 0, %s34
      %s23 = sphi 0, %s30
      %s24 = sphi 0, %s22
      %s25 = sphi 0, %s23
      %s26 = sphi 0, %s24
      %s27 = sphi 0, %s25
      %s35 = sphi 0, %s35
      %s37 = sphi 0, %s35
      %s38 = sphi 0, %s37
      %s52 = sphi 0, %s38
      %s58 = sphi 0, %s60
      %s61 = sphi 0, %s58
      %s62 = sphi 0, %s61
      %s78 = sphi 0, %s62
      %s84 = sphi 0, %s86
      %s87 = sphi 0, %s84
      %s88 = sphi 0, %s87
      %s104 = sphi 0, %s88
      %s110 = sphi 0, %s112
      %s113 = sphi 0, %s110
      %s114 = sphi 0, %s113
      %s130 = sphi 0, %s114
      %s136 = sphi 0, %s138
      %s139 = sphi 0, %s136
      %s140 = sphi 0, %s139
      %s156 = sphi 0, %s140
      %s164 = sphi 0, %s166
      %s167 = sphi 0, %s164
      %s168 = sphi 0, %s167
      %s184 = sphi 0, %s168
      %s192 = sphi 0, %s194
      %s195 = sphi 0, %s192
      %s196 = sphi 0, %s195
      %s212 = sphi 0, %s196
      %s220 = sphi 0, %s222
      %s223 = sphi 0, %s220
      %s224 = sphi 0, %s223
      %s240 = sphi 0, %s224
    $region4: #{bfm_face_loss_forward.3} parent=1 // loop_header_branch
      %18 = sbr.rel (%p16) target = $region8
    $region5: #{bfm_face_loss_forward.3} parent=1 // loop_body
      %s20 = ssub.s32 %s15, 1
      %s21 = ssub.s32 %s15, 2
      %s28 = sadd.s32 1, %s23
      %p29 = scmp.ge.s32.totalorder %s28, 1
      %s30 = scalar_select %p29, 0, %s28
      %s31 = sadd.s32 1, %s22
      %s32 = scalar_select %p29, %s31, %s22
      %p33 = scmp.ge.s32.totalorder %s32, 2
      %s34 = scalar_select %p33, 0, %s32
      %s36 = sadd.s32 %s35, 1
      %p39 = scmp.eq.s32.totalorder %s15, 1
      %p40 = scmp.ne.s32.totalorder %s35, %s37
      %p41 = scmp.eq.s32.totalorder %s15, 0
      %p42 = por %p40, %p41
      %p43 = scmp.ne.s32.totalorder %s35, %s37
      %p44 = scmp.eq.s32.totalorder %s20, 1
      %p45 = por %p43, %p44
      %p46 = scmp.ne.s32.totalorder %s37, %s38
      %p47 = scmp.eq.s32.totalorder %s20, 0
      %p48 = por %p46, %p47
      %p49 = scmp.ne.s32.totalorder %s37, %s38
      %p50 = scmp.eq.s32.totalorder %s21, 1
      %p51 = por %p49, %p50
      %p53 = scmp.ne.s32.totalorder %s38, %s52
      %p54 = scmp.eq.s32.totalorder %s21, 0
      %p55 = por %p53, %p54
      %s56 = ssub.s32 %s22, %s34
      %p57 = scmp.eq.s32.totalorder %s56, 0
      %s59 = sadd.s32 %s58, 1
      %s60 = scalar_select %p57, %s58, %s59
      %p63 = pneg %p57
      %p64 = scmp.eq.s32.totalorder %s15, 1
      %p65 = por %p63, %p64
      %p66 = scmp.ne.s32.totalorder %s58, %s61
      %p67 = scmp.eq.s32.totalorder %s15, 0
      %p68 = por %p66, %p67
      %p69 = scmp.ne.s32.totalorder %s58, %s61
      %p70 = scmp.eq.s32.totalorder %s20, 1
      %p71 = por %p69, %p70
      %p72 = scmp.ne.s32.totalorder %s61, %s62
      %p73 = scmp.eq.s32.totalorder %s20, 0
      %p74 = por %p72, %p73
      %p75 = scmp.ne.s32.totalorder %s61, %s62
      %p76 = scmp.eq.s32.totalorder %s21, 1
      %p77 = por %p75, %p76
      %p79 = scmp.ne.s32.totalorder %s62, %s78
      %p80 = scmp.eq.s32.totalorder %s21, 0
      %p81 = por %p79, %p80
      %s82 = ssub.s32 %s22, %s34
      %p83 = scmp.eq.s32.totalorder %s82, 0
      %s85 = sadd.s32 %s84, 1
      %s86 = scalar_select %p83, %s84, %s85
      %p89 = pneg %p83
      %p90 = scmp.eq.s32.totalorder %s15, 1
      %p91 = por %p89, %p90
      %p92 = scmp.ne.s32.totalorder %s84, %s87
      %p93 = scmp.eq.s32.totalorder %s15, 0
      %p94 = por %p92, %p93
      %p95 = scmp.ne.s32.totalorder %s84, %s87
      %p96 = scmp.eq.s32.totalorder %s20, 1
      %p97 = por %p95, %p96
      %p98 = scmp.ne.s32.totalorder %s87, %s88
      %p99 = scmp.eq.s32.totalorder %s20, 0
      %p100 = por %p98, %p99
      %p101 = scmp.ne.s32.totalorder %s87, %s88
      %p102 = scmp.eq.s32.totalorder %s21, 1
      %p103 = por %p101, %p102
      %p105 = scmp.ne.s32.totalorder %s88, %s104
      %p106 = scmp.eq.s32.totalorder %s21, 0
      %p107 = por %p105, %p106
      %s108 = ssub.s32 %s22, %s34
      %p109 = scmp.eq.s32.totalorder %s108, 0
      %s111 = sadd.s32 %s110, 1
      %s112 = scalar_select %p109, %s110, %s111
      %p115 = pneg %p109
      %p116 = scmp.eq.s32.totalorder %s15, 1
      %p117 = por %p115, %p116
      %p118 = scmp.ne.s32.totalorder %s110, %s113
      %p119 = scmp.eq.s32.totalorder %s15, 0
      %p120 = por %p118, %p119
      %p121 = scmp.ne.s32.totalorder %s110, %s113
      %p122 = scmp.eq.s32.totalorder %s20, 1
      %p123 = por %p121, %p122
      %p124 = scmp.ne.s32.totalorder %s113, %s114
      %p125 = scmp.eq.s32.totalorder %s20, 0
      %p126 = por %p124, %p125
      %p127 = scmp.ne.s32.totalorder %s113, %s114
      %p128 = scmp.eq.s32.totalorder %s21, 1
      %p129 = por %p127, %p128
      %p131 = scmp.ne.s32.totalorder %s114, %s130
      %p132 = scmp.eq.s32.totalorder %s21, 0
      %p133 = por %p131, %p132
      %s134 = ssub.s32 %s23, %s30
      %p135 = scmp.eq.s32.totalorder %s134, 0
      %s137 = sadd.s32 %s136, 1
      %s138 = scalar_select %p135, %s136, %s137
      %p141 = pneg %p135
      %p142 = scmp.eq.s32.totalorder %s15, 1
      %p143 = por %p141, %p142
      %p144 = scmp.ne.s32.totalorder %s136, %s139
      %p145 = scmp.eq.s32.totalorder %s15, 0
      %p146 = por %p144, %p145
      %p147 = scmp.ne.s32.totalorder %s136, %s139
      %p148 = scmp.eq.s32.totalorder %s20, 1
      %p149 = por %p147, %p148
      %p150 = scmp.ne.s32.totalorder %s139, %s140
      %p151 = scmp.eq.s32.totalorder %s20, 0
      %p152 = por %p150, %p151
      %p153 = scmp.ne.s32.totalorder %s139, %s140
      %p154 = scmp.eq.s32.totalorder %s21, 1
      %p155 = por %p153, %p154
      %p157 = scmp.ne.s32.totalorder %s140, %s156
      %p158 = scmp.eq.s32.totalorder %s21, 0
      %p159 = por %p157, %p158
      %s160 = ssub.s32 %s22, %s34
      %s161 = ssub.s32 %s23, %s30
      %s162 = sor.u32 %s160, %s161
      %p163 = scmp.eq.s32.totalorder %s162, 0
      %s165 = sadd.s32 %s164, 1
      %s166 = scalar_select %p163, %s164, %s165
      %p169 = pneg %p163
      %p170 = scmp.eq.s32.totalorder %s15, 1
      %p171 = por %p169, %p170
      %p172 = scmp.ne.s32.totalorder %s164, %s167
      %p173 = scmp.eq.s32.totalorder %s15, 0
      %p174 = por %p172, %p173
      %p175 = scmp.ne.s32.totalorder %s164, %s167
      %p176 = scmp.eq.s32.totalorder %s20, 1
      %p177 = por %p175, %p176
      %p178 = scmp.ne.s32.totalorder %s167, %s168
      %p179 = scmp.eq.s32.totalorder %s20, 0
      %p180 = por %p178, %p179
      %p181 = scmp.ne.s32.totalorder %s167, %s168
      %p182 = scmp.eq.s32.totalorder %s21, 1
      %p183 = por %p181, %p182
      %p185 = scmp.ne.s32.totalorder %s168, %s184
      %p186 = scmp.eq.s32.totalorder %s21, 0
      %p187 = por %p185, %p186
      %s188 = ssub.s32 %s22, %s34
      %s189 = ssub.s32 %s23, %s30
      %s190 = sor.u32 %s188, %s189
      %p191 = scmp.eq.s32.totalorder %s190, 0
      %s193 = sadd.s32 %s192, 1
      %s194 = scalar_select %p191, %s192, %s193
      %p197 = pneg %p191
      %p198 = scmp.eq.s32.totalorder %s15, 1
      %p199 = por %p197, %p198
      %p200 = scmp.ne.s32.totalorder %s192, %s195
      %p201 = scmp.eq.s32.totalorder %s15, 0
      %p202 = por %p200, %p201
      %p203 = scmp.ne.s32.totalorder %s192, %s195
      %p204 = scmp.eq.s32.totalorder %s20, 1
      %p205 = por %p203, %p204
      %p206 = scmp.ne.s32.totalorder %s195, %s196
      %p207 = scmp.eq.s32.totalorder %s20, 0
      %p208 = por %p206, %p207
      %p209 = scmp.ne.s32.totalorder %s195, %s196
      %p210 = scmp.eq.s32.totalorder %s21, 1
      %p211 = por %p209, %p210
      %p213 = scmp.ne.s32.totalorder %s196, %s212
      %p214 = scmp.eq.s32.totalorder %s21, 0
      %p215 = por %p213, %p214
      %s216 = ssub.s32 %s22, %s34
      %s217 = ssub.s32 %s23, %s30
      %s218 = sor.u32 %s216, %s217
      %p219 = scmp.eq.s32.totalorder %s218, 0
      %s221 = sadd.s32 %s220, 1
      %s222 = scalar_select %p219, %s220, %s221
      %p225 = pneg %p219
      %p226 = scmp.eq.s32.totalorder %s15, 1
      %p227 = por %p225, %p226
      %p228 = scmp.ne.s32.totalorder %s220, %s223
      %p229 = scmp.eq.s32.totalorder %s15, 0
      %p230 = por %p228, %p229
      %p231 = scmp.ne.s32.totalorder %s220, %s223
      %p232 = scmp.eq.s32.totalorder %s20, 1
      %p233 = por %p231, %p232
      %p234 = scmp.ne.s32.totalorder %s223, %s224
      %p235 = scmp.eq.s32.totalorder %s20, 0
      %p236 = por %p234, %p235
      %p237 = scmp.ne.s32.totalorder %s223, %s224
      %p238 = scmp.eq.s32.totalorder %s21, 1
      %p239 = por %p237, %p238
      %p241 = scmp.ne.s32.totalorder %s224, %s240
      %p242 = scmp.eq.s32.totalorder %s21, 0
      %p243 = por %p241, %p242
      %p244 = scmp.le.s32.totalorder 1, %s15
      %p245 = scmp.lt.s32.totalorder %s15, 3
      %p246 = pnand %p244, %p245
      %p247 = pneg %p246
      // Predicated region
      $region9: #{bfm_face_loss_forward.3} parent=5 // pred_check
        _
      $region10: #{bfm_face_loss_forward.3} parent=5 // pred_check_branch
        %249 = sbr.rel (%p246) target = $region12
      $region11: #{bfm_face_loss_forward.3} parent=5 // pred_region
        %s250 = ssub.s32 %s15, 1
        // Predicated region
        $region13: #{bfm_face_loss_forward.3} parent=11 // pred_check
          %p251 = pneg %p48
        $region14: #{bfm_face_loss_forward.3} parent=11 // pred_check_branch
          %253 = sbr.rel (%p251) target = $region16
        $region15: #{bfm_face_loss_forward.3} parent=11 // pred_region
          %s255 = ssub.s32 32, 32
          %256 = vsyncadd [#allocation3], %s255
          %s258 = sshll.u32 %s0, 4
          %s259 = int_to_ptr.vmem [resolvable:$true] %s258
          %261 = dma.vmem_to_smem %s259, 32, [#allocation2], [#allocation3]
        $region16: #{bfm_face_loss_forward.3} parent=11 // pred_fallthru
          _
        // Predicated region
        $region17: #{bfm_face_loss_forward.3} parent=11 // pred_check
          %p262 = pneg %p152
        $region18: #{bfm_face_loss_forward.3} parent=11 // pred_check_branch
          %264 = sbr.rel (%p262) target = $region20
        $region19: #{bfm_face_loss_forward.3} parent=11 // pred_region
          %s265 = smul.u32 8, %s25
          %p266 = scmp.lt.s32.totalorder %s265, 7
          %s267 = scalar_select %p266, %s265, 7
          %s268 = smul.addr %s267, 4
          %s269 = scalar_lea.vmem %s4, %s268
          %s270 = smul.u32 8, %s25
        $region20: #{bfm_face_loss_forward.3} parent=11 // pred_fallthru
          _
      $region12: #{bfm_face_loss_forward.3} parent=5 // pred_fallthru
        _
      %p271 = scmp.lt.s32.totalorder %s15, 2
      // Predicated region
      $region21: #{bfm_face_loss_forward.3} parent=5 // pred_check
        %p272 = pneg %p271
      $region22: #{bfm_face_loss_forward.3} parent=5 // pred_check_branch
        %274 = sbr.rel (%p272) target = $region24
      $region23: #{bfm_face_loss_forward.3} parent=5 // pred_region
        // Predicated region
        $region25: #{bfm_face_loss_forward.3} parent=23 // pred_check
          %p275 = pneg %p68
        $region26: #{bfm_face_loss_forward.3} parent=23 // pred_check_branch
          %277 = sbr.rel (%p275) target = $region28
        $region27: #{bfm_face_loss_forward.3} parent=23 // pred_region
          %p278 = scmp.lt.s32.totalorder %s22, 1
          %s279 = scalar_select %p278, %s22, 1
          %s280 = smul.addr %s279, 16
          %s281 = smul.addr %s280, 8
          %s282 = scalar_lea.vmem %s1, %s281
        $region28: #{bfm_face_loss_forward.3} parent=23 // pred_fallthru
          _
        // Predicated region
        $region29: #{bfm_face_loss_forward.3} parent=23 // pred_check
          %p283 = pneg %p94
        $region30: #{bfm_face_loss_forward.3} parent=23 // pred_check_branch
          %285 = sbr.rel (%p283) target = $region32
        $region31: #{bfm_face_loss_forward.3} parent=23 // pred_region
          %p286 = scmp.lt.s32.totalorder %s22, 1
          %s287 = scalar_select %p286, %s22, 1
          %s288 = smul.addr %s287, 4
          %s289 = scalar_lea.vmem %s2, %s288
        $region32: #{bfm_face_loss_forward.3} parent=23 // pred_fallthru
          _
        // Predicated region
        $region33: #{bfm_face_loss_forward.3} parent=23 // pred_check
          %p290 = pneg %p120
        $region34: #{bfm_face_loss_forward.3} parent=23 // pred_check_branch
          %292 = sbr.rel (%p290) target = $region36
        $region35: #{bfm_face_loss_forward.3} parent=23 // pred_region
          %p293 = scmp.lt.s32.totalorder %s22, 1
          %s294 = scalar_select %p293, %s22, 1
          %s295 = smul.addr %s294, 4
          %s296 = scalar_lea.vmem %s3, %s295
        $region36: #{bfm_face_loss_forward.3} parent=23 // pred_fallthru
          _
        // Predicated region
        $region37: #{bfm_face_loss_forward.3} parent=23 // pred_check
          %p297 = pneg %p174
        $region38: #{bfm_face_loss_forward.3} parent=23 // pred_check_branch
          %299 = sbr.rel (%p297) target = $region40
        $region39: #{bfm_face_loss_forward.3} parent=23 // pred_region
          %s300 = smul.u32 8, %s23
          %p301 = scmp.lt.s32.totalorder %s22, 1
          %s302 = scalar_select %p301, %s22, 1
          %p303 = scmp.lt.s32.totalorder %s300, 7
          %s304 = scalar_select %p303, %s300, 7
          %s305 = smul.addr %s302, 8
          %s306 = sadd.s32 %s304, %s305
          %s307 = smul.addr %s306, 4
          %s308 = scalar_lea.vmem %s5, %s307
          %s309 = smul.u32 8, %s23
        $region40: #{bfm_face_loss_forward.3} parent=23 // pred_fallthru
          _
      $region24: #{bfm_face_loss_forward.3} parent=5 // pred_fallthru
        _
      %p310 = scmp.le.s32.totalorder 1, %s15
      %p311 = scmp.lt.s32.totalorder %s15, 3
      %p312 = pnand %p310, %p311
      %p313 = pneg %p312
      // Predicated region
      $region41: #{bfm_face_loss_forward.3} parent=5 // pred_check
        _
      $region42: #{bfm_face_loss_forward.3} parent=5 // pred_check_branch
        %315 = sbr.rel (%p312) target = $region44
      $region43: #{bfm_face_loss_forward.3} parent=5 // pred_region
        %s316 = ssub.s32 %s15, 1
        // Predicated region
        $region45: #{bfm_face_loss_forward.3} parent=43 // pred_check
          %p317 = pneg %p48
        $region46: #{bfm_face_loss_forward.3} parent=43 // pred_check_branch
          %319 = sbr.rel (%p317) target = $region48
        $region47: #{bfm_face_loss_forward.3} parent=43 // pred_region
          %320 = dma.done [#allocation3], 32
        $region48: #{bfm_face_loss_forward.3} parent=43 // pred_fallthru
          _
        %321 = sfence
        %p322 = pneg %p48
        %p323 = pneg %p45
        %p324 = scmp.lt.s32.totalorder %s24, 1
        %s325 = scalar_select %p324, %s24, 1
        %s326 = smul.addr %s325, 16
        %s327 = smul.addr %s326, 8
        %s328 = scalar_lea.vmem %s1, %s327
        %p329 = pneg %p74
        %p330 = pneg %p71
        %p331 = scmp.lt.s32.totalorder %s24, 1
        %s332 = scalar_select %p331, %s24, 1
        %s333 = smul.addr %s332, 4
        %s334 = scalar_lea.vmem %s2, %s333
        %p335 = pneg %p100
        %p336 = pneg %p97
        %p337 = scmp.lt.s32.totalorder %s24, 1
        %s338 = scalar_select %p337, %s24, 1
        %s339 = smul.addr %s338, 4
        %s340 = scalar_lea.vmem %s3, %s339
        %p341 = pneg %p126
        %p342 = pneg %p123
        %s343 = smul.u32 8, %s25
        %p344 = scmp.lt.s32.totalorder %s343, 7
        %s345 = scalar_select %p344, %s343, 7
        %s346 = smul.addr %s345, 4
        %s347 = scalar_lea.vmem %s4, %s346
        %p348 = pneg %p152
        %p349 = pneg %p149
        %s350 = smul.u32 8, %s25
        %p351 = scmp.lt.s32.totalorder %s24, 1
        %s352 = scalar_select %p351, %s24, 1
        %p353 = scmp.lt.s32.totalorder %s350, 7
        %s354 = scalar_select %p353, %s350, 7
        %s355 = smul.addr %s352, 8
        %s356 = sadd.s32 %s354, %s355
        %s357 = smul.addr %s356, 4
        %s358 = scalar_lea.vmem %s5, %s357
        %p359 = pneg %p180
        %p360 = pneg %p177
        %p361 = pneg %p208
        %p362 = pneg %p205
        %s363 = smul.u32 8, %s25
        %p364 = scmp.lt.s32.totalorder %s24, 1
        %s365 = scalar_select %p364, %s24, 1
        %p366 = scmp.lt.s32.totalorder %s363, 7
        %s367 = scalar_select %p366, %s363, 7
        %s368 = smul.addr %s365, 8
        %s369 = sadd.s32 %s367, %s368
        %s370 = smul.addr %s369, 4
        %s371 = scalar_lea.vmem %s6, %s370
        %p372 = pneg %p236
        %p373 = pneg %p233
        %s374 = smul.u32 8, %s25
        %p375 = scmp.lt.s32.totalorder %s24, 1
        %s376 = scalar_select %p375, %s24, 1
        %p377 = scmp.lt.s32.totalorder %s374, 7
        %s378 = scalar_select %p377, %s374, 7
        %s379 = smul.addr %s376, 8
        %s380 = sadd.s32 %s378, %s379
        %s381 = scalar_lea.vmem %s7, %s380
        %p382 = scmp.lt.s32.totalorder %s24, 1
        %s383 = scalar_select %p382, %s24, 1
        %s384 = smul.addr %s383, 16
        %s385 = smul.addr %s384, 8
        %s386 = scalar_lea.vmem %s1, %s385
        %p387 = scmp.lt.s32.totalorder %s24, 1
        %s388 = scalar_select %p387, %s24, 1
        %s389 = smul.addr %s388, 4
        %s390 = scalar_lea.vmem %s2, %s389
        %p391 = scmp.lt.s32.totalorder %s24, 1
        %s392 = scalar_select %p391, %s24, 1
        %s393 = smul.addr %s392, 4
        %s394 = scalar_lea.vmem %s3, %s393
        %s395 = smul.u32 8, %s25
        %p396 = scmp.lt.s32.totalorder %s395, 7
        %s397 = scalar_select %p396, %s395, 7
        %s398 = smul.addr %s397, 4
        %s399 = scalar_lea.vmem %s4, %s398
        %s400 = smul.u32 8, %s25
        %s401 = smul.u32 8, %s25
        %p402 = scmp.lt.s32.totalorder %s24, 1
        %s403 = scalar_select %p402, %s24, 1
        %p404 = scmp.lt.s32.totalorder %s401, 7
        %s405 = scalar_select %p404, %s401, 7
        %s406 = smul.addr %s403, 8
        %s407 = sadd.s32 %s405, %s406
        %s408 = smul.addr %s407, 4
        %s409 = scalar_lea.vmem %s5, %s408
        %s410 = smul.u32 8, %s25
        %s411 = smul.u32 8, %s25
        %p412 = scmp.lt.s32.totalorder %s24, 1
        %s413 = scalar_select %p412, %s24, 1
        %p414 = scmp.lt.s32.totalorder %s411, 7
        %s415 = scalar_select %p414, %s411, 7
        %s416 = smul.addr %s413, 8
        %s417 = sadd.s32 %s415, %s416
        %s418 = smul.addr %s417, 4
        %s419 = scalar_lea.vmem %s6, %s418
        %s420 = smul.u32 8, %s25
        %s421 = smul.u32 8, %s25
        %p422 = scmp.lt.s32.totalorder %s24, 1
        %s423 = scalar_select %p422, %s24, 1
        %p424 = scmp.lt.s32.totalorder %s421, 7
        %s425 = scalar_select %p424, %s421, 7
        %s426 = smul.addr %s423, 8
        %s427 = sadd.s32 %s425, %s426
        %s428 = scalar_lea.vmem %s7, %s427
        %s429 = smul.u32 8, %s25
        %v431 = vld [vmem:[%s390] sm:$0x7]
        %v432 = vld [vmem:[%s394] sm:$0x7]
        %v433 = vmul.f32 %v431, -1.7724539
        %v434 = vmul.f32 %v431, 1.7724539
        %v435 = vmul.f32 %v431, 2.4270325
        %v437 = vrot.slane %v431, 1
        %v439 = vmul.f32 %v435, %v437
        %v440 = vmul.f32 %v431, -2.4270325
        %v441 = vmul.f32 %v440, %v437
        %v442 = vmul.f32 %v431, 3.0
        %v443 = vmul.f32 %v442, %v431
        %v444 = vsub.f32 %v443, 1.0
        %v445 = vmul.f32 %v444, 0.7006239
        %v446 = vrot.slane %v431, 2
        %v448 = vmul.f32 %v440, %v446
        %v449 = vmul.f32 %v431, %v431
        %v451 = vrot.slane %v449, 1
        %v453 = vsub.f32 %v449, %v451
        %v454 = vmul.f32 %v453, 1.2135162
        %s455 = smul.u32 %s24, 128
        %s456 = sld [smem:[#allocation2 + %s455]]
        %v457 = vstv %s456
        %v458 = vmul.f32 %v457, 0.88622695
        %s459 = sadd.s32 %s455, 1
        %s460 = sld [smem:[#allocation2 + %s459]]
        %v461 = vstv %s460
        %v462 = vmul.f32 %v461, %v433
        %v463 = vadd.f32 %v458, %v462
        %s464 = sadd.s32 %s455, 2
        %s465 = sld [smem:[#allocation2 + %s464]]
        %v466 = vstv %s465
        %v467 = vmul.f32 %v466, %v434
        %v469 = vrot.slane %v467, 1
        %v471 = vadd.f32 %v463, %v469
        %s472 = sadd.s32 %s455, 3
        %s473 = sld [smem:[#allocation2 + %s472]]
        %v474 = vstv %s473
        %v475 = vmul.f32 %v474, %v433
        %v477 = vrot.slane %v475, 7
        %v479 = vadd.f32 %v471, %v477
        %s480 = sadd.s32 %s455, 4
        %s481 = sld [smem:[#allocation2 + %s480]]
        %v482 = vstv %s481
        %v483 = vmul.f32 %v482, %v439
        %v485 = vrot.slane %v483, 7
        %v487 = vadd.f32 %v479, %v485
        %s488 = sadd.s32 %s455, 5
        %s489 = sld [smem:[#allocation2 + %s488]]
        %v490 = vstv %s489
        %v491 = vmul.f32 %v490, %v441
        %v492 = vadd.f32 %v487, %v491
        %s493 = sadd.s32 %s455, 6
        %s494 = sld [smem:[#allocation2 + %s493]]
        %v495 = vstv %s494
        %v496 = vmul.f32 %v495, %v445
        %v498 = vrot.slane %v496, 1
        %v500 = vadd.f32 %v492, %v498
        %s501 = sadd.s32 %s455, 7
        %s502 = sld [smem:[#allocation2 + %s501]]
        %v503 = vstv %s502
        %v504 = vmul.f32 %v503, %v448
        %v506 = vrot.slane %v504, 7
        %v508 = vadd.f32 %v500, %v506
        %s509 = sadd.s32 %s455, 8
        %s510 = sld [smem:[#allocation2 + %s509]]
        %v511 = vstv %s510
        %v512 = vmul.f32 %v511, %v454
        %v514 = vrot.slane %v512, 7
        %v516 = vadd.f32 %v508, %v514
        %v518 = vrot.slane %v432, 7
        %v520 = vmul.f32 %v516, %v518
        %s521 = sadd.s32 %s455, 9
        %s522 = sld [smem:[#allocation2 + %s521]]
        %v523 = vstv %s522
        %v524 = vmul.f32 %v523, 0.88622695
        %s525 = sadd.s32 %s455, 10
        %s526 = sld [smem:[#allocation2 + %s525]]
        %v527 = vstv %s526
        %v528 = vmul.f32 %v527, %v433
        %v529 = vadd.f32 %v524, %v528
        %s530 = sadd.s32 %s455, 11
        %s531 = sld [smem:[#allocation2 + %s530]]
        %v532 = vstv %s531
        %v533 = vmul.f32 %v532, %v434
        %v535 = vrot.slane %v533, 1
        %v537 = vadd.f32 %v529, %v535
        %s538 = sadd.s32 %s455, 12
        %s539 = sld [smem:[#allocation2 + %s538]]
        %v540 = vstv %s539
        %v541 = vmul.f32 %v540, %v433
        %v543 = vrot.slane %v541, 7
        %v545 = vadd.f32 %v537, %v543
        %s546 = sadd.s32 %s455, 13
        %s547 = sld [smem:[#allocation2 + %s546]]
        %v548 = vstv %s547
        %v549 = vmul.f32 %v548, %v439
        %v551 = vrot.slane %v549, 7
        %v553 = vadd.f32 %v545, %v551
        %s554 = sadd.s32 %s455, 14
        %s555 = sld [smem:[#allocation2 + %s554]]
        %v556 = vstv %s555
        %v557 = vmul.f32 %v556, %v441
        %v558 = vadd.f32 %v553, %v557
        %s559 = sadd.s32 %s455, 15
        %s560 = sld [smem:[#allocation2 + %s559]]
        %v561 = vstv %s560
        %v562 = vmul.f32 %v561, %v445
        %v564 = vrot.slane %v562, 1
        %v566 = vadd.f32 %v558, %v564
        %s567 = sadd.s32 %s455, 16
        %s568 = sld [smem:[#allocation2 + %s567]]
        %v569 = vstv %s568
        %v570 = vmul.f32 %v569, %v448
        %v572 = vrot.slane %v570, 7
        %v574 = vadd.f32 %v566, %v572
        %s575 = sadd.s32 %s455, 17
        %s576 = sld [smem:[#allocation2 + %s575]]
        %v577 = vstv %s576
        %v578 = vmul.f32 %v577, %v454
        %v580 = vrot.slane %v578, 7
        %v582 = vadd.f32 %v574, %v580
        %v583 = vmul.f32 %v582, %v432
        %s584 = sadd.s32 %s455, 18
        %s585 = sld [smem:[#allocation2 + %s584]]
        %v586 = vstv %s585
        %v587 = vmul.f32 %v586, 0.88622695
        %s588 = sadd.s32 %s455, 19
        %s589 = sld [smem:[#allocation2 + %s588]]
        %v590 = vstv %s589
        %v591 = vmul.f32 %v590, %v433
        %v592 = vadd.f32 %v587, %v591
        %s593 = sadd.s32 %s455, 20
        %s594 = sld [smem:[#allocation2 + %s593]]
        %v595 = vstv %s594
        %v596 = vmul.f32 %v595, %v434
        %v598 = vrot.slane %v596, 1
        %v600 = vadd.f32 %v592, %v598
        %s601 = sadd.s32 %s455, 21
        %s602 = sld [smem:[#allocation2 + %s601]]
        %v603 = vstv %s602
        %v604 = vmul.f32 %v603, %v433
        %v606 = vrot.slane %v604, 7
        %v608 = vadd.f32 %v600, %v606
        %s609 = sadd.s32 %s455, 22
        %s610 = sld [smem:[#allocation2 + %s609]]
        %v611 = vstv %s610
        %v612 = vmul.f32 %v611, %v439
        %v614 = vrot.slane %v612, 7
        %v616 = vadd.f32 %v608, %v614
        %s617 = sadd.s32 %s455, 23
        %s618 = sld [smem:[#allocation2 + %s617]]
        %v619 = vstv %s618
        %v620 = vmul.f32 %v619, %v441
        %v621 = vadd.f32 %v616, %v620
        %s622 = sadd.s32 %s455, 24
        %s623 = sld [smem:[#allocation2 + %s622]]
        %v624 = vstv %s623
        %v625 = vmul.f32 %v624, %v445
        %v627 = vrot.slane %v625, 1
        %v629 = vadd.f32 %v621, %v627
        %s630 = sadd.s32 %s455, 25
        %s631 = sld [smem:[#allocation2 + %s630]]
        %v632 = vstv %s631
        %v633 = vmul.f32 %v632, %v448
        %v635 = vrot.slane %v633, 7
        %v637 = vadd.f32 %v629, %v635
        %s638 = sadd.s32 %s455, 26
        %s639 = sld [smem:[#allocation2 + %s638]]
        %v640 = vstv %s639
        %v641 = vmul.f32 %v640, %v454
        %v643 = vrot.slane %v641, 7
        %v645 = vadd.f32 %v637, %v643
        %v646 = vrot.slane %v432, 1
        %v648 = vmul.f32 %v645, %v646
        %v650 = vrot.slane %v520, 1
        %v653 = vrot.slane %v648, 7
        %vm655 = vcmask 1040384
        %v656 = vsel %vm655, %v650, %v583
        %vm657 = vcmask 1041408
        %v658 = vsel %vm657, %v656, %v653
        %vm659 = vcmask 1042432
        %v660 = vsel %vm659, %v658, 1.0
        %v661 = vld [vmem:[%s386] sm:$0xff]
        %v662 = vld [vmem:[%s386 + $0x8] sm:$0xff]
        %v663 = vld [vmem:[%s386 + $0x10] sm:$0xff]
        %v664 = vld [vmem:[%s386 + $0x18] sm:$0xff]
        %v665 = vld [vmem:[%s386 + $0x20] sm:$0xff]
        %v666 = vld [vmem:[%s386 + $0x28] sm:$0xff]
        %v667 = vld [vmem:[%s386 + $0x30] sm:$0xff]
        %v668 = vld [vmem:[%s386 + $0x38] sm:$0xff]
        %v669 = vld [vmem:[%s386 + $0x40] sm:$0xff]
        %v670 = vld [vmem:[%s386 + $0x48] sm:$0xff]
        %v671 = vld [vmem:[%s386 + $0x50] sm:$0xff]
        %v672 = vld [vmem:[%s386 + $0x58] sm:$0xff]
        %v673 = vld [vmem:[%s386 + $0x60] sm:$0xff]
        %v674 = vld [vmem:[%s386 + $0x68] sm:$0xff]
        %v675 = vld [vmem:[%s386 + $0x70] sm:$0xff]
        %v676 = vld [vmem:[%s386 + $0x78] sm:$0xff]
        %v677 = vld [vmem:[%s399] sm:$0xff]
        %v678 = vld [vmem:[%s399 + $0x8] sm:$0xff]
        %v679 = vld [vmem:[%s399 + $0x10] sm:$0xff]
        %v680 = vld [vmem:[%s399 + $0x18] sm:$0xff]
        %v685 = vcombine.high %v677, %v677
        %v686 = vcombine.high %v678, %v678
        %v687 = vcombine.high %v679, %v679
        %v688 = vcombine.high %v680, %v680
        %vm689 = vcmask 31744
        %v691 = vsel %vm689, %v661, 0
        %v694 = vsel %vm689, %v662, 0
        %v697 = vsel %vm689, %v663, 0
        %v700 = vsel %vm689, %v664, 0
        %v703 = vsel %vm689, %v665, 0
        %v706 = vsel %vm689, %v666, 0
        %v709 = vsel %vm689, %v667, 0
        %v712 = vsel %vm689, %v668, 0
        %v715 = vsel %vm689, %v669, 0
        %v718 = vsel %vm689, %v670, 0
        %v721 = vsel %vm689, %v671, 0
        %v724 = vsel %vm689, %v672, 0
        %v727 = vsel %vm689, %v673, 0
        %v730 = vsel %vm689, %v674, 0
        %v733 = vsel %vm689, %v675, 0
        %v736 = vsel %vm689, %v676, 0
        %vm738 = vcmask 1043456
        %v739 = vsel %vm738, %v677, 0
        %v741 = vsel %vm738, %v685, 0
        %v743 = vsel %vm738, %v678, 0
        %v745 = vsel %vm738, %v686, 0
        %v747 = vsel %vm738, %v679, 0
        %v749 = vsel %vm738, %v687, 0
        %v751 = vsel %vm738, %v680, 0
        %v753 = vsel %vm738, %v688, 0
        %755 = vmatprep.subr.mxu0 %v741
        %756 = vmatpush1.msra.mxu0 %v739
        %757 = vmatprep.subr.mxu0 0.0
        %758 = vmatpush1.msra.mxu0 0.0
        %759 = vmatprep.subr.mxu0 0.0
        %760 = vmatpush1.msra.mxu0 0.0
        %761 = vmatprep.subr.mxu0 0.0
        %762 = vmatpush1.msra.mxu0 0.0
        %763 = vmatprep.subr.mxu0 0.0
        %764 = vmatpush1.msra.mxu0 0.0
        %765 = vmatprep.subr.mxu0 0.0
        %766 = vmatpush1.msra.mxu0 0.0
        %767 = vmatprep.subr.mxu0 0.0
        %768 = vmatpush1.msra.mxu0 0.0
        %769 = vmatprep.subr.mxu0 0.0
        %770 = vmatpush1.msra.mxu0 0.0
        %771 = vmatprep.subr.mxu0 0.0
        %772 = vmatpush1.msra.mxu0 0.0
        %773 = vmatprep.subr.mxu0 0.0
        %774 = vmatpush1.msra.mxu0 0.0
        %775 = vmatprep.subr.mxu0 0.0
        %776 = vmatpush1.msra.mxu0 0.0
        %777 = vmatprep.subr.mxu0 0.0
        %778 = vmatpush1.msra.mxu0 0.0
        %779 = vmatprep.subr.mxu0 0.0
        %780 = vmatpush1.msra.mxu0 0.0
        %781 = vmatprep.subr.mxu0 0.0
        %782 = vmatpush1.msra.mxu0 0.0
        %783 = vmatprep.subr.mxu0 0.0
        %784 = vmatpush1.msra.mxu0 0.0
        %785 = vmatprep.subr.mxu0 0.0
        %786 = vmatpush1.msra.mxu0 0.0
        %787 = vmatprep.subr.mxu0 0.0
        %788 = vmatpush1.msra.mxu0 0.0
        %789 = vmatprep.subr.mxu0 0.0
        %790 = vmatpush1.msra.mxu0 0.0
        %791 = vmatprep.subr.mxu0 0.0
        %792 = vmatpush1.msra.mxu0 0.0
        %793 = vmatprep.subr.mxu0 0.0
        %794 = vmatpush1.msra.mxu0 0.0
        %795 = vmatprep.subr.mxu0 0.0
        %796 = vmatpush1.msra.mxu0 0.0
        %797 = vmatprep.subr.mxu0 0.0
        %798 = vmatpush1.msra.mxu0 0.0
        %799 = vmatprep.subr.mxu0 0.0
        %800 = vmatpush1.msra.mxu0 0.0
        %801 = vmatprep.subr.mxu0 0.0
        %802 = vmatpush1.msra.mxu0 0.0
        %803 = vmatprep.subr.mxu0 0.0
        %804 = vmatpush1.msra.mxu0 0.0
        %805 = vmatprep.subr.mxu0 0.0
        %806 = vmatpush1.msra.mxu0 0.0
        %807 = vmatprep.subr.mxu0 0.0
        %808 = vmatpush1.msra.mxu0 0.0
        %809 = vmatprep.subr.mxu0 0.0
        %810 = vmatpush1.msra.mxu0 0.0
        %811 = vmatprep.subr.mxu0 0.0
        %812 = vmatpush1.msra.mxu0 0.0
        %813 = vmatprep.subr.mxu0 0.0
        %814 = vmatpush1.msra.mxu0 0.0
        %815 = vmatprep.subr.mxu0 0.0
        %816 = vmatpush1.msra.mxu0 0.0
        %817 = vmatprep.subr.mxu0 0.0
        %818 = vmatpush1.msra.mxu0 0.0
        %819 = vmatprep.mubr.f32.mxu0 0.0
        %820 = vmatmul.mubr.f32.gmra.mrb[0].mxu0 %v691
        %v821 = vpop.f32.mrb[0].mxu0
        %v822 = vadd.f32 0.0, %v821
        %v823 = vpop.f32.mrb[0].mxu0
        %v824 = vadd.f32 0.0, %v823
        %825 = vmatprep.mubr.f32.mxu0 0.0
        %826 = vmatmul.mubr.f32.gmra.mrb[0].mxu0 %v694
        %v827 = vpop.f32.mrb[0].mxu0
        %v828 = vadd.f32 0.0, %v827
        %v829 = vpop.f32.mrb[0].mxu0
        %v830 = vadd.f32 0.0, %v829
        %831 = vmatprep.mubr.f32.mxu0 0.0
        %832 = vmatmul.mubr.f32.gmra.mrb[0].mxu0 %v697
        %v833 = vpop.f32.mrb[0].mxu0
        %v834 = vadd.f32 0.0, %v833
        %v835 = vpop.f32.mrb[0].mxu0
        %v836 = vadd.f32 0.0, %v835
        %837 = vmatprep.mubr.f32.mxu0 0.0
        %838 = vmatmul.mubr.f32.gmra.mrb[0].mxu0 %v700
        %v839 = vpop.f32.mrb[0].mxu0
        %v840 = vadd.f32 0.0, %v839
        %v841 = vpop.f32.mrb[0].mxu0
        %v842 = vadd.f32 0.0, %v841
        %843 = vmatprep.mubr.f32.mxu0 0.0
        %844 = vmatmul.mubr.f32.gmra.mrb[0].mxu0 %v703
        %v845 = vpop.f32.mrb[0].mxu0
        %v846 = vadd.f32 0.0, %v845
        %v847 = vpop.f32.mrb[0].mxu0
        %v848 = vadd.f32 0.0, %v847
        %849 = vmatprep.mubr.f32.mxu0 0.0
        %850 = vmatmul.mubr.f32.gmra.mrb[0].mxu0 %v706
        %v851 = vpop.f32.mrb[0].mxu0
        %v852 = vadd.f32 0.0, %v851
        %v853 = vpop.f32.mrb[0].mxu0
        %v854 = vadd.f32 0.0, %v853
        %855 = vmatprep.mubr.f32.mxu0 0.0
        %856 = vmatmul.mubr.f32.gmra.mrb[0].mxu0 %v709
        %v857 = vpop.f32.mrb[0].mxu0
        %v858 = vadd.f32 0.0, %v857
        %v859 = vpop.f32.mrb[0].mxu0
        %v860 = vadd.f32 0.0, %v859
        %861 = vmatprep.mubr.f32.mxu0 0.0
        %862 = vmatmul.mubr.f32.gmra.mrb[0].mxu0 %v712
        %v863 = vpop.f32.mrb[0].mxu0
        %v864 = vadd.f32 0.0, %v863
        %v865 = vpop.f32.mrb[0].mxu0
        %v866 = vadd.f32 0.0, %v865
        %867 = vmatprep.mubr.f32.mxu0 0.0
        %868 = vmatmul.mubr.f32.gmra.mrb[0].mxu0 %v715
        %v869 = vpop.f32.mrb[0].mxu0
        %v870 = vadd.f32 0.0, %v869
        %v871 = vpop.f32.mrb[0].mxu0
        %v872 = vadd.f32 0.0, %v871
        %873 = vmatprep.mubr.f32.mxu0 0.0
        %874 = vmatmul.mubr.f32.gmra.mrb[0].mxu0 %v718
        %v875 = vpop.f32.mrb[0].mxu0
        %v876 = vadd.f32 0.0, %v875
        %v877 = vpop.f32.mrb[0].mxu0
        %v878 = vadd.f32 0.0, %v877
        %879 = vmatprep.mubr.f32.mxu0 0.0
        %880 = vmatmul.mubr.f32.gmra.mrb[0].mxu0 %v721
        %v881 = vpop.f32.mrb[0].mxu0
        %v882 = vadd.f32 0.0, %v881
        %v883 = vpop.f32.mrb[0].mxu0
        %v884 = vadd.f32 0.0, %v883
        %885 = vmatprep.mubr.f32.mxu0 0.0
        %886 = vmatmul.mubr.f32.gmra.mrb[0].mxu0 %v724
        %v887 = vpop.f32.mrb[0].mxu0
        %v888 = vadd.f32 0.0, %v887
        %v889 = vpop.f32.mrb[0].mxu0
        %v890 = vadd.f32 0.0, %v889
        %891 = vmatprep.mubr.f32.mxu0 0.0
        %892 = vmatmul.mubr.f32.gmra.mrb[0].mxu0 %v727
        %v893 = vpop.f32.mrb[0].mxu0
        %v894 = vadd.f32 0.0, %v893
        %v895 = vpop.f32.mrb[0].mxu0
        %v896 = vadd.f32 0.0, %v895
        %897 = vmatprep.mubr.f32.mxu0 0.0
        %898 = vmatmul.mubr.f32.gmra.mrb[0].mxu0 %v730
        %v899 = vpop.f32.mrb[0].mxu0
        %v900 = vadd.f32 0.0, %v899
        %v901 = vpop.f32.mrb[0].mxu0
        %v902 = vadd.f32 0.0, %v901
        %903 = vmatprep.mubr.f32.mxu0 0.0
        %904 = vmatmul.mubr.f32.gmra.mrb[0].mxu0 %v733
        %v905 = vpop.f32.mrb[0].mxu0
        %v906 = vadd.f32 0.0, %v905
        %v907 = vpop.f32.mrb[0].mxu0
        %v908 = vadd.f32 0.0, %v907
        %909 = vmatprep.mubr.f32.mxu0 0.0
        %910 = vmatmul.mubr.f32.gmra.mrb[0].mxu0 %v736
        %v911 = vpop.f32.mrb[0].mxu0
        %v912 = vadd.f32 0.0, %v911
        %v913 = vpop.f32.mrb[0].mxu0
        %v914 = vadd.f32 0.0, %v913
        %915 = vdwg.mxu0
        %916 = vmatprep.subr.mxu0 %v745
        %917 = vmatpush1.msra.mxu0 %v743
        %918 = vmatprep.subr.mxu0 0.0
        %919 = vmatpush1.msra.mxu0 0.0
        %920 = vmatprep.subr.mxu0 0.0
        %921 = vmatpush1.msra.mxu0 0.0
        %922 = vmatprep.subr.mxu0 0.0
        %923 = vmatpush1.msra.mxu0 0.0
        %924 = vmatprep.subr.mxu0 0.0
        %925 = vmatpush1.msra.mxu0 0.0
        %926 = vmatprep.subr.mxu0 0.0
        %927 = vmatpush1.msra.mxu0 0.0
        %928 = vmatprep.subr.mxu0 0.0
        %929 = vmatpush1.msra.mxu0 0.0
        %930 = vmatprep.subr.mxu0 0.0
        %931 = vmatpush1.msra.mxu0 0.0
        %932 = vmatprep.subr.mxu0 0.0
        %933 = vmatpush1.msra.mxu0 0.0
        %934 = vmatprep.subr.mxu0 0.0
        %935 = vmatpush1.msra.mxu0 0.0
        %936 = vmatprep.subr.mxu0 0.0
        %937 = vmatpush1.msra.mxu0 0.0
        %938 = vmatprep.subr.mxu0 0.0
        %939 = vmatpush1.msra.mxu0 0.0
        %940 = vmatprep.subr.mxu0 0.0
        %941 = vmatpush1.msra.mxu0 0.0
        %942 = vmatprep.subr.mxu0 0.0
        %943 = vmatpush1.msra.mxu0 0.0
        %944 = vmatprep.subr.mxu0 0.0
        %945 = vmatpush1.msra.mxu0 0.0
        %946 = vmatprep.subr.mxu0 0.0
        %947 = vmatpush1.msra.mxu0 0.0
        %948 = vmatprep.subr.mxu0 0.0
        %949 = vmatpush1.msra.mxu0 0.0
        %950 = vmatprep.subr.mxu0 0.0
        %951 = vmatpush1.msra.mxu0 0.0
        %952 = vmatprep.subr.mxu0 0.0
        %953 = vmatpush1.msra.mxu0 0.0
        %954 = vmatprep.subr.mxu0 0.0
        %955 = vmatpush1.msra.mxu0 0.0
        %956 = vmatprep.subr.mxu0 0.0
        %957 = vmatpush1.msra.mxu0 0.0
        %958 = vmatprep.subr.mxu0 0.0
        %959 = vmatpush1.msra.mxu0 0.0
        %960 = vmatprep.subr.mxu0 0.0
        %961 = vmatpush1.msra.mxu0 0.0
        %962 = vmatprep.subr.mxu0 0.0
        %963 = vmatpush1.msra.mxu0 0.0
        %964 = vmatprep.subr.mxu0 0.0
        %965 = vmatpush1.msra.mxu0 0.0
        %966 = vmatprep.subr.mxu0 0.0
        %967 = vmatpush1.msra.mxu0 0.0
        %968 = vmatprep.subr.mxu0 0.0
        %969 = vmatpush1.msra.mxu0 0.0
        %970 = vmatprep.subr.mxu0 0.0
        %971 = vmatpush1.msra.mxu0 0.0
        %972 = vmatprep.subr.mxu0 0.0
        %973 = vmatpush1.msra.mxu0 0.0
        %974 = vmatprep.subr.mxu0 0.0
        %975 = vmatpush1.msra.mxu0 0.0
        %976 = vmatprep.subr.mxu0 0.0
        %977 = vmatpush1.msra.mxu0 0.0
        %978 = vmatprep.subr.mxu0 0.0
        %979 = vmatpush1.msra.mxu0 0.0
        %980 = vmatprep.mubr.f32.mxu0 0.0
        %981 = vmatmul.mubr.f32.gmra.mrb[0].mxu0 %v691
        %v982 = vpop.f32.mrb[0].mxu0
        %v983 = vadd.f32 0.0, %v982
        %v984 = vpop.f32.mrb[0].mxu0
        %v985 = vadd.f32 0.0, %v984
        %986 = vmatprep.mubr.f32.mxu0 0.0
        %987 = vmatmul.mubr.f32.gmra.mrb[0].mxu0 %v694
        %v988 = vpop.f32.mrb[0].mxu0
        %v989 = vadd.f32 0.0, %v988
        %v990 = vpop.f32.mrb[0].mxu0
        %v991 = vadd.f32 0.0, %v990
        %992 = vmatprep.mubr.f32.mxu0 0.0
        %993 = vmatmul.mubr.f32.gmra.mrb[0].mxu0 %v697
        %v994 = vpop.f32.mrb[0].mxu0
        %v995 = vadd.f32 0.0, %v994
        %v996 = vpop.f32.mrb[0].mxu0
        %v997 = vadd.f32 0.0, %v996
        %998 = vmatprep.mubr.f32.mxu0 0.0
        %999 = vmatmul.mubr.f32.gmra.mrb[0].mxu0 %v700
        %v1000 = vpop.f32.mrb[0].mxu0
        %v1001 = vadd.f32 0.0, %v1000
        %v1002 = vpop.f32.mrb[0].mxu0
        %v1003 = vadd.f32 0.0, %v1002
        %1004 = vmatprep.mubr.f32.mxu0 0.0
        %1005 = vmatmul.mubr.f32.gmra.mrb[0].mxu0 %v703
        %v1006 = vpop.f32.mrb[0].mxu0
        %v1007 = vadd.f32 0.0, %v1006
        %v1008 = vpop.f32.mrb[0].mxu0
        %v1009 = vadd.f32 0.0, %v1008
        %1010 = vmatprep.mubr.f32.mxu0 0.0
        %1011 = vmatmul.mubr.f32.gmra.mrb[0].mxu0 %v706
        %v1012 = vpop.f32.mrb[0].mxu0
        %v1013 = vadd.f32 0.0, %v1012
        %v1014 = vpop.f32.mrb[0].mxu0
        %v1015 = vadd.f32 0.0, %v1014
        %1016 = vmatprep.mubr.f32.mxu0 0.0
        %1017 = vmatmul.mubr.f32.gmra.mrb[0].mxu0 %v709
        %v1018 = vpop.f32.mrb[0].mxu0
        %v1019 = vadd.f32 0.0, %v1018
        %v1020 = vpop.f32.mrb[0].mxu0
        %v1021 = vadd.f32 0.0, %v1020
        %1022 = vmatprep.mubr.f32.mxu0 0.0
        %1023 = vmatmul.mubr.f32.gmra.mrb[0].mxu0 %v712
        %v1024 = vpop.f32.mrb[0].mxu0
        %v1025 = vadd.f32 0.0, %v1024
        %v1026 = vpop.f32.mrb[0].mxu0
        %v1027 = vadd.f32 0.0, %v1026
        %1028 = vmatprep.mubr.f32.mxu0 0.0
        %1029 = vmatmul.mubr.f32.gmra.mrb[0].mxu0 %v715
        %v1030 = vpop.f32.mrb[0].mxu0
        %v1031 = vadd.f32 0.0, %v1030
        %v1032 = vpop.f32.mrb[0].mxu0
        %v1033 = vadd.f32 0.0, %v1032
        %1034 = vmatprep.mubr.f32.mxu0 0.0
        %1035 = vmatmul.mubr.f32.gmra.mrb[0].mxu0 %v718
        %v1036 = vpop.f32.mrb[0].mxu0
        %v1037 = vadd.f32 0.0, %v1036
        %v1038 = vpop.f32.mrb[0].mxu0
        %v1039 = vadd.f32 0.0, %v1038
        %1040 = vmatprep.mubr.f32.mxu0 0.0
        %1041 = vmatmul.mubr.f32.gmra.mrb[0].mxu0 %v721
        %v1042 = vpop.f32.mrb[0].mxu0
        %v1043 = vadd.f32 0.0, %v1042
        %v1044 = vpop.f32.mrb[0].mxu0
        %v1045 = vadd.f32 0.0, %v1044
        %1046 = vmatprep.mubr.f32.mxu0 0.0
        %1047 = vmatmul.mubr.f32.gmra.mrb[0].mxu0 %v724
        %v1048 = vpop.f32.mrb[0].mxu0
        %v1049 = vadd.f32 0.0, %v1048
        %v1050 = vpop.f32.mrb[0].mxu0
        %v1051 = vadd.f32 0.0, %v1050
        %1052 = vmatprep.mubr.f32.mxu0 0.0
        %1053 = vmatmul.mubr.f32.gmra.mrb[0].mxu0 %v727
        %v1054 = vpop.f32.mrb[0].mxu0
        %v1055 = vadd.f32 0.0, %v1054
        %v1056 = vpop.f32.mrb[0].mxu0
        %v1057 = vadd.f32 0.0, %v1056
        %1058 = vmatprep.mubr.f32.mxu0 0.0
        %1059 = vmatmul.mubr.f32.gmra.mrb[0].mxu0 %v730
        %v1060 = vpop.f32.mrb[0].mxu0
        %v1061 = vadd.f32 0.0, %v1060
        %v1062 = vpop.f32.mrb[0].mxu0
        %v1063 = vadd.f32 0.0, %v1062
        %1064 = vmatprep.mubr.f32.mxu0 0.0
        %1065 = vmatmul.mubr.f32.gmra.mrb[0].mxu0 %v733
        %v1066 = vpop.f32.mrb[0].mxu0
        %v1067 = vadd.f32 0.0, %v1066
        %v1068 = vpop.f32.mrb[0].mxu0
        %v1069 = vadd.f32 0.0, %v1068
        %1070 = vmatprep.mubr.f32.mxu0 0.0
        %1071 = vmatmul.mubr.f32.gmra.mrb[0].mxu0 %v736
        %v1072 = vpop.f32.mrb[0].mxu0
        %v1073 = vadd.f32 0.0, %v1072
        %v1074 = vpop.f32.mrb[0].mxu0
        %v1075 = vadd.f32 0.0, %v1074
        %1076 = vdwg.mxu0
        %1077 = vmatprep.subr.mxu0 %v749
        %1078 = vmatpush1.msra.mxu0 %v747
        %1079 = vmatprep.subr.mxu0 0.0
        %1080 = vmatpush1.msra.mxu0 0.0
        %1081 = vmatprep.subr.mxu0 0.0
        %1082 = vmatpush1.msra.mxu0 0.0
        %1083 = vmatprep.subr.mxu0 0.0
        %1084 = vmatpush1.msra.mxu0 0.0
        %1085 = vmatprep.subr.mxu0 0.0
        %1086 = vmatpush1.msra.mxu0 0.0
        %1087 = vmatprep.subr.mxu0 0.0
        %1088 = vmatpush1.msra.mxu0 0.0
        %1089 = vmatprep.subr.mxu0 0.0
        %1090 = vmatpush1.msra.mxu0 0.0
        %1091 = vmatprep.subr.mxu0 0.0
        %1092 = vmatpush1.msra.mxu0 0.0
        %1093 = vmatprep.subr.mxu0 0.0
        %1094 = vmatpush1.msra.mxu0 0.0
        %1095 = vmatprep.subr.mxu0 0.0
        %1096 = vmatpush1.msra.mxu0 0.0
        %1097 = vmatprep.subr.mxu0 0.0
        %1098 = vmatpush1.msra.mxu0 0.0
        %1099 = vmatprep.subr.mxu0 0.0
        %1100 = vmatpush1.msra.mxu0 0.0
        %1101 = vmatprep.subr.mxu0 0.0
        %1102 = vmatpush1.msra.mxu0 0.0
        %1103 = vmatprep.subr.mxu0 0.0
        %1104 = vmatpush1.msra.mxu0 0.0
        %1105 = vmatprep.subr.mxu0 0.0
        %1106 = vmatpush1.msra.mxu0 0.0
        %1107 = vmatprep.subr.mxu0 0.0
        %1108 = vmatpush1.msra.mxu0 0.0
        %1109 = vmatprep.subr.mxu0 0.0
        %1110 = vmatpush1.msra.mxu0 0.0
        %1111 = vmatprep.subr.mxu0 0.0
        %1112 = vmatpush1.msra.mxu0 0.0
        %1113 = vmatprep.subr.mxu0 0.0
        %1114 = vmatpush1.msra.mxu0 0.0
        %1115 = vmatprep.subr.mxu0 0.0
        %1116 = vmatpush1.msra.mxu0 0.0
        %1117 = vmatprep.subr.mxu0 0.0
        %1118 = vmatpush1.msra.mxu0 0.0
        %1119 = vmatprep.subr.mxu0 0.0
        %1120 = vmatpush1.msra.mxu0 0.0
        %1121 = vmatprep.subr.mxu0 0.0
        %1122 = vmatpush1.msra.mxu0 0.0
        %1123 = vmatprep.subr.mxu0 0.0
        %1124 = vmatpush1.msra.mxu0 0.0
        %1125 = vmatprep.subr.mxu0 0.0
        %1126 = vmatpush1.msra.mxu0 0.0
        %1127 = vmatprep.subr.mxu0 0.0
        %1128 = vmatpush1.msra.mxu0 0.0
        %1129 = vmatprep.subr.mxu0 0.0
        %1130 = vmatpush1.msra.mxu0 0.0
        %1131 = vmatprep.subr.mxu0 0.0
        %1132 = vmatpush1.msra.mxu0 0.0
        %1133 = vmatprep.subr.mxu0 0.0
        %1134 = vmatpush1.msra.mxu0 0.0
        %1135 = vmatprep.subr.mxu0 0.0
        %1136 = vmatpush1.msra.mxu0 0.0
        %1137 = vmatprep.subr.mxu0 0.0
        %1138 = vmatpush1.msra.mxu0 0.0
        %1139 = vmatprep.subr.mxu0 0.0
        %1140 = vmatpush1.msra.mxu0 0.0
        %1141 = vmatprep.mubr.f32.mxu0 0.0
        %1142 = vmatmul.mubr.f32.gmra.mrb[0].mxu0 %v691
        %v1143 = vpop.f32.mrb[0].mxu0
        %v1144 = vadd.f32 0.0, %v1143
        %v1145 = vpop.f32.mrb[0].mxu0
        %v1146 = vadd.f32 0.0, %v1145
        %1147 = vmatprep.mubr.f32.mxu0 0.0
        %1148 = vmatmul.mubr.f32.gmra.mrb[0].mxu0 %v694
        %v1149 = vpop.f32.mrb[0].mxu0
        %v1150 = vadd.f32 0.0, %v1149
        %v1151 = vpop.f32.mrb[0].mxu0
        %v1152 = vadd.f32 0.0, %v1151
        %1153 = vmatprep.mubr.f32.mxu0 0.0
        %1154 = vmatmul.mubr.f32.gmra.mrb[0].mxu0 %v697
        %v1155 = vpop.f32.mrb[0].mxu0
        %v1156 = vadd.f32 0.0, %v1155
        %v1157 = vpop.f32.mrb[0].mxu0
        %v1158 = vadd.f32 0.0, %v1157
        %1159 = vmatprep.mubr.f32.mxu0 0.0
        %1160 = vmatmul.mubr.f32.gmra.mrb[0].mxu0 %v700
        %v1161 = vpop.f32.mrb[0].mxu0
        %v1162 = vadd.f32 0.0, %v1161
        %v1163 = vpop.f32.mrb[0].mxu0
        %v1164 = vadd.f32 0.0, %v1163
        %1165 = vmatprep.mubr.f32.mxu0 0.0
        %1166 = vmatmul.mubr.f32.gmra.mrb[0].mxu0 %v703
        %v1167 = vpop.f32.mrb[0].mxu0
        %v1168 = vadd.f32 0.0, %v1167
        %v1169 = vpop.f32.mrb[0].mxu0
        %v1170 = vadd.f32 0.0, %v1169
        %1171 = vmatprep.mubr.f32.mxu0 0.0
        %1172 = vmatmul.mubr.f32.gmra.mrb[0].mxu0 %v706
        %v1173 = vpop.f32.mrb[0].mxu0
        %v1174 = vadd.f32 0.0, %v1173
        %v1175 = vpop.f32.mrb[0].mxu0
        %v1176 = vadd.f32 0.0, %v1175
        %1177 = vmatprep.mubr.f32.mxu0 0.0
        %1178 = vmatmul.mubr.f32.gmra.mrb[0].mxu0 %v709
        %v1179 = vpop.f32.mrb[0].mxu0
        %v1180 = vadd.f32 0.0, %v1179
        %v1181 = vpop.f32.mrb[0].mxu0
        %v1182 = vadd.f32 0.0, %v1181
        %1183 = vmatprep.mubr.f32.mxu0 0.0
        %1184 = vmatmul.mubr.f32.gmra.mrb[0].mxu0 %v712
        %v1185 = vpop.f32.mrb[0].mxu0
        %v1186 = vadd.f32 0.0, %v1185
        %v1187 = vpop.f32.mrb[0].mxu0
        %v1188 = vadd.f32 0.0, %v1187
        %1189 = vmatprep.mubr.f32.mxu0 0.0
        %1190 = vmatmul.mubr.f32.gmra.mrb[0].mxu0 %v715
        %v1191 = vpop.f32.mrb[0].mxu0
        %v1192 = vadd.f32 0.0, %v1191
        %v1193 = vpop.f32.mrb[0].mxu0
        %v1194 = vadd.f32 0.0, %v1193
        %1195 = vmatprep.mubr.f32.mxu0 0.0
        %1196 = vmatmul.mubr.f32.gmra.mrb[0].mxu0 %v718
        %v1197 = vpop.f32.mrb[0].mxu0
        %v1198 = vadd.f32 0.0, %v1197
        %v1199 = vpop.f32.mrb[0].mxu0
        %v1200 = vadd.f32 0.0, %v1199
        %1201 = vmatprep.mubr.f32.mxu0 0.0
        %1202 = vmatmul.mubr.f32.gmra.mrb[0].mxu0 %v721
        %v1203 = vpop.f32.mrb[0].mxu0
        %v1204 = vadd.f32 0.0, %v1203
        %v1205 = vpop.f32.mrb[0].mxu0
        %v1206 = vadd.f32 0.0, %v1205
        %1207 = vmatprep.mubr.f32.mxu0 0.0
        %1208 = vmatmul.mubr.f32.gmra.mrb[0].mxu0 %v724
        %v1209 = vpop.f32.mrb[0].mxu0
        %v1210 = vadd.f32 0.0, %v1209
        %v1211 = vpop.f32.mrb[0].mxu0
        %v1212 = vadd.f32 0.0, %v1211
        %1213 = vmatprep.mubr.f32.mxu0 0.0
        %1214 = vmatmul.mubr.f32.gmra.mrb[0].mxu0 %v727
        %v1215 = vpop.f32.mrb[0].mxu0
        %v1216 = vadd.f32 0.0, %v1215
        %v1217 = vpop.f32.mrb[0].mxu0
        %v1218 = vadd.f32 0.0, %v1217
        %1219 = vmatprep.mubr.f32.mxu0 0.0
        %1220 = vmatmul.mubr.f32.gmra.mrb[0].mxu0 %v730
        %v1221 = vpop.f32.mrb[0].mxu0
        %v1222 = vadd.f32 0.0, %v1221
        %v1223 = vpop.f32.mrb[0].mxu0
        %v1224 = vadd.f32 0.0, %v1223
        %1225 = vmatprep.mubr.f32.mxu0 0.0
        %1226 = vmatmul.mubr.f32.gmra.mrb[0].mxu0 %v733
        %v1227 = vpop.f32.mrb[0].mxu0
        %v1228 = vadd.f32 0.0, %v1227
        %v1229 = vpop.f32.mrb[0].mxu0
        %v1230 = vadd.f32 0.0, %v1229
        %1231 = vmatprep.mubr.f32.mxu0 0.0
        %1232 = vmatmul.mubr.f32.gmra.mrb[0].mxu0 %v736
        %v1233 = vpop.f32.mrb[0].mxu0
        %v1234 = vadd.f32 0.0, %v1233
        %v1235 = vpop.f32.mrb[0].mxu0
        %v1236 = vadd.f32 0.0, %v1235
        %1237 = vdwg.mxu0
        %1238 = vmatprep.subr.mxu0 %v753
        %1239 = vmatpush1.msra.mxu0 %v751
        %1240 = vmatprep.subr.mxu0 0.0
        %1241 = vmatpush1.msra.mxu0 0.0
        %1242 = vmatprep.subr.mxu0 0.0
        %1243 = vmatpush1.msra.mxu0 0.0
        %1244 = vmatprep.subr.mxu0 0.0
        %1245 = vmatpush1.msra.mxu0 0.0
        %1246 = vmatprep.subr.mxu0 0.0
        %1247 = vmatpush1.msra.mxu0 0.0
        %1248 = vmatprep.subr.mxu0 0.0
        %1249 = vmatpush1.msra.mxu0 0.0
        %1250 = vmatprep.subr.mxu0 0.0
        %1251 = vmatpush1.msra.mxu0 0.0
        %1252 = vmatprep.subr.mxu0 0.0
        %1253 = vmatpush1.msra.mxu0 0.0
        %1254 = vmatprep.subr.mxu0 0.0
        %1255 = vmatpush1.msra.mxu0 0.0
        %1256 = vmatprep.subr.mxu0 0.0
        %1257 = vmatpush1.msra.mxu0 0.0
        %1258 = vmatprep.subr.mxu0 0.0
        %1259 = vmatpush1.msra.mxu0 0.0
        %1260 = vmatprep.subr.mxu0 0.0
        %1261 = vmatpush1.msra.mxu0 0.0
        %1262 = vmatprep.subr.mxu0 0.0
        %1263 = vmatpush1.msra.mxu0 0.0
        %1264 = vmatprep.subr.mxu0 0.0
        %1265 = vmatpush1.msra.mxu0 0.0
        %1266 = vmatprep.subr.mxu0 0.0
        %1267 = vmatpush1.msra.mxu0 0.0
        %1268 = vmatprep.subr.mxu0 0.0
        %1269 = vmatpush1.msra.mxu0 0.0
        %1270 = vmatprep.subr.mxu0 0.0
        %1271 = vmatpush1.msra.mxu0 0.0
        %1272 = vmatprep.subr.mxu0 0.0
        %1273 = vmatpush1.msra.mxu0 0.0
        %1274 = vmatprep.subr.mxu0 0.0
        %1275 = vmatpush1.msra.mxu0 0.0
        %1276 = vmatprep.subr.mxu0 0.0
        %1277 = vmatpush1.msra.mxu0 0.0
        %1278 = vmatprep.subr.mxu0 0.0
        %1279 = vmatpush1.msra.mxu0 0.0
        %1280 = vmatprep.subr.mxu0 0.0
        %1281 = vmatpush1.msra.mxu0 0.0
        %1282 = vmatprep.subr.mxu0 0.0
        %1283 = vmatpush1.msra.mxu0 0.0
        %1284 = vmatprep.subr.mxu0 0.0
        %1285 = vmatpush1.msra.mxu0 0.0
        %1286 = vmatprep.subr.mxu0 0.0
        %1287 = vmatpush1.msra.mxu0 0.0
        %1288 = vmatprep.subr.mxu0 0.0
        %1289 = vmatpush1.msra.mxu0 0.0
        %1290 = vmatprep.subr.mxu0 0.0
        %1291 = vmatpush1.msra.mxu0 0.0
        %1292 = vmatprep.subr.mxu0 0.0
        %1293 = vmatpush1.msra.mxu0 0.0
        %1294 = vmatprep.subr.mxu0 0.0
        %1295 = vmatpush1.msra.mxu0 0.0
        %1296 = vmatprep.subr.mxu0 0.0
        %1297 = vmatpush1.msra.mxu0 0.0
        %1298 = vmatprep.subr.mxu0 0.0
        %1299 = vmatpush1.msra.mxu0 0.0
        %1300 = vmatprep.subr.mxu0 0.0
        %1301 = vmatpush1.msra.mxu0 0.0
        %1302 = vmatprep.mubr.f32.mxu0 0.0
        %1303 = vmatmul.mubr.f32.gmra.mrb[0].mxu0 %v691
        %v1304 = vpop.f32.mrb[0].mxu0
        %v1305 = vadd.f32 0.0, %v1304
        %v1306 = vpop.f32.mrb[0].mxu0
        %v1307 = vadd.f32 0.0, %v1306
        %1308 = vmatprep.mubr.f32.mxu0 0.0
        %1309 = vmatmul.mubr.f32.gmra.mrb[0].mxu0 %v694
        %v1310 = vpop.f32.mrb[0].mxu0
        %v1311 = vadd.f32 0.0, %v1310
        %v1312 = vpop.f32.mrb[0].mxu0
        %v1313 = vadd.f32 0.0, %v1312
        %1314 = vmatprep.mubr.f32.mxu0 0.0
        %1315 = vmatmul.mubr.f32.gmra.mrb[0].mxu0 %v697
        %v1316 = vpop.f32.mrb[0].mxu0
        %v1317 = vadd.f32 0.0, %v1316
        %v1318 = vpop.f32.mrb[0].mxu0
        %v1319 = vadd.f32 0.0, %v1318
        %1320 = vmatprep.mubr.f32.mxu0 0.0
        %1321 = vmatmul.mubr.f32.gmra.mrb[0].mxu0 %v700
        %v1322 = vpop.f32.mrb[0].mxu0
        %v1323 = vadd.f32 0.0, %v1322
        %v1324 = vpop.f32.mrb[0].mxu0
        %v1325 = vadd.f32 0.0, %v1324
        %1326 = vmatprep.mubr.f32.mxu0 0.0
        %1327 = vmatmul.mubr.f32.gmra.mrb[0].mxu0 %v703
        %v1328 = vpop.f32.mrb[0].mxu0
        %v1329 = vadd.f32 0.0, %v1328
        %v1330 = vpop.f32.mrb[0].mxu0
        %v1331 = vadd.f32 0.0, %v1330
        %1332 = vmatprep.mubr.f32.mxu0 0.0
        %1333 = vmatmul.mubr.f32.gmra.mrb[0].mxu0 %v706
        %v1334 = vpop.f32.mrb[0].mxu0
        %v1335 = vadd.f32 0.0, %v1334
        %v1336 = vpop.f32.mrb[0].mxu0
        %v1337 = vadd.f32 0.0, %v1336
        %1338 = vmatprep.mubr.f32.mxu0 0.0
        %1339 = vmatmul.mubr.f32.gmra.mrb[0].mxu0 %v709
        %v1340 = vpop.f32.mrb[0].mxu0
        %v1341 = vadd.f32 0.0, %v1340
        %v1342 = vpop.f32.mrb[0].mxu0
        %v1343 = vadd.f32 0.0, %v1342
        %1344 = vmatprep.mubr.f32.mxu0 0.0
        %1345 = vmatmul.mubr.f32.gmra.mrb[0].mxu0 %v712
        %v1346 = vpop.f32.mrb[0].mxu0
        %v1347 = vadd.f32 0.0, %v1346
        %v1348 = vpop.f32.mrb[0].mxu0
        %v1349 = vadd.f32 0.0, %v1348
        %1350 = vmatprep.mubr.f32.mxu0 0.0
        %1351 = vmatmul.mubr.f32.gmra.mrb[0].mxu0 %v715
        %v1352 = vpop.f32.mrb[0].mxu0
        %v1353 = vadd.f32 0.0, %v1352
        %v1354 = vpop.f32.mrb[0].mxu0
        %v1355 = vadd.f32 0.0, %v1354
        %1356 = vmatprep.mubr.f32.mxu0 0.0
        %1357 = vmatmul.mubr.f32.gmra.mrb[0].mxu0 %v718
        %v1358 = vpop.f32.mrb[0].mxu0
        %v1359 = vadd.f32 0.0, %v1358
        %v1360 = vpop.f32.mrb[0].mxu0
        %v1361 = vadd.f32 0.0, %v1360
        %1362 = vmatprep.mubr.f32.mxu0 0.0
        %1363 = vmatmul.mubr.f32.gmra.mrb[0].mxu0 %v721
        %v1364 = vpop.f32.mrb[0].mxu0
        %v1365 = vadd.f32 0.0, %v1364
        %v1366 = vpop.f32.mrb[0].mxu0
        %v1367 = vadd.f32 0.0, %v1366
        %1368 = vmatprep.mubr.f32.mxu0 0.0
        %1369 = vmatmul.mubr.f32.gmra.mrb[0].mxu0 %v724
        %v1370 = vpop.f32.mrb[0].mxu0
        %v1371 = vadd.f32 0.0, %v1370
        %v1372 = vpop.f32.mrb[0].mxu0
        %v1373 = vadd.f32 0.0, %v1372
        %1374 = vmatprep.mubr.f32.mxu0 0.0
        %1375 = vmatmul.mubr.f32.gmra.mrb[0].mxu0 %v727
        %v1376 = vpop.f32.mrb[0].mxu0
        %v1377 = vadd.f32 0.0, %v1376
        %v1378 = vpop.f32.mrb[0].mxu0
        %v1379 = vadd.f32 0.0, %v1378
        %1380 = vmatprep.mubr.f32.mxu0 0.0
        %1381 = vmatmul.mubr.f32.gmra.mrb[0].mxu0 %v730
        %v1382 = vpop.f32.mrb[0].mxu0
        %v1383 = vadd.f32 0.0, %v1382
        %v1384 = vpop.f32.mrb[0].mxu0
        %v1385 = vadd.f32 0.0, %v1384
        %1386 = vmatprep.mubr.f32.mxu0 0.0
        %1387 = vmatmul.mubr.f32.gmra.mrb[0].mxu0 %v733
        %v1388 = vpop.f32.mrb[0].mxu0
        %v1389 = vadd.f32 0.0, %v1388
        %v1390 = vpop.f32.mrb[0].mxu0
        %v1391 = vadd.f32 0.0, %v1390
        %1392 = vmatprep.mubr.f32.mxu0 0.0
        %1393 = vmatmul.mubr.f32.gmra.mrb[0].mxu0 %v736
        %v1394 = vpop.f32.mrb[0].mxu0
        %v1395 = vadd.f32 0.0, %v1394
        %v1396 = vpop.f32.mrb[0].mxu0
        %v1397 = vadd.f32 0.0, %v1396
        %1398 = vdwg.mxu0
        %v1399 = vmul.f32 %v822, 1.442695
        %v1400 = vpow.pop %v1399
        %v1401 = vmul.f32 %v824, 1.442695
        %v1402 = vpow.pop %v1401
        %v1403 = vmul.f32 %v983, 1.442695
        %v1404 = vpow.pop %v1403
        %v1405 = vmul.f32 %v985, 1.442695
        %v1406 = vpow.pop %v1405
        %v1407 = vmul.f32 %v1144, 1.442695
        %v1408 = vpow.pop %v1407
        %v1409 = vmul.f32 %v1146, 1.442695
        %v1410 = vpow.pop %v1409
        %v1411 = vmul.f32 %v1305, 1.442695
        %v1412 = vpow.pop %v1411
        %v1413 = vmul.f32 %v1307, 1.442695
        %v1414 = vpow.pop %v1413
        %v1415 = vmul.f32 %v828, 1.442695
        %v1416 = vpow.pop %v1415
        %v1417 = vmul.f32 %v830, 1.442695
        %v1418 = vpow.pop %v1417
        %v1419 = vmul.f32 %v989, 1.442695
        %v1420 = vpow.pop %v1419
        %v1421 = vmul.f32 %v991, 1.442695
        %v1422 = vpow.pop %v1421
        %v1423 = vmul.f32 %v1150, 1.442695
        %v1424 = vpow.pop %v1423
        %v1425 = vmul.f32 %v1152, 1.442695
        %v1426 = vpow.pop %v1425
        %v1427 = vmul.f32 %v1311, 1.442695
        %v1428 = vpow.pop %v1427
        %v1429 = vmul.f32 %v1313, 1.442695
        %v1430 = vpow.pop %v1429
        %v1431 = vmul.f32 %v834, 1.442695
        %v1432 = vpow.pop %v1431
        %v1433 = vmul.f32 %v836, 1.442695
        %v1434 = vpow.pop %v1433
        %v1435 = vmul.f32 %v995, 1.442695
        %v1436 = vpow.pop %v1435
        %v1437 = vmul.f32 %v997, 1.442695
        %v1438 = vpow.pop %v1437
        %v1439 = vmul.f32 %v1156, 1.442695
        %v1440 = vpow.pop %v1439
        %v1441 = vmul.f32 %v1158, 1.442695
        %v1442 = vpow.pop %v1441
        %v1443 = vmul.f32 %v1317, 1.442695
        %v1444 = vpow.pop %v1443
        %v1445 = vmul.f32 %v1319, 1.442695
        %v1446 = vpow.pop %v1445
        %v1447 = vmul.f32 %v840, 1.442695
        %v1448 = vpow.pop %v1447
        %v1449 = vmul.f32 %v842, 1.442695
        %v1450 = vpow.pop %v1449
        %v1451 = vmul.f32 %v1001, 1.442695
        %v1452 = vpow.pop %v1451
        %v1453 = vmul.f32 %v1003, 1.442695
        %v1454 = vpow.pop %v1453
        %v1455 = vmul.f32 %v1162, 1.442695
        %v1456 = vpow.pop %v1455
        %v1457 = vmul.f32 %v1164, 1.442695
        %v1458 = vpow.pop %v1457
        %v1459 = vmul.f32 %v1323, 1.442695
        %v1460 = vpow.pop %v1459
        %v1461 = vmul.f32 %v1325, 1.442695
        %v1462 = vpow.pop %v1461
        %v1463 = vmul.f32 %v846, 1.442695
        %v1464 = vpow.pop %v1463
        %v1465 = vmul.f32 %v848, 1.442695
        %v1466 = vpow.pop %v1465
        %v1467 = vmul.f32 %v1007, 1.442695
        %v1468 = vpow.pop %v1467
        %v1469 = vmul.f32 %v1009, 1.442695
        %v1470 = vpow.pop %v1469
        %v1471 = vmul.f32 %v1168, 1.442695
        %v1472 = vpow.pop %v1471
        %v1473 = vmul.f32 %v1170, 1.442695
        %v1474 = vpow.pop %v1473
        %v1475 = vmul.f32 %v1329, 1.442695
        %v1476 = vpow.pop %v1475
        %v1477 = vmul.f32 %v1331, 1.442695
        %v1478 = vpow.pop %v1477
        %v1479 = vmul.f32 %v852, 1.442695
        %v1480 = vpow.pop %v1479
        %v1481 = vmul.f32 %v854, 1.442695
        %v1482 = vpow.pop %v1481
        %v1483 = vmul.f32 %v1013, 1.442695
        %v1484 = vpow.pop %v1483
        %v1485 = vmul.f32 %v1015, 1.442695
        %v1486 = vpow.pop %v1485
        %v1487 = vmul.f32 %v1174, 1.442695
        %v1488 = vpow.pop %v1487
        %v1489 = vmul.f32 %v1176, 1.442695
        %v1490 = vpow.pop %v1489
        %v1491 = vmul.f32 %v1335, 1.442695
        %v1492 = vpow.pop %v1491
        %v1493 = vmul.f32 %v1337, 1.442695
        %v1494 = vpow.pop %v1493
        %v1495 = vmul.f32 %v858, 1.442695
        %v1496 = vpow.pop %v1495
        %v1497 = vmul.f32 %v860, 1.442695
        %v1498 = vpow.pop %v1497
        %v1499 = vmul.f32 %v1019, 1.442695
        %v1500 = vpow.pop %v1499
        %v1501 = vmul.f32 %v1021, 1.442695
        %v1502 = vpow.pop %v1501
        %v1503 = vmul.f32 %v1180, 1.442695
        %v1504 = vpow.pop %v1503
        %v1505 = vmul.f32 %v1182, 1.442695
        %v1506 = vpow.pop %v1505
        %v1507 = vmul.f32 %v1341, 1.442695
        %v1508 = vpow.pop %v1507
        %v1509 = vmul.f32 %v1343, 1.442695
        %v1510 = vpow.pop %v1509
        %v1511 = vmul.f32 %v864, 1.442695
        %v1512 = vpow.pop %v1511
        %v1513 = vmul.f32 %v866, 1.442695
        %v1514 = vpow.pop %v1513
        %v1515 = vmul.f32 %v1025, 1.442695
        %v1516 = vpow.pop %v1515
        %v1517 = vmul.f32 %v1027, 1.442695
        %v1518 = vpow.pop %v1517
        %v1519 = vmul.f32 %v1186, 1.442695
        %v1520 = vpow.pop %v1519
        %v1521 = vmul.f32 %v1188, 1.442695
        %v1522 = vpow.pop %v1521
        %v1523 = vmul.f32 %v1347, 1.442695
        %v1524 = vpow.pop %v1523
        %v1525 = vmul.f32 %v1349, 1.442695
        %v1526 = vpow.pop %v1525
        %v1527 = vmul.f32 %v870, 1.442695
        %v1528 = vpow.pop %v1527
        %v1529 = vmul.f32 %v872, 1.442695
        %v1530 = vpow.pop %v1529
        %v1531 = vmul.f32 %v1031, 1.442695
        %v1532 = vpow.pop %v1531
        %v1533 = vmul.f32 %v1033, 1.442695
        %v1534 = vpow.pop %v1533
        %v1535 = vmul.f32 %v1192, 1.442695
        %v1536 = vpow.pop %v1535
        %v1537 = vmul.f32 %v1194, 1.442695
        %v1538 = vpow.pop %v1537
        %v1539 = vmul.f32 %v1353, 1.442695
        %v1540 = vpow.pop %v1539
        %v1541 = vmul.f32 %v1355, 1.442695
        %v1542 = vpow.pop %v1541
        %v1543 = vmul.f32 %v876, 1.442695
        %v1544 = vpow.pop %v1543
        %v1545 = vmul.f32 %v878, 1.442695
        %v1546 = vpow.pop %v1545
        %v1547 = vmul.f32 %v1037, 1.442695
        %v1548 = vpow.pop %v1547
        %v1549 = vmul.f32 %v1039, 1.442695
        %v1550 = vpow.pop %v1549
        %v1551 = vmul.f32 %v1198, 1.442695
        %v1552 = vpow.pop %v1551
        %v1553 = vmul.f32 %v1200, 1.442695
        %v1554 = vpow.pop %v1553
        %v1555 = vmul.f32 %v1359, 1.442695
        %v1556 = vpow.pop %v1555
        %v1557 = vmul.f32 %v1361, 1.442695
        %v1558 = vpow.pop %v1557
        %v1559 = vmul.f32 %v882, 1.442695
        %v1560 = vpow.pop %v1559
        %v1561 = vmul.f32 %v884, 1.442695
        %v1562 = vpow.pop %v1561
        %v1563 = vmul.f32 %v1043, 1.442695
        %v1564 = vpow.pop %v1563
        %v1565 = vmul.f32 %v1045, 1.442695
        %v1566 = vpow.pop %v1565
        %v1567 = vmul.f32 %v1204, 1.442695
        %v1568 = vpow.pop %v1567
        %v1569 = vmul.f32 %v1206, 1.442695
        %v1570 = vpow.pop %v1569
        %v1571 = vmul.f32 %v1365, 1.442695
        %v1572 = vpow.pop %v1571
        %v1573 = vmul.f32 %v1367, 1.442695
        %v1574 = vpow.pop %v1573
        %v1575 = vmul.f32 %v888, 1.442695
        %v1576 = vpow.pop %v1575
        %v1577 = vmul.f32 %v890, 1.442695
        %v1578 = vpow.pop %v1577
        %v1579 = vmul.f32 %v1049, 1.442695
        %v1580 = vpow.pop %v1579
        %v1581 = vmul.f32 %v1051, 1.442695
        %v1582 = vpow.pop %v1581
        %v1583 = vmul.f32 %v1210, 1.442695
        %v1584 = vpow.pop %v1583
        %v1585 = vmul.f32 %v1212, 1.442695
        %v1586 = vpow.pop %v1585
        %v1587 = vmul.f32 %v1371, 1.442695
        %v1588 = vpow.pop %v1587
        %v1589 = vmul.f32 %v1373, 1.442695
        %v1590 = vpow.pop %v1589
        %v1591 = vmul.f32 %v894, 1.442695
        %v1592 = vpow.pop %v1591
        %v1593 = vmul.f32 %v896, 1.442695
        %v1594 = vpow.pop %v1593
        %v1595 = vmul.f32 %v1055, 1.442695
        %v1596 = vpow.pop %v1595
        %v1597 = vmul.f32 %v1057, 1.442695
        %v1598 = vpow.pop %v1597
        %v1599 = vmul.f32 %v1216, 1.442695
        %v1600 = vpow.pop %v1599
        %v1601 = vmul.f32 %v1218, 1.442695
        %v1602 = vpow.pop %v1601
        %v1603 = vmul.f32 %v1377, 1.442695
        %v1604 = vpow.pop %v1603
        %v1605 = vmul.f32 %v1379, 1.442695
        %v1606 = vpow.pop %v1605
        %v1607 = vmul.f32 %v900, 1.442695
        %v1608 = vpow.pop %v1607
        %v1609 = vmul.f32 %v902, 1.442695
        %v1610 = vpow.pop %v1609
        %v1611 = vmul.f32 %v1061, 1.442695
        %v1612 = vpow.pop %v1611
        %v1613 = vmul.f32 %v1063, 1.442695
        %v1614 = vpow.pop %v1613
        %v1615 = vmul.f32 %v1222, 1.442695
        %v1616 = vpow.pop %v1615
        %v1617 = vmul.f32 %v1224, 1.442695
        %v1618 = vpow.pop %v1617
        %v1619 = vmul.f32 %v1383, 1.442695
        %v1620 = vpow.pop %v1619
        %v1621 = vmul.f32 %v1385, 1.442695
        %v1622 = vpow.pop %v1621
        %v1623 = vmul.f32 %v906, 1.442695
        %v1624 = vpow.pop %v1623
        %v1625 = vmul.f32 %v908, 1.442695
        %v1626 = vpow.pop %v1625
        %v1627 = vmul.f32 %v1067, 1.442695
        %v1628 = vpow.pop %v1627
        %v1629 = vmul.f32 %v1069, 1.442695
        %v1630 = vpow.pop %v1629
        %v1631 = vmul.f32 %v1228, 1.442695
        %v1632 = vpow.pop %v1631
        %v1633 = vmul.f32 %v1230, 1.442695
        %v1634 = vpow.pop %v1633
        %v1635 = vmul.f32 %v1389, 1.442695
        %v1636 = vpow.pop %v1635
        %v1637 = vmul.f32 %v1391, 1.442695
        %v1638 = vpow.pop %v1637
        %v1639 = vmul.f32 %v912, 1.442695
        %v1640 = vpow.pop %v1639
        %v1641 = vmul.f32 %v914, 1.442695
        %v1642 = vpow.pop %v1641
        %v1643 = vmul.f32 %v1073, 1.442695
        %v1644 = vpow.pop %v1643
        %v1645 = vmul.f32 %v1075, 1.442695
        %v1646 = vpow.pop %v1645
        %v1647 = vmul.f32 %v1234, 1.442695
        %v1648 = vpow.pop %v1647
        %v1649 = vmul.f32 %v1236, 1.442695
        %v1650 = vpow.pop %v1649
        %v1651 = vmul.f32 %v1395, 1.442695
        %v1652 = vpow.pop %v1651
        %v1653 = vmul.f32 %v1397, 1.442695
        %v1654 = vpow.pop %v1653
        %v1655 = vpack.c.bf16 %v660, %v660
        %v1656 = vpack.c.bf16 %v1416, %v1400
        %v1657 = vpack.c.bf16 %v1418, %v1402
        %v1658 = vpack.c.bf16 %v1420, %v1404
        %v1659 = vpack.c.bf16 %v1422, %v1406
        %v1660 = vpack.c.bf16 %v1424, %v1408
        %v1661 = vpack.c.bf16 %v1426, %v1410
        %v1662 = vpack.c.bf16 %v1428, %v1412
        %v1663 = vpack.c.bf16 %v1430, %v1414
        %v1664 = vpack.c.bf16 %v1448, %v1432
        %v1665 = vpack.c.bf16 %v1450, %v1434
        %v1666 = vpack.c.bf16 %v1452, %v1436
        %v1667 = vpack.c.bf16 %v1454, %v1438
        %v1668 = vpack.c.bf16 %v1456, %v1440
        %v1669 = vpack.c.bf16 %v1458, %v1442
        %v1670 = vpack.c.bf16 %v1460, %v1444
        %v1671 = vpack.c.bf16 %v1462, %v1446
        %v1672 = vpack.c.bf16 %v1480, %v1464
        %v1673 = vpack.c.bf16 %v1482, %v1466
        %v1674 = vpack.c.bf16 %v1484, %v1468
        %v1675 = vpack.c.bf16 %v1486, %v1470
        %v1676 = vpack.c.bf16 %v1488, %v1472
        %v1677 = vpack.c.bf16 %v1490, %v1474
        %v1678 = vpack.c.bf16 %v1492, %v1476
        %v1679 = vpack.c.bf16 %v1494, %v1478
        %v1680 = vpack.c.bf16 %v1512, %v1496
        %v1681 = vpack.c.bf16 %v1514, %v1498
        %v1682 = vpack.c.bf16 %v1516, %v1500
        %v1683 = vpack.c.bf16 %v1518, %v1502
        %v1684 = vpack.c.bf16 %v1520, %v1504
        %v1685 = vpack.c.bf16 %v1522, %v1506
        %v1686 = vpack.c.bf16 %v1524, %v1508
        %v1687 = vpack.c.bf16 %v1526, %v1510
        %v1688 = vpack.c.bf16 %v1544, %v1528
        %v1689 = vpack.c.bf16 %v1546, %v1530
        %v1690 = vpack.c.bf16 %v1548, %v1532
        %v1691 = vpack.c.bf16 %v1550, %v1534
        %v1692 = vpack.c.bf16 %v1552, %v1536
        %v1693 = vpack.c.bf16 %v1554, %v1538
        %v1694 = vpack.c.bf16 %v1556, %v1540
        %v1695 = vpack.c.bf16 %v1558, %v1542
        %v1696 = vpack.c.bf16 %v1576, %v1560
        %v1697 = vpack.c.bf16 %v1578, %v1562
        %v1698 = vpack.c.bf16 %v1580, %v1564
        %v1699 = vpack.c.bf16 %v1582, %v1566
        %v1700 = vpack.c.bf16 %v1584, %v1568
        %v1701 = vpack.c.bf16 %v1586, %v1570
        %v1702 = vpack.c.bf16 %v1588, %v1572
        %v1703 = vpack.c.bf16 %v1590, %v1574
        %v1704 = vpack.c.bf16 %v1608, %v1592
        %v1705 = vpack.c.bf16 %v1610, %v1594
        %v1706 = vpack.c.bf16 %v1612, %v1596
        %v1707 = vpack.c.bf16 %v1614, %v1598
        %v1708 = vpack.c.bf16 %v1616, %v1600
        %v1709 = vpack.c.bf16 %v1618, %v1602
        %v1710 = vpack.c.bf16 %v1620, %v1604
        %v1711 = vpack.c.bf16 %v1622, %v1606
        %v1712 = vpack.c.bf16 %v1640, %v1624
        %v1713 = vpack.c.bf16 %v1642, %v1626
        %v1714 = vpack.c.bf16 %v1644, %v1628
        %v1715 = vpack.c.bf16 %v1646, %v1630
        %v1716 = vpack.c.bf16 %v1648, %v1632
        %v1717 = vpack.c.bf16 %v1650, %v1634
        %v1718 = vpack.c.bf16 %v1652, %v1636
        %v1719 = vpack.c.bf16 %v1654, %v1638
        %1720 = vmatprep.subr.bf16.mxu0 %v1657
        %1721 = vmatpush1.bf16.msra.mxu0 %v1656
        %1722 = vmatprep.subr.bf16.mxu0 %v1665
        %1723 = vmatpush1.bf16.msra.mxu0 %v1664
        %1724 = vmatprep.subr.bf16.mxu0 %v1673
        %1725 = vmatpush1.bf16.msra.mxu0 %v1672
        %1726 = vmatprep.subr.bf16.mxu0 %v1681
        %1727 = vmatpush1.bf16.msra.mxu0 %v1680
        %1728 = vmatprep.subr.bf16.mxu0 %v1689
        %1729 = vmatpush1.bf16.msra.mxu0 %v1688
        %1730 = vmatprep.subr.bf16.mxu0 %v1697
        %1731 = vmatpush1.bf16.msra.mxu0 %v1696
        %1732 = vmatprep.subr.bf16.mxu0 %v1705
        %1733 = vmatpush1.bf16.msra.mxu0 %v1704
        %1734 = vmatprep.subr.bf16.mxu0 %v1713
        %1735 = vmatpush1.bf16.msra.mxu0 %v1712
        %1736 = vmatprep.subr.bf16.mxu0 0
        %1737 = vmatpush1.bf16.msra.mxu0 0
        %1738 = vmatprep.subr.bf16.mxu0 0
        %1739 = vmatpush1.bf16.msra.mxu0 0
        %1740 = vmatprep.subr.bf16.mxu0 0
        %1741 = vmatpush1.bf16.msra.mxu0 0
        %1742 = vmatprep.subr.bf16.mxu0 0
        %1743 = vmatpush1.bf16.msra.mxu0 0
        %1744 = vmatprep.subr.bf16.mxu0 0
        %1745 = vmatpush1.bf16.msra.mxu0 0
        %1746 = vmatprep.subr.bf16.mxu0 0
        %1747 = vmatpush1.bf16.msra.mxu0 0
        %1748 = vmatprep.subr.bf16.mxu0 0
        %1749 = vmatpush1.bf16.msra.mxu0 0
        %1750 = vmatprep.subr.bf16.mxu0 0
        %1751 = vmatpush1.bf16.msra.mxu0 0
        %1752 = vmatprep.mubr.bf16.mxu0 0
        %1753 = vmatmul.mubr.bf16.gmra.mrb[0].mxu0 %v1655
        %v1754 = vpop.f32.mrb[0].mxu0
        %v1755 = vadd.f32 0.0, %v1754
        %v1756 = vpop.f32.mrb[0].mxu0
        %v1757 = vadd.f32 0.0, %v1756
        %v1758 = vpop.f32.mrb[0].mxu0
        %v1759 = vpop.f32.mrb[0].mxu0
        %1760 = vdwg.mxu0
        %1761 = vmatprep.subr.bf16.mxu0 %v1659
        %1762 = vmatpush1.bf16.msra.mxu0 %v1658
        %1763 = vmatprep.subr.bf16.mxu0 %v1667
        %1764 = vmatpush1.bf16.msra.mxu0 %v1666
        %1765 = vmatprep.subr.bf16.mxu0 %v1675
        %1766 = vmatpush1.bf16.msra.mxu0 %v1674
        %1767 = vmatprep.subr.bf16.mxu0 %v1683
        %1768 = vmatpush1.bf16.msra.mxu0 %v1682
        %1769 = vmatprep.subr.bf16.mxu0 %v1691
        %1770 = vmatpush1.bf16.msra.mxu0 %v1690
        %1771 = vmatprep.subr.bf16.mxu0 %v1699
        %1772 = vmatpush1.bf16.msra.mxu0 %v1698
        %1773 = vmatprep.subr.bf16.mxu0 %v1707
        %1774 = vmatpush1.bf16.msra.mxu0 %v1706
        %1775 = vmatprep.subr.bf16.mxu0 %v1715
        %1776 = vmatpush1.bf16.msra.mxu0 %v1714
        %1777 = vmatprep.subr.bf16.mxu0 0
        %1778 = vmatpush1.bf16.msra.mxu0 0
        %1779 = vmatprep.subr.bf16.mxu0 0
        %1780 = vmatpush1.bf16.msra.mxu0 0
        %1781 = vmatprep.subr.bf16.mxu0 0
        %1782 = vmatpush1.bf16.msra.mxu0 0
        %1783 = vmatprep.subr.bf16.mxu0 0
        %1784 = vmatpush1.bf16.msra.mxu0 0
        %1785 = vmatprep.subr.bf16.mxu0 0
        %1786 = vmatpush1.bf16.msra.mxu0 0
        %1787 = vmatprep.subr.bf16.mxu0 0
        %1788 = vmatpush1.bf16.msra.mxu0 0
        %1789 = vmatprep.subr.bf16.mxu0 0
        %1790 = vmatpush1.bf16.msra.mxu0 0
        %1791 = vmatprep.subr.bf16.mxu0 0
        %1792 = vmatpush1.bf16.msra.mxu0 0
        %1793 = vmatprep.mubr.bf16.mxu0 0
        %1794 = vmatmul.mubr.bf16.gmra.mrb[0].mxu0 %v1655
        %v1795 = vpop.f32.mrb[0].mxu0
        %v1796 = vadd.f32 0.0, %v1795
        %v1797 = vpop.f32.mrb[0].mxu0
        %v1798 = vadd.f32 0.0, %v1797
        %v1799 = vpop.f32.mrb[0].mxu0
        %v1800 = vpop.f32.mrb[0].mxu0
        %1801 = vdwg.mxu0
        %1802 = vmatprep.subr.bf16.mxu0 %v1661
        %1803 = vmatpush1.bf16.msra.mxu0 %v1660
        %1804 = vmatprep.subr.bf16.mxu0 %v1669
        %1805 = vmatpush1.bf16.msra.mxu0 %v1668
        %1806 = vmatprep.subr.bf16.mxu0 %v1677
        %1807 = vmatpush1.bf16.msra.mxu0 %v1676
        %1808 = vmatprep.subr.bf16.mxu0 %v1685
        %1809 = vmatpush1.bf16.msra.mxu0 %v1684
        %1810 = vmatprep.subr.bf16.mxu0 %v1693
        %1811 = vmatpush1.bf16.msra.mxu0 %v1692
        %1812 = vmatprep.subr.bf16.mxu0 %v1701
        %1813 = vmatpush1.bf16.msra.mxu0 %v1700
        %1814 = vmatprep.subr.bf16.mxu0 %v1709
        %1815 = vmatpush1.bf16.msra.mxu0 %v1708
        %1816 = vmatprep.subr.bf16.mxu0 %v1717
        %1817 = vmatpush1.bf16.msra.mxu0 %v1716
        %1818 = vmatprep.subr.bf16.mxu0 0
        %1819 = vmatpush1.bf16.msra.mxu0 0
        %1820 = vmatprep.subr.bf16.mxu0 0
        %1821 = vmatpush1.bf16.msra.mxu0 0
        %1822 = vmatprep.subr.bf16.mxu0 0
        %1823 = vmatpush1.bf16.msra.mxu0 0
        %1824 = vmatprep.subr.bf16.mxu0 0
        %1825 = vmatpush1.bf16.msra.mxu0 0
        %1826 = vmatprep.subr.bf16.mxu0 0
        %1827 = vmatpush1.bf16.msra.mxu0 0
        %1828 = vmatprep.subr.bf16.mxu0 0
        %1829 = vmatpush1.bf16.msra.mxu0 0
        %1830 = vmatprep.subr.bf16.mxu0 0
        %1831 = vmatpush1.bf16.msra.mxu0 0
        %1832 = vmatprep.subr.bf16.mxu0 0
        %1833 = vmatpush1.bf16.msra.mxu0 0
        %1834 = vmatprep.mubr.bf16.mxu0 0
        %1835 = vmatmul.mubr.bf16.gmra.mrb[0].mxu0 %v1655
        %v1836 = vpop.f32.mrb[0].mxu0
        %v1837 = vadd.f32 0.0, %v1836
        %v1838 = vpop.f32.mrb[0].mxu0
        %v1839 = vadd.f32 0.0, %v1838
        %v1840 = vpop.f32.mrb[0].mxu0
        %v1841 = vpop.f32.mrb[0].mxu0
        %1842 = vdwg.mxu0
        %1843 = vmatprep.subr.bf16.mxu0 %v1663
        %1844 = vmatpush1.bf16.msra.mxu0 %v1662
        %1845 = vmatprep.subr.bf16.mxu0 %v1671
        %1846 = vmatpush1.bf16.msra.mxu0 %v1670
        %1847 = vmatprep.subr.bf16.mxu0 %v1679
        %1848 = vmatpush1.bf16.msra.mxu0 %v1678
        %1849 = vmatprep.subr.bf16.mxu0 %v1687
        %1850 = vmatpush1.bf16.msra.mxu0 %v1686
        %1851 = vmatprep.subr.bf16.mxu0 %v1695
        %1852 = vmatpush1.bf16.msra.mxu0 %v1694
        %1853 = vmatprep.subr.bf16.mxu0 %v1703
        %1854 = vmatpush1.bf16.msra.mxu0 %v1702
        %1855 = vmatprep.subr.bf16.mxu0 %v1711
        %1856 = vmatpush1.bf16.msra.mxu0 %v1710
        %1857 = vmatprep.subr.bf16.mxu0 %v1719
        %1858 = vmatpush1.bf16.msra.mxu0 %v1718
        %1859 = vmatprep.subr.bf16.mxu0 0
        %1860 = vmatpush1.bf16.msra.mxu0 0
        %1861 = vmatprep.subr.bf16.mxu0 0
        %1862 = vmatpush1.bf16.msra.mxu0 0
        %1863 = vmatprep.subr.bf16.mxu0 0
        %1864 = vmatpush1.bf16.msra.mxu0 0
        %1865 = vmatprep.subr.bf16.mxu0 0
        %1866 = vmatpush1.bf16.msra.mxu0 0
        %1867 = vmatprep.subr.bf16.mxu0 0
        %1868 = vmatpush1.bf16.msra.mxu0 0
        %1869 = vmatprep.subr.bf16.mxu0 0
        %1870 = vmatpush1.bf16.msra.mxu0 0
        %1871 = vmatprep.subr.bf16.mxu0 0
        %1872 = vmatpush1.bf16.msra.mxu0 0
        %1873 = vmatprep.subr.bf16.mxu0 0
        %1874 = vmatpush1.bf16.msra.mxu0 0
        %1875 = vmatprep.mubr.bf16.mxu0 0
        %1876 = vmatmul.mubr.bf16.gmra.mrb[0].mxu0 %v1655
        %v1877 = vpop.f32.mrb[0].mxu0
        %v1878 = vadd.f32 0.0, %v1877
        %v1879 = vpop.f32.mrb[0].mxu0
        %v1880 = vadd.f32 0.0, %v1879
        %v1881 = vpop.f32.mrb[0].mxu0
        %v1882 = vpop.f32.mrb[0].mxu0
        %1883 = vdwg.mxu0
        %v1884 = vadd.f32 %v1755, 1e-06
        %v1885 = vadd.f32 %v1757, 1e-06
        %v1886 = vadd.f32 %v1796, 1e-06
        %v1887 = vadd.f32 %v1798, 1e-06
        %v1888 = vadd.f32 %v1837, 1e-06
        %v1889 = vadd.f32 %v1839, 1e-06
        %v1890 = vadd.f32 %v1878, 1e-06
        %v1891 = vadd.f32 %v1880, 1e-06
        %v1892 = vrcp.pop %v1884
        %v1893 = vrcp.pop %v1885
        %v1894 = vrcp.pop %v1886
        %v1895 = vrcp.pop %v1887
        %v1896 = vrcp.pop %v1888
        %v1897 = vrcp.pop %v1889
        %v1898 = vrcp.pop %v1890
        %v1899 = vrcp.pop %v1891
        %v1900 = vlaneseq
        %v1901 = vshrl.u32 %v1900, 7
        %v1902 = vsub.s32 3, %v1901
        %v1903 = vrot.slane %v1892, %v1902
        %v1904 = vlaneseq
        %v1905 = vshrl.u32 %v1904, 7
        %v1906 = vsub.s32 3, %v1905
        %v1907 = vrot.slane %v1893, %v1906
        %v1908 = vlaneseq
        %v1909 = vshrl.u32 %v1908, 7
        %v1910 = vsub.s32 3, %v1909
        %v1911 = vrot.slane %v1894, %v1910
        %v1912 = vlaneseq
        %v1913 = vshrl.u32 %v1912, 7
        %v1914 = vsub.s32 3, %v1913
        %v1915 = vrot.slane %v1895, %v1914
        %v1916 = vlaneseq
        %v1917 = vshrl.u32 %v1916, 7
        %v1918 = vsub.s32 3, %v1917
        %v1919 = vrot.slane %v1896, %v1918
        %v1920 = vlaneseq
        %v1921 = vshrl.u32 %v1920, 7
        %v1922 = vsub.s32 3, %v1921
        %v1923 = vrot.slane %v1897, %v1922
        %v1924 = vlaneseq
        %v1925 = vshrl.u32 %v1924, 7
        %v1926 = vsub.s32 3, %v1925
        %v1927 = vrot.slane %v1898, %v1926
        %v1928 = vlaneseq
        %v1929 = vshrl.u32 %v1928, 7
        %v1930 = vsub.s32 3, %v1929
        %v1931 = vrot.slane %v1899, %v1930
        %v1932 = vmul.f32 %v1755, %v1903
        %v1933 = vmul.f32 %v1757, %v1907
        %v1934 = vmul.f32 %v1796, %v1911
        %v1935 = vmul.f32 %v1798, %v1915
        %v1936 = vmul.f32 %v1837, %v1919
        %v1937 = vmul.f32 %v1839, %v1923
        %v1938 = vmul.f32 %v1878, %v1927
        %v1939 = vmul.f32 %v1880, %v1931
        %v1940 = vsub.f32 0.0, %v1755
        %v1941 = vsub.f32 0.0, %v1757
        %v1942 = vsub.f32 0.0, %v1796
        %v1943 = vsub.f32 0.0, %v1798
        %v1944 = vsub.f32 0.0, %v1837
        %v1945 = vsub.f32 0.0, %v1839
        %v1946 = vsub.f32 0.0, %v1878
        %v1947 = vsub.f32 0.0, %v1880
        %v1948 = vmul.f32 %v1940, 1.442695
        %v1949 = vpow.pop %v1948
        %v1950 = vmul.f32 %v1941, 1.442695
        %v1951 = vpow.pop %v1950
        %v1952 = vmul.f32 %v1942, 1.442695
        %v1953 = vpow.pop %v1952
        %v1954 = vmul.f32 %v1943, 1.442695
        %v1955 = vpow.pop %v1954
        %v1956 = vmul.f32 %v1944, 1.442695
        %v1957 = vpow.pop %v1956
        %v1958 = vmul.f32 %v1945, 1.442695
        %v1959 = vpow.pop %v1958
        %v1960 = vmul.f32 %v1946, 1.442695
        %v1961 = vpow.pop %v1960
        %v1962 = vmul.f32 %v1947, 1.442695
        %v1963 = vpow.pop %v1962
        %v1964 = vsub.f32 1.0, %v1949
        %v1965 = vsub.f32 1.0, %v1951
        %v1966 = vsub.f32 1.0, %v1953
        %v1967 = vsub.f32 1.0, %v1955
        %v1968 = vsub.f32 1.0, %v1957
        %v1969 = vsub.f32 1.0, %v1959
        %v1970 = vsub.f32 1.0, %v1961
        %v1971 = vsub.f32 1.0, %v1963
        %v1980 = vcombine.low %v1932, %v1933
        %v1981 = vcombine.low %v1934, %v1935
        %v1982 = vcombine.low %v1936, %v1937
        %v1983 = vcombine.low %v1938, %v1939
        %1988 = vst [vmem:[%s419] sm:$0x77] %v1980
        %1989 = vst [vmem:[%s419 + $0x8] sm:$0x77] %v1981
        %1990 = vst [vmem:[%s419 + $0x10] sm:$0x77] %v1982
        %1991 = vst [vmem:[%s419 + $0x18] sm:$0x77] %v1983
        %v2000 = vcombine.low %v1964, %v1965
        %v2001 = vcombine.low %v1966, %v1967
        %v2002 = vcombine.low %v1968, %v1969
        %v2003 = vcombine.low %v1970, %v1971
        %v2005 = vunpack.c.l.s4 1966171168
        %v2006 = vunpack.c.0.s8 %v2005
        %v2007 = vlaneseq
        %v2008 = vshrl.u32 %v2007, 7
        %v2009 = vsub.s32 %v2006, %v2008
        %v2010 = vrot.slane %v2000, %v2009
        %v2012 = vunpack.c.l.s4 1966171168
        %v2013 = vunpack.c.0.s8 %v2012
        %v2014 = vlaneseq
        %v2015 = vshrl.u32 %v2014, 7
        %v2016 = vsub.s32 %v2013, %v2015
        %v2017 = vrot.slane %v2001, %v2016
        %v2019 = vunpack.c.l.s4 1966171168
        %v2020 = vunpack.c.0.s8 %v2019
        %v2021 = vlaneseq
        %v2022 = vshrl.u32 %v2021, 7
        %v2023 = vsub.s32 %v2020, %v2022
        %v2024 = vrot.slane %v2002, %v2023
        %v2026 = vunpack.c.l.s4 1966171168
        %v2027 = vunpack.c.0.s8 %v2026
        %v2028 = vlaneseq
        %v2029 = vshrl.u32 %v2028, 7
        %v2030 = vsub.s32 %v2027, %v2029
        %v2031 = vrot.slane %v2003, %v2030
        %v2032 = vcombine.high %v2010, %v2017
        %v2033 = vcombine.high %v2024, %v2031
        %v2035 = vunpack.c.l.s4 1966171168
        %v2036 = vunpack.c.0.s8 %v2035
        %v2037 = vlaneseq
        %v2038 = vshrl.u32 %v2037, 7
        %v2039 = vsub.s32 %v2036, %v2038
        %v2040 = vrot.slane %v2032, %v2039
        %v2042 = vunpack.c.l.s4 1966171168
        %v2043 = vunpack.c.0.s8 %v2042
        %v2044 = vlaneseq
        %v2045 = vshrl.u32 %v2044, 7
        %v2046 = vsub.s32 %v2043, %v2045
        %v2047 = vrot.slane %v2033, %v2046
        %v2048 = vcombine.high %v2040, %v2047
        %s2050 = scalar_lea.vmem %s419, 3
        %2051 = vst [vmem:[%s2050] ss:$4 sm:$0xff] %v2048
        %vm2052 = vcmp.gt.f32.partialorder %v1964, 0.0
        %vm2053 = vcmp.gt.f32.partialorder %v1965, 0.0
        %vm2054 = vcmp.gt.f32.partialorder %v1966, 0.0
        %vm2055 = vcmp.gt.f32.partialorder %v1967, 0.0
        %vm2056 = vcmp.gt.f32.partialorder %v1968, 0.0
        %vm2057 = vcmp.gt.f32.partialorder %v1969, 0.0
        %vm2058 = vcmp.gt.f32.partialorder %v1970, 0.0
        %vm2059 = vcmp.gt.f32.partialorder %v1971, 0.0
        %v2060 = vsel %vm2052, 1, 0
        %v2061 = vsel %vm2053, 1, 0
        %v2062 = vsel %vm2054, 1, 0
        %v2063 = vsel %vm2055, 1, 0
        %v2064 = vsel %vm2056, 1, 0
        %v2065 = vsel %vm2057, 1, 0
        %v2066 = vsel %vm2058, 1, 0
        %v2067 = vsel %vm2059, 1, 0
        %v2068 = vcvt.s32.f32 %v2060
        %v2069 = vcvt.s32.f32 %v2061
        %v2070 = vcvt.s32.f32 %v2062
        %v2071 = vcvt.s32.f32 %v2063
        %v2072 = vcvt.s32.f32 %v2064
        %v2073 = vcvt.s32.f32 %v2065
        %v2074 = vcvt.s32.f32 %v2066
        %v2075 = vcvt.s32.f32 %v2067
        %v2076 = vld [vmem:[%s409] sm:$0x77]
        %v2077 = vld [vmem:[%s409 + $0x8] sm:$0x77]
        %v2078 = vld [vmem:[%s409 + $0x10] sm:$0x77]
        %v2079 = vld [vmem:[%s409 + $0x18] sm:$0x77]
        %v2080 = vlaneseq
        %v2081 = vshrl.u32 %v2080, 7
        %v2082 = vsub.s32 3, %v2081
        %v2083 = vrot.slane %v2068, %v2082
        %v2084 = vlaneseq
        %v2085 = vshrl.u32 %v2084, 7
        %v2086 = vsub.s32 3, %v2085
        %v2087 = vrot.slane %v2069, %v2086
        %v2088 = vlaneseq
        %v2089 = vshrl.u32 %v2088, 7
        %v2090 = vsub.s32 3, %v2089
        %v2091 = vrot.slane %v2070, %v2090
        %v2092 = vlaneseq
        %v2093 = vshrl.u32 %v2092, 7
        %v2094 = vsub.s32 3, %v2093
        %v2095 = vrot.slane %v2071, %v2094
        %v2096 = vlaneseq
        %v2097 = vshrl.u32 %v2096, 7
        %v2098 = vsub.s32 3, %v2097
        %v2099 = vrot.slane %v2072, %v2098
        %v2100 = vlaneseq
        %v2101 = vshrl.u32 %v2100, 7
        %v2102 = vsub.s32 3, %v2101
        %v2103 = vrot.slane %v2073, %v2102
        %v2104 = vlaneseq
        %v2105 = vshrl.u32 %v2104, 7
        %v2106 = vsub.s32 3, %v2105
        %v2107 = vrot.slane %v2074, %v2106
        %v2108 = vlaneseq
        %v2109 = vshrl.u32 %v2108, 7
        %v2110 = vsub.s32 3, %v2109
        %v2111 = vrot.slane %v2075, %v2110
        %v2120 = vcombine.low %v2083, %v2087
        %v2121 = vcombine.low %v2091, %v2095
        %v2122 = vcombine.low %v2099, %v2103
        %v2123 = vcombine.low %v2107, %v2111
        %v2128 = vmul.f32 %v2076, %v2120
        %v2129 = vmul.f32 %v2077, %v2121
        %v2130 = vmul.f32 %v2078, %v2122
        %v2131 = vmul.f32 %v2079, %v2123
        %v2136 = vcombine.high %v2128, %v2128
        %v2137 = vcombine.high %v2129, %v2129
        %v2138 = vcombine.high %v2130, %v2130
        %v2139 = vcombine.high %v2131, %v2131
        %v2144 = vsub.f32 %v1932, %v2128
        %v2145 = vsub.f32 %v1933, %v2136
        %v2146 = vsub.f32 %v1934, %v2129
        %v2147 = vsub.f32 %v1935, %v2137
        %v2148 = vsub.f32 %v1936, %v2130
        %v2149 = vsub.f32 %v1937, %v2138
        %v2150 = vsub.f32 %v1938, %v2131
        %v2151 = vsub.f32 %v1939, %v2139
        %v2152 = vmul.f32 %v2144, %v2144
        %v2153 = vmul.f32 %v2145, %v2145
        %v2154 = vmul.f32 %v2146, %v2146
        %v2155 = vmul.f32 %v2147, %v2147
        %v2156 = vmul.f32 %v2148, %v2148
        %v2157 = vmul.f32 %v2149, %v2149
        %v2158 = vmul.f32 %v2150, %v2150
        %v2159 = vmul.f32 %v2151, %v2151
        %v2160 = vsel %vm659, %v2152, 0.0
        %v2161 = vrot.slane %v2160, 4
        %v2162 = vadd.f32 %v2160, %v2161
        %v2163 = vrot.slane %v2162, 2
        %v2164 = vadd.f32 %v2162, %v2163
        %v2165 = vrot.slane %v2164, 1
        %v2166 = vadd.f32 %v2164, %v2165
        %v2167 = vsel %vm659, %v2153, 0.0
        %v2168 = vrot.slane %v2167, 4
        %v2169 = vadd.f32 %v2167, %v2168
        %v2170 = vrot.slane %v2169, 2
        %v2171 = vadd.f32 %v2169, %v2170
        %v2172 = vrot.slane %v2171, 1
        %v2173 = vadd.f32 %v2171, %v2172
        %v2174 = vsel %vm659, %v2154, 0.0
        %v2175 = vrot.slane %v2174, 4
        %v2176 = vadd.f32 %v2174, %v2175
        %v2177 = vrot.slane %v2176, 2
        %v2178 = vadd.f32 %v2176, %v2177
        %v2179 = vrot.slane %v2178, 1
        %v2180 = vadd.f32 %v2178, %v2179
        %v2181 = vsel %vm659, %v2155, 0.0
        %v2182 = vrot.slane %v2181, 4
        %v2183 = vadd.f32 %v2181, %v2182
        %v2184 = vrot.slane %v2183, 2
        %v2185 = vadd.f32 %v2183, %v2184
        %v2186 = vrot.slane %v2185, 1
        %v2187 = vadd.f32 %v2185, %v2186
        %v2188 = vsel %vm659, %v2156, 0.0
        %v2189 = vrot.slane %v2188, 4
        %v2190 = vadd.f32 %v2188, %v2189
        %v2191 = vrot.slane %v2190, 2
        %v2192 = vadd.f32 %v2190, %v2191
        %v2193 = vrot.slane %v2192, 1
        %v2194 = vadd.f32 %v2192, %v2193
        %v2195 = vsel %vm659, %v2157, 0.0
        %v2196 = vrot.slane %v2195, 4
        %v2197 = vadd.f32 %v2195, %v2196
        %v2198 = vrot.slane %v2197, 2
        %v2199 = vadd.f32 %v2197, %v2198
        %v2200 = vrot.slane %v2199, 1
        %v2201 = vadd.f32 %v2199, %v2200
        %v2202 = vsel %vm659, %v2158, 0.0
        %v2203 = vrot.slane %v2202, 4
        %v2204 = vadd.f32 %v2202, %v2203
        %v2205 = vrot.slane %v2204, 2
        %v2206 = vadd.f32 %v2204, %v2205
        %v2207 = vrot.slane %v2206, 1
        %v2208 = vadd.f32 %v2206, %v2207
        %v2209 = vsel %vm659, %v2159, 0.0
        %v2210 = vrot.slane %v2209, 4
        %v2211 = vadd.f32 %v2209, %v2210
        %v2212 = vrot.slane %v2211, 2
        %v2213 = vadd.f32 %v2211, %v2212
        %v2214 = vrot.slane %v2213, 1
        %v2215 = vadd.f32 %v2213, %v2214
        %v2224 = vcombine.low %v2166, %v2173
        %v2225 = vcombine.low %v2180, %v2187
        %v2226 = vcombine.low %v2194, %v2201
        %v2227 = vcombine.low %v2208, %v2215
        %v2229 = vunpack.c.l.s4 1966171168
        %v2230 = vunpack.c.0.s8 %v2229
        %v2231 = vlaneseq
        %v2232 = vshrl.u32 %v2231, 7
        %v2233 = vsub.s32 %v2230, %v2232
        %v2234 = vrot.slane %v2224, %v2233
        %v2236 = vunpack.c.l.s4 1966171168
        %v2237 = vunpack.c.0.s8 %v2236
        %v2238 = vlaneseq
        %v2239 = vshrl.u32 %v2238, 7
        %v2240 = vsub.s32 %v2237, %v2239
        %v2241 = vrot.slane %v2225, %v2240
        %v2243 = vunpack.c.l.s4 1966171168
        %v2244 = vunpack.c.0.s8 %v2243
        %v2245 = vlaneseq
        %v2246 = vshrl.u32 %v2245, 7
        %v2247 = vsub.s32 %v2244, %v2246
        %v2248 = vrot.slane %v2226, %v2247
        %v2250 = vunpack.c.l.s4 1966171168
        %v2251 = vunpack.c.0.s8 %v2250
        %v2252 = vlaneseq
        %v2253 = vshrl.u32 %v2252, 7
        %v2254 = vsub.s32 %v2251, %v2253
        %v2255 = vrot.slane %v2227, %v2254
        %v2256 = vcombine.low %v2234, %v2241
        %v2257 = vcombine.low %v2248, %v2255
        %v2259 = vunpack.c.l.s4 1966171168
        %v2260 = vunpack.c.0.s8 %v2259
        %v2261 = vlaneseq
        %v2262 = vshrl.u32 %v2261, 7
        %v2263 = vsub.s32 %v2260, %v2262
        %v2264 = vrot.slane %v2256, %v2263
        %v2266 = vunpack.c.l.s4 1966171168
        %v2267 = vunpack.c.0.s8 %v2266
        %v2268 = vlaneseq
        %v2269 = vshrl.u32 %v2268, 7
        %v2270 = vsub.s32 %v2267, %v2269
        %v2271 = vrot.slane %v2257, %v2270
        %v2272 = vcombine.low %v2264, %v2271
        %2274 = vst [vmem:[%s428] sm:$0xff] %v2272
        %s2275 = smul.u32 8, %s25
        %p2276 = scmp.lt.s32.totalorder %s24, 1
        %s2277 = scalar_select %p2276, %s24, 1
        %p2278 = scmp.lt.s32.totalorder %s2275, 7
        %s2279 = scalar_select %p2278, %s2275, 7
        %s2280 = smul.addr %s2277, 8
        %s2281 = sadd.s32 %s2279, %s2280
        %s2282 = smul.addr %s2281, 4
        %s2283 = scalar_lea.vmem %s6, %s2282
        %s2284 = smul.u32 8, %s25
        %p2285 = scmp.lt.s32.totalorder %s24, 1
        %s2286 = scalar_select %p2285, %s24, 1
        %p2287 = scmp.lt.s32.totalorder %s2284, 7
        %s2288 = scalar_select %p2287, %s2284, 7
        %s2289 = smul.addr %s2286, 8
        %s2290 = sadd.s32 %s2288, %s2289
        %s2291 = scalar_lea.vmem %s7, %s2290
        // Predicated region
        $region49: #{bfm_face_loss_forward.3} parent=43 // pred_check
          %p2292 = pneg %p205
        $region50: #{bfm_face_loss_forward.3} parent=43 // pred_check_branch
          %2294 = sbr.rel (%p2292) target = $region52
        $region51: #{bfm_face_loss_forward.3} parent=43 // pred_region
          %s2295 = smul.u32 8, %s25
        $region52: #{bfm_face_loss_forward.3} parent=43 // pred_fallthru
          _
        // Predicated region
        $region53: #{bfm_face_loss_forward.3} parent=43 // pred_check
          %p2296 = pneg %p233
        $region54: #{bfm_face_loss_forward.3} parent=43 // pred_check_branch
          %2298 = sbr.rel (%p2296) target = $region56
        $region55: #{bfm_face_loss_forward.3} parent=43 // pred_region
          %s2299 = smul.u32 8, %s25
        $region56: #{bfm_face_loss_forward.3} parent=43 // pred_fallthru
          _
      $region44: #{bfm_face_loss_forward.3} parent=5 // pred_fallthru
        _
      %p2300 = scmp.le.s32.totalorder 2, %s15
      // Predicated region
      $region57: #{bfm_face_loss_forward.3} parent=5 // pred_check
        %p2301 = pneg %p2300
      $region58: #{bfm_face_loss_forward.3} parent=5 // pred_check_branch
        %2303 = sbr.rel (%p2301) target = $region60
      $region59: #{bfm_face_loss_forward.3} parent=5 // pred_region
        %s2304 = ssub.s32 %s15, 2
        // Predicated region
        $region61: #{bfm_face_loss_forward.3} parent=59 // pred_check
          %p2305 = pneg %p211
        $region62: #{bfm_face_loss_forward.3} parent=59 // pred_check_branch
          %2307 = sbr.rel (%p2305) target = $region64
        $region63: #{bfm_face_loss_forward.3} parent=59 // pred_region
          %s2308 = smul.u32 8, %s27
          %p2309 = scmp.lt.s32.totalorder %s26, 1
          %s2310 = scalar_select %p2309, %s26, 1
          %p2311 = scmp.lt.s32.totalorder %s2308, 7
          %s2312 = scalar_select %p2311, %s2308, 7
          %s2313 = smul.addr %s2310, 8
          %s2314 = sadd.s32 %s2312, %s2313
          %s2315 = smul.addr %s2314, 4
          %s2316 = scalar_lea.vmem %s6, %s2315
        $region64: #{bfm_face_loss_forward.3} parent=59 // pred_fallthru
          _
        // Predicated region
        $region65: #{bfm_face_loss_forward.3} parent=59 // pred_check
          %p2317 = pneg %p239
        $region66: #{bfm_face_loss_forward.3} parent=59 // pred_check_branch
          %2319 = sbr.rel (%p2317) target = $region68
        $region67: #{bfm_face_loss_forward.3} parent=59 // pred_region
          %s2320 = smul.u32 8, %s27
          %p2321 = scmp.lt.s32.totalorder %s26, 1
          %s2322 = scalar_select %p2321, %s26, 1
          %p2323 = scmp.lt.s32.totalorder %s2320, 7
          %s2324 = scalar_select %p2323, %s2320, 7
          %s2325 = smul.addr %s2322, 8
          %s2326 = sadd.s32 %s2324, %s2325
          %s2327 = scalar_lea.vmem %s7, %s2326
        $region68: #{bfm_face_loss_forward.3} parent=59 // pred_fallthru
          _
      $region60: #{bfm_face_loss_forward.3} parent=5 // pred_fallthru
        _
    $region6: #{bfm_face_loss_forward.3} parent=1 // loop_footer
      %s19 = sadd.s32 1, %s15
    $region7: #{bfm_face_loss_forward.3} parent=1 // loop_footer_branch
      %14 = sbr.rel target = $region3
    $region8: #{bfm_face_loss_forward.3} parent=1 // loop_exit
      _
    %2328 = vsyncpa [#allocation3], 1
    %s2329 = scalar_lea.sflag [#allocation3], 1
    %2330 = vsyncpa %s2329, 1

</llo_original>
